<compile_context>
chip_gen: v5e
topology: v5e:2x2
jax: 0.10.0
libtpu: 0.0.40
codegen_flags: <defaults>
</compile_context>

<pallas_src>
import jax
import jax.numpy as jnp
from jax.experimental import pallas as pl
from jax.experimental.pallas import tpu as pltpu


# bf16 storage/matmul dtype per the perf review (accumulation is always f32).
# Set to jnp.float32 to recover bit-level parity with the PyTorch reference.
MATMUL_DTYPE = jnp.bfloat16

NEG_INF = -1e30  # finite "-inf" for log-softmax lane masking (no NaN risk)


# ---------------------------------------------------------------------------
# Small helpers
# ---------------------------------------------------------------------------

def _round_up(x, m):
    return (x + m - 1) // m * m


def _tile_and_pad(m, max_tile, min_steps=2):
    """Row tile (multiple of 8) + padded M it tiles exactly.

    Caps the tile so the grid has >= min_steps steps whenever M > 8, keeping
    both v7x TensorCores fed via dimension_semantics=("parallel",).
    """
    mr = _round_up(m, 8)
    if mr <= 8:
        return mr, mr
    cap = _round_up(pl.cdiv(mr, min_steps), 8)
    tm = min(max_tile, cap)
    return tm, _round_up(mr, tm)


def _pad_last(a, target):
    pad = target - a.shape[-1]
    if pad == 0:
        return a
    cfg = [(0, 0)] * (a.ndim - 1) + [(0, pad)]
    return jnp.pad(a, cfg)


def _pad2(a, rows, cols):
    r, c = a.shape
    return jnp.pad(a, ((0, rows - r), (0, cols - c)))


def _pad1(v, n, fill=0.0):
    extra = n - v.shape[0]
    return jnp.concatenate([v, jnp.full((extra,), fill, v.dtype)])


def _compiler_params():
    # 32 MiB scoped VMEM is valid on v5e/v6e (128 MiB physical) and v7x
    # (64 MiB physical, 32 MiB default scoped).  With bf16 weights the
    # largest call (fused FC) needs ~8 MiB, so no pl.Buffered(1) tricks are
    # required to fit v5e's 16 MiB default either.
    return pltpu.CompilerParams(
        dimension_semantics=("parallel",),
        vmem_limit_bytes=32 * 1024 * 1024,
    )


def _mm(a, b):
    return jnp.dot(a.astype(MATMUL_DTYPE), b.astype(MATMUL_DTYPE),
                   preferred_element_type=jnp.float32)


# ---------------------------------------------------------------------------
# Pallas kernels
# ---------------------------------------------------------------------------

def conv_pool_relu_kernel(x_ref, w_ref, b_ref, o_ref):
    # Fused conv-as-matmul + bias + ReLU + 2x2/stride-2 maxpool.
    # x_ref: (4, tm, K)  -- slot axis = the 4 pixels of each pool window
    # w_ref: (K, Np) resident (bf16), b_ref: (1, Np) f32, o_ref: (tm, Np) bf16
    # relu(max_s(x[s]@w) + b) == maxpool(relu(conv + b)) since b is shared and
    # relu is monotone.  ONE MXU pass on the (4*tm, K) block amortizes the
    # weight load; max is taken over the 4 row groups afterwards.
    s, tm, K = x_ref.shape
    y = _mm(x_ref[...].reshape(s * tm, K), w_ref[...])          # (4*tm, Np) f32
    mx = jnp.maximum(jnp.maximum(y[0 * tm:1 * tm], y[1 * tm:2 * tm]),
                     jnp.maximum(y[2 * tm:3 * tm], y[3 * tm:4 * tm]))
    o_ref[...] = jnp.maximum(mx + b_ref[...], 0.0).astype(o_ref.dtype)


def fc_fused_kernel(x_ref, w1_ref, b1_ref, w2_ref, b2_ref, h_ref, o_ref):
    # fc1 + ReLU + fc2 + log_softmax in one kernel; both weights resident.
    # Padded logit lanes carry bias = -1e30 (and zero weight columns), so the
    # max / exp-sum reductions over the full 128-lane vreg ignore them.
    h = jnp.maximum(_mm(x_ref[...], w1_ref[...]) + b1_ref[...], 0.0)  # f32
    h_ref[...] = h.astype(h_ref.dtype)
    z = _mm(h, w2_ref[...]) + b2_ref[...]                             # f32
    m = jnp.max(z, axis=-1, keepdims=True)
    s = z - m
    lse = jnp.log(jnp.sum(jnp.exp(s), axis=-1, keepdims=True))
    o_ref[...] = (s - lse).astype(o_ref.dtype)


# ---------------------------------------------------------------------------
# pallas_call wrappers (grid over M, weights/biases resident)
# ---------------------------------------------------------------------------

def conv_pool_relu(patches, w, b, *, tile_m_max=512):
    # patches: (4, M, K) bf16, w: (K, Np) bf16, b: (Np,) f32
    _, M, K = patches.shape
    Np = w.shape[1]
    tm, Mp = _tile_and_pad(M, tile_m_max)
    if Mp != M:
        patches = jnp.pad(patches, ((0, 0), (0, Mp - M), (0, 0)))
    out = pl.pallas_call(
        conv_pool_relu_kernel,
        out_shape=jax.ShapeDtypeStruct((Mp, Np), MATMUL_DTYPE),
        grid=(Mp // tm,),
        in_specs=[
            pl.BlockSpec((4, tm, K), lambda i: (0, i, 0)),
            pl.BlockSpec((K, Np), lambda i: (0, 0)),
            pl.BlockSpec((1, Np), lambda i: (0, 0)),
        ],
        out_specs=pl.BlockSpec((tm, Np), lambda i: (i, 0)),
        compiler_params=_compiler_params(),
    )(patches, w, b.reshape(1, Np))
    return out[:M]


def fc_fused(x, w1, b1, w2, b2, *, tile_m_max=256):
    # x: (M, K) bf16, w1: (K, H) bf16, b1: (H,) f32, w2: (H, C) bf16, b2: (C,) f32
    M, K = x.shape
    H = w1.shape[1]
    C = w2.shape[1]
    tm, Mp = _tile_and_pad(M, tile_m_max)
    if Mp != M:
        x = jnp.pad(x, ((0, Mp - M), (0, 0)))
    hidden, logp = pl.pallas_call(
        fc_fused_kernel,
        out_shape=(jax.ShapeDtypeStruct((Mp, H), jnp.float32),
                   jax.ShapeDtypeStruct((Mp, C), jnp.float32)),
        grid=(Mp // tm,),
        in_specs=[
            pl.BlockSpec((tm, K), lambda i: (i, 0)),
            pl.BlockSpec((K, H), lambda i: (0, 0)),
            pl.BlockSpec((1, H), lambda i: (0, 0)),
            pl.BlockSpec((H, C), lambda i: (0, 0)),
            pl.BlockSpec((1, C), lambda i: (0, 0)),
        ],
        out_specs=(pl.BlockSpec((tm, H), lambda i: (i, 0)),
                   pl.BlockSpec((tm, C), lambda i: (i, 0))),
        compiler_params=_compiler_params(),
    )(x, w1, b1.reshape(1, H), w2, b2.reshape(1, C))
    return logp[:M], hidden[:M]


# ---------------------------------------------------------------------------
# Glue: im2col with 2x2-pool-window row grouping (column order (c, kh, kw)
# matches the PyTorch Conv2d weight flatten).
# ---------------------------------------------------------------------------

def im2col_pooled(x_nhwc, k):
    N, H, W, C = x_nhwc.shape
    Ho, Wo = H - k + 1, W - k + 1
    Hp, Wp = Ho // 2, Wo // 2
    cols = []
    for i in range(k):
        for j in range(k):
            cols.append(x_nhwc[:, i:i + Ho, j:j + Wo, :])       # (N,Ho,Wo,C)
    patches = jnp.stack(cols, axis=3)                           # (N,Ho,Wo,k*k,C)
    patches = jnp.transpose(patches, (0, 1, 2, 4, 3))           # (N,Ho,Wo,C,k*k)
    patches = patches.reshape(N, Ho, Wo, C * k * k)
    # group the 2x2 pooling window pixels into a leading slot axis
    patches = patches.reshape(N, Hp, 2, Wp, 2, C * k * k)
    patches = jnp.transpose(patches, (2, 4, 0, 1, 3, 5))        # (2,2,N,Hp,Wp,K)
    return patches.reshape(4, N * Hp * Wp, C * k * k)


# TODO(synk): move patch extraction in-kernel (pl.ds window loads / manual
# make_async_copy from a pl.ANY NHWC ref) so the im2col matrix is never
# materialized in HBM; bf16 halves that traffic for now but does not remove it.


# ---------------------------------------------------------------------------
# One-time weight preparation (lane-padded (K, N) layouts, bf16 storage)
# ---------------------------------------------------------------------------

def prepare_params(params):
    dt = MATMUL_DTYPE
    c1w = _pad2(params["conv1_w"].reshape(20, 25).T, 32, 128).astype(dt)
    c1b = _pad1(params["conv1_b"], 128, 0.0)                               # f32

    c2w = _pad2(params["conv2_w"].reshape(50, 20 * 25).T, 512, 128).astype(dt)
    c2b = _pad1(params["conv2_b"], 128, 0.0)                               # f32

    # fc1 consumes the NHWC, channel-padded-to-128 flatten of the conv2 output
    # directly: permute + pad its weight so no activation transpose is needed,
    # while matching PyTorch's x.view(-1, 800) == (c, h, w) flatten order.
    f1w = params["fc1_w"].reshape(500, 50, 4, 4)                     # (j,c,h,w)
    f1w = jnp.transpose(f1w, (2, 3, 1, 0))                           # (h,w,c,j)
    f1w = jnp.pad(f1w, ((0, 0), (0, 0), (0, 128 - 50), (0, 0)))      # (4,4,128,500)
    f1w = f1w.reshape(4 * 4 * 128, 500)                              # (2048,500)
    f1w = jnp.pad(f1w, ((0, 0), (0, 512 - 500))).astype(dt)          # (2048,512)
    f1b = _pad1(params["fc1_b"], 512, 0.0)                           # f32

    f2w = _pad2(params["fc2_w"].T, 512, 128).astype(dt)              # (512,128)
    f2b = _pad1(params["fc2_b"], 128, NEG_INF)                       # f32, mask pads

    return {"c1w": c1w, "c1b": c1b, "c2w": c2w, "c2b": c2b,
            "f1w": f1w, "f1b": f1b, "f2w": f2w, "f2b": f2b}


# ---------------------------------------------------------------------------
# Full forward pass (matches PyTorch Net.forward)
# ---------------------------------------------------------------------------

def net_forward(x_nchw, p):
    N = x_nchw.shape[0]
    x = jnp.transpose(x_nchw, (0, 2, 3, 1)).astype(MATMUL_DTYPE)  # NHWC bf16

    # conv1(1->20,5x5) + ReLU + maxpool(2,2)  -- fused kernel
    p1 = _pad_last(im2col_pooled(x, 5), 32)                       # (4, N*144, 32)
    o1 = conv_pool_relu(p1, p["c1w"], p["c1b"], tile_m_max=1024)  # (N*144, 128)
    a1 = o1.reshape(N, 12, 12, 128)[..., :20]                     # NHWC, real chans

    # conv2(20->50,5x5) + ReLU + maxpool(2,2) -- fused kernel
    p2 = _pad_last(im2col_pooled(a1, 5), 512)                     # (4, N*16, 512)
    o2 = conv_pool_relu(p2, p["c2w"], p["c2b"], tile_m_max=512)   # (N*16, 128)

    # flatten (NHWC with padded C); fc1 weights were permuted to match, so the
    # PyTorch x.view(-1, 800) semantics are preserved without a transpose.
    flat = o2.reshape(N, 16 * 128)                                # (N, 2048) bf16

    # fc1 + ReLU + fc2 + log_softmax in ONE pallas_call (two outputs).
    logp_pad, hidden_pad = fc_fused(flat, p["f1w"], p["f1b"],
                                    p["f2w"], p["f2b"], tile_m_max=256)

    return logp_pad[:, :10], hidden_pad[:, :500]


# ---------------------------------------------------------------------------
# Deterministic synthetic parameters (same shapes as the PyTorch module)
# ---------------------------------------------------------------------------

def init_params(key):
    ks = jax.random.split(key, 8)
    scale = 0.05
    return {
        "conv1_w": scale * jax.random.normal(ks[0], (20, 1, 5, 5), jnp.float32),
        "conv1_b": scale * jax.random.normal(ks[1], (20,), jnp.float32),
        "conv2_w": scale * jax.random.normal(ks[2], (50, 20, 5, 5), jnp.float32),
        "conv2_b": scale * jax.random.normal(ks[3], (50,), jnp.float32),
        "fc1_w": scale * jax.random.normal(ks[4], (500, 800), jnp.float32),
        "fc1_b": scale * jax.random.normal(ks[5], (500,), jnp.float32),
        "fc2_w": scale * jax.random.normal(ks[6], (10, 500), jnp.float32),
        "fc2_b": scale * jax.random.normal(ks[7], (10,), jnp.float32),
    }


if __name__ == "__main__":
    root = jax.random.PRNGKey(0)
    k_params, k_x = jax.random.split(root)
    params = init_params(k_params)
    prepped = prepare_params(params)          # one-time weight layout/pad/bf16

    # 28x28 MNIST-style input is required by the 4*4*50 flatten; batch = 2.
    x = jax.random.normal(k_x, (2, 1, 28, 28), jnp.float32)

    logp, hidden = jax.jit(net_forward)(x, prepped)
    jax.block_until_ready((logp, hidden))

    assert logp.shape == (2, 10) and hidden.shape == (2, 500)
    # log_softmax rows must sum (in prob space) to ~1 (reductions run in f32)
    assert bool(jnp.allclose(jnp.sum(jnp.exp(logp), axis=1), 1.0, atol=1e-4))

    print("KERNEL_OK")
</pallas_src>

<mosaic_0001>
module attributes {stable_mosaic.version = 11 : i64} {
  func.func @conv_pool_relu_kernel(%arg0: i32, %arg1: memref<4x144x32xbf16, #tpu.memory_space<vmem>>, %arg2: memref<32x128xbf16, #tpu.memory_space<vmem>>, %arg3: memref<1x128xf32, #tpu.memory_space<vmem>>, %arg4: memref<144x128xbf16, #tpu.memory_space<vmem>>) attributes {dimension_semantics = [#tpu.dimension_semantics<parallel>], iteration_bounds = array<i64: 2>, scalar_prefetch = 0 : i64, scratch_operands = 0 : i64, tpu.core_type = #tpu.core_type<tc>, window_params = [{transform_indices = @transform_0, window_bounds = array<i64: 4, 144, 32>}, {pipeline_mode = #tpu.pipeline_mode<synchronous>, transform_indices = @transform_1, window_bounds = array<i64: 32, 128>}, {pipeline_mode = #tpu.pipeline_mode<synchronous>, transform_indices = @transform_2, window_bounds = array<i64: 1, 128>}, {transform_indices = @transform_3, window_bounds = array<i64: 144, 128>}]} {
    %c0 = arith.constant 0 : index
    %c0_0 = arith.constant 0 : index
    %c0_1 = arith.constant 0 : index
    %0 = vector.load %arg1[%c0, %c0_0, %c0_1] : memref<4x144x32xbf16, #tpu.memory_space<vmem>>, vector<4x144x32xbf16>
    %1 = vector.shape_cast %0 : vector<4x144x32xbf16> to vector<576x32xbf16>
    %c0_2 = arith.constant 0 : index
    %c0_3 = arith.constant 0 : index
    %2 = vector.load %arg2[%c0_2, %c0_3] : memref<32x128xbf16, #tpu.memory_space<vmem>>, vector<32x128xbf16>
    %cst = arith.constant dense<0.000000e+00> : vector<576x128xf32>
    %3 = tpu.matmul %1, %2, %cst {dimension_numbers = #tpu.dot_dimension_numbers<[1], [0], [0], [1], [0, 0, 1, 1], [], []>} : vector<576x32xbf16>, vector<32x128xbf16>, vector<576x128xf32> -> vector<576x128xf32>
    %4 = vector.extract_strided_slice %3 {offsets = [0, 0], sizes = [144, 128], strides = [1, 1]} : vector<576x128xf32> to vector<144x128xf32>
    %5 = vector.extract_strided_slice %3 {offsets = [144, 0], sizes = [144, 128], strides = [1, 1]} : vector<576x128xf32> to vector<144x128xf32>
    %6 = arith.maximumf %4, %5 : vector<144x128xf32>
    %7 = vector.extract_strided_slice %3 {offsets = [288, 0], sizes = [144, 128], strides = [1, 1]} : vector<576x128xf32> to vector<144x128xf32>
    %8 = vector.extract_strided_slice %3 {offsets = [432, 0], sizes = [144, 128], strides = [1, 1]} : vector<576x128xf32> to vector<144x128xf32>
    %9 = arith.maximumf %7, %8 : vector<144x128xf32>
    %10 = arith.maximumf %6, %9 : vector<144x128xf32>
    %c0_4 = arith.constant 0 : index
    %c0_5 = arith.constant 0 : index
    %11 = vector.load %arg3[%c0_4, %c0_5] : memref<1x128xf32, #tpu.memory_space<vmem>>, vector<1x128xf32>
    %12 = vector.broadcast %11 : vector<1x128xf32> to vector<144x128xf32>
    %13 = arith.addf %10, %12 : vector<144x128xf32>
    %cst_6 = arith.constant 0.000000e+00 : f32
    %14 = vector.broadcast %cst_6 : f32 to vector<144x128xf32>
    %15 = arith.maximumf %13, %14 : vector<144x128xf32>
    %16 = arith.truncf %15 : vector<144x128xf32> to vector<144x128xbf16>
    %c0_7 = arith.constant 0 : index
    %c0_8 = arith.constant 0 : index
    %17 = vector.load %arg4[%c0_7, %c0_8] : memref<144x128xbf16, #tpu.memory_space<vmem>>, vector<144x128xbf16>
    tpu.vector_store %arg4[%c0_7, %c0_8], %16 {strides = array<i32>} : memref<144x128xbf16, #tpu.memory_space<vmem>>, vector<144x128xbf16>,
    return
  }
  func.func @transform_0(%arg0: i32) -> (i32, i32, i32) {
    %c0_i32 = arith.constant 0 : i32
    %c0_i32_0 = arith.constant 0 : i32
    %c0_i32_1 = arith.constant 0 : i32
    return %c0_i32, %arg0, %c0_i32_0 : i32, i32, i32
  }
  func.func @transform_1(%arg0: i32) -> (i32, i32) {
    %c0_i32 = arith.constant 0 : i32
    %c0_i32_0 = arith.constant 0 : i32
    %c0_i32_1 = arith.constant 0 : i32
    return %c0_i32, %c0_i32_0 : i32, i32
  }
  func.func @transform_2(%arg0: i32) -> (i32, i32) {
    %c0_i32 = arith.constant 0 : i32
    %c0_i32_0 = arith.constant 0 : i32
    %c0_i32_1 = arith.constant 0 : i32
    return %c0_i32, %c0_i32_0 : i32, i32
  }
  func.func @transform_3(%arg0: i32) -> (i32, i32) {
    %c0_i32 = arith.constant 0 : i32
    %c0_i32_0 = arith.constant 0 : i32
    return %arg0, %c0_i32 : i32, i32
  }
}

module attributes {stable_mosaic.version = 11 : i64} {
  func.func @conv_pool_relu_kernel(%arg0: i32, %arg1: memref<4x16x512xbf16, #tpu.memory_space<vmem>>, %arg2: memref<512x128xbf16, #tpu.memory_space<vmem>>, %arg3: memref<1x128xf32, #tpu.memory_space<vmem>>, %arg4: memref<16x128xbf16, #tpu.memory_space<vmem>>) attributes {dimension_semantics = [#tpu.dimension_semantics<parallel>], iteration_bounds = array<i64: 2>, scalar_prefetch = 0 : i64, scratch_operands = 0 : i64, tpu.core_type = #tpu.core_type<tc>, window_params = [{transform_indices = @transform_0, window_bounds = array<i64: 4, 16, 512>}, {pipeline_mode = #tpu.pipeline_mode<synchronous>, transform_indices = @transform_1, window_bounds = array<i64: 512, 128>}, {pipeline_mode = #tpu.pipeline_mode<synchronous>, transform_indices = @transform_2, window_bounds = array<i64: 1, 128>}, {transform_indices = @transform_3, window_bounds = array<i64: 16, 128>}]} {
    %c0 = arith.constant 0 : index
    %c0_0 = arith.constant 0 : index
    %c0_1 = arith.constant 0 : index
    %0 = vector.load %arg1[%c0, %c0_0, %c0_1] : memref<4x16x512xbf16, #tpu.memory_space<vmem>>, vector<4x16x512xbf16>
    %1 = vector.shape_cast %0 : vector<4x16x512xbf16> to vector<64x512xbf16>
    %c0_2 = arith.constant 0 : index
    %c0_3 = arith.constant 0 : index
    %2 = vector.load %arg2[%c0_2, %c0_3] : memref<512x128xbf16, #tpu.memory_space<vmem>>, vector<512x128xbf16>
    %cst = arith.constant dense<0.000000e+00> : vector<64x128xf32>
    %3 = tpu.matmul %1, %2, %cst {dimension_numbers = #tpu.dot_dimension_numbers<[1], [0], [0], [1], [0, 0, 1, 1], [], []>} : vector<64x512xbf16>, vector<512x128xbf16>, vector<64x128xf32> -> vector<64x128xf32>
    %4 = vector.extract_strided_slice %3 {offsets = [0, 0], sizes = [16, 128], strides = [1, 1]} : vector<64x128xf32> to vector<16x128xf32>
    %5 = vector.extract_strided_slice %3 {offsets = [16, 0], sizes = [16, 128], strides = [1, 1]} : vector<64x128xf32> to vector<16x128xf32>
    %6 = arith.maximumf %4, %5 : vector<16x128xf32>
    %7 = vector.extract_strided_slice %3 {offsets = [32, 0], sizes = [16, 128], strides = [1, 1]} : vector<64x128xf32> to vector<16x128xf32>
    %8 = vector.extract_strided_slice %3 {offsets = [48, 0], sizes = [16, 128], strides = [1, 1]} : vector<64x128xf32> to vector<16x128xf32>
    %9 = arith.maximumf %7, %8 : vector<16x128xf32>
    %10 = arith.maximumf %6, %9 : vector<16x128xf32>
    %c0_4 = arith.constant 0 : index
    %c0_5 = arith.constant 0 : index
    %11 = vector.load %arg3[%c0_4, %c0_5] : memref<1x128xf32, #tpu.memory_space<vmem>>, vector<1x128xf32>
    %12 = vector.broadcast %11 : vector<1x128xf32> to vector<16x128xf32>
    %13 = arith.addf %10, %12 : vector<16x128xf32>
    %cst_6 = arith.constant 0.000000e+00 : f32
    %14 = vector.broadcast %cst_6 : f32 to vector<16x128xf32>
    %15 = arith.maximumf %13, %14 : vector<16x128xf32>
    %16 = arith.truncf %15 : vector<16x128xf32> to vector<16x128xbf16>
    %c0_7 = arith.constant 0 : index
    %c0_8 = arith.constant 0 : index
    %17 = vector.load %arg4[%c0_7, %c0_8] : memref<16x128xbf16, #tpu.memory_space<vmem>>, vector<16x128xbf16>
    tpu.vector_store %arg4[%c0_7, %c0_8], %16 {strides = array<i32>} : memref<16x128xbf16, #tpu.memory_space<vmem>>, vector<16x128xbf16>,
    return
  }
  func.func @transform_0(%arg0: i32) -> (i32, i32, i32) {
    %c0_i32 = arith.constant 0 : i32
    %c0_i32_0 = arith.constant 0 : i32
    %c0_i32_1 = arith.constant 0 : i32
    return %c0_i32, %arg0, %c0_i32_0 : i32, i32, i32
  }
  func.func @transform_1(%arg0: i32) -> (i32, i32) {
    %c0_i32 = arith.constant 0 : i32
    %c0_i32_0 = arith.constant 0 : i32
    %c0_i32_1 = arith.constant 0 : i32
    return %c0_i32, %c0_i32_0 : i32, i32
  }
  func.func @transform_2(%arg0: i32) -> (i32, i32) {
    %c0_i32 = arith.constant 0 : i32
    %c0_i32_0 = arith.constant 0 : i32
    %c0_i32_1 = arith.constant 0 : i32
    return %c0_i32, %c0_i32_0 : i32, i32
  }
  func.func @transform_3(%arg0: i32) -> (i32, i32) {
    %c0_i32 = arith.constant 0 : i32
    %c0_i32_0 = arith.constant 0 : i32
    return %arg0, %c0_i32 : i32, i32
  }
}

module attributes {stable_mosaic.version = 11 : i64} {
  func.func @fc_fused_kernel(%arg0: i32, %arg1: memref<8x2048xbf16, #tpu.memory_space<vmem>>, %arg2: memref<2048x512xbf16, #tpu.memory_space<vmem>>, %arg3: memref<1x512xf32, #tpu.memory_space<vmem>>, %arg4: memref<512x128xbf16, #tpu.memory_space<vmem>>, %arg5: memref<1x128xf32, #tpu.memory_space<vmem>>, %arg6: memref<8x512xf32, #tpu.memory_space<vmem>>, %arg7: memref<8x128xf32, #tpu.memory_space<vmem>>) attributes {dimension_semantics = [#tpu.dimension_semantics<parallel>], iteration_bounds = array<i64: 1>, scalar_prefetch = 0 : i64, scratch_operands = 0 : i64, tpu.core_type = #tpu.core_type<tc>, window_params = [{transform_indices = @transform_0, window_bounds = array<i64: 8, 2048>}, {pipeline_mode = #tpu.pipeline_mode<synchronous>, transform_indices = @transform_1, window_bounds = array<i64: 2048, 512>}, {pipeline_mode = #tpu.pipeline_mode<synchronous>, transform_indices = @transform_2, window_bounds = array<i64: 1, 512>}, {pipeline_mode = #tpu.pipeline_mode<synchronous>, transform_indices = @transform_3, window_bounds = array<i64: 512, 128>}, {pipeline_mode = #tpu.pipeline_mode<synchronous>, transform_indices = @transform_4, window_bounds = array<i64: 1, 128>}, {transform_indices = @transform_5, window_bounds = array<i64: 8, 512>}, {transform_indices = @transform_6, window_bounds = array<i64: 8, 128>}]} {
    %c0 = arith.constant 0 : index
    %c0_0 = arith.constant 0 : index
    %0 = vector.load %arg1[%c0, %c0_0] : memref<8x2048xbf16, #tpu.memory_space<vmem>>, vector<8x2048xbf16>
    %c0_1 = arith.constant 0 : index
    %c0_2 = arith.constant 0 : index
    %1 = vector.load %arg2[%c0_1, %c0_2] : memref<2048x512xbf16, #tpu.memory_space<vmem>>, vector<2048x512xbf16>
    %cst = arith.constant dense<0.000000e+00> : vector<8x512xf32>
    %2 = tpu.matmul %0, %1, %cst {dimension_numbers = #tpu.dot_dimension_numbers<[1], [0], [0], [1], [0, 0, 1, 1], [], []>} : vector<8x2048xbf16>, vector<2048x512xbf16>, vector<8x512xf32> -> vector<8x512xf32>
    %c0_3 = arith.constant 0 : index
    %c0_4 = arith.constant 0 : index
    %3 = vector.load %arg3[%c0_3, %c0_4] : memref<1x512xf32, #tpu.memory_space<vmem>>, vector<1x512xf32>
    %4 = vector.broadcast %3 : vector<1x512xf32> to vector<8x512xf32>
    %5 = arith.addf %2, %4 : vector<8x512xf32>
    %cst_5 = arith.constant 0.000000e+00 : f32
    %6 = vector.broadcast %cst_5 : f32 to vector<8x512xf32>
    %7 = arith.maximumf %5, %6 : vector<8x512xf32>
    %c0_6 = arith.constant 0 : index
    %c0_7 = arith.constant 0 : index
    %8 = vector.load %arg6[%c0_6, %c0_7] : memref<8x512xf32, #tpu.memory_space<vmem>>, vector<8x512xf32>
    tpu.vector_store %arg6[%c0_6, %c0_7], %7 {strides = array<i32>} : memref<8x512xf32, #tpu.memory_space<vmem>>, vector<8x512xf32>,
    %c0_8 = arith.constant 0 : index
    %c0_9 = arith.constant 0 : index
    %9 = vector.load %arg4[%c0_8, %c0_9] : memref<512x128xbf16, #tpu.memory_space<vmem>>, vector<512x128xbf16>
    %10 = arith.truncf %7 : vector<8x512xf32> to vector<8x512xbf16>
    %cst_10 = arith.constant dense<0.000000e+00> : vector<8x128xf32>
    %11 = tpu.matmul %10, %9, %cst_10 {dimension_numbers = #tpu.dot_dimension_numbers<[1], [0], [0], [1], [0, 0, 1, 1], [], []>} : vector<8x512xbf16>, vector<512x128xbf16>, vector<8x128xf32> -> vector<8x128xf32>
    %c0_11 = arith.constant 0 : index
    %c0_12 = arith.constant 0 : index
    %12 = vector.load %arg5[%c0_11, %c0_12] : memref<1x128xf32, #tpu.memory_space<vmem>>, vector<1x128xf32>
    %13 = vector.broadcast %12 : vector<1x128xf32> to vector<8x128xf32>
    %14 = arith.addf %11, %13 : vector<8x128xf32>
    %cst_13 = arith.constant dense<0xFF800000> : vector<8xf32>
    %15 = vector.multi_reduction <maximumf>, %14, %cst_13 [1] : vector<8x128xf32> to vector<8xf32>
    %16 = vector.shape_cast %15 : vector<8xf32> to vector<8x1xf32>
    %17 = vector.broadcast %16 : vector<8x1xf32> to vector<8x128xf32>
    %18 = arith.subf %14, %17 : vector<8x128xf32>
    %19 = math.exp %18 : vector<8x128xf32>
    %cst_14 = arith.constant dense<0.000000e+00> : vector<8xf32>
    %20 = vector.multi_reduction <add>, %19, %cst_14 [1] : vector<8x128xf32> to vector<8xf32>
    %21 = vector.shape_cast %20 : vector<8xf32> to vector<8x1xf32>
    %22 = math.log %21 : vector<8x1xf32>
    %23 = vector.broadcast %22 : vector<8x1xf32> to vector<8x128xf32>
    %24 = arith.subf %18, %23 : vector<8x128xf32>
    %c0_15 = arith.constant 0 : index
    %c0_16 = arith.constant 0 : index
    %25 = vector.load %arg7[%c0_15, %c0_16] : memref<8x128xf32, #tpu.memory_space<vmem>>, vector<8x128xf32>
    tpu.vector_store %arg7[%c0_15, %c0_16], %24 {strides = array<i32>} : memref<8x128xf32, #tpu.memory_space<vmem>>, vector<8x128xf32>,
    return
  }
  func.func @transform_0(%arg0: i32) -> (i32, i32) {
    %c0_i32 = arith.constant 0 : i32
    %c0_i32_0 = arith.constant 0 : i32
    return %arg0, %c0_i32 : i32, i32
  }
  func.func @transform_1(%arg0: i32) -> (i32, i32) {
    %c0_i32 = arith.constant 0 : i32
    %c0_i32_0 = arith.constant 0 : i32
    %c0_i32_1 = arith.constant 0 : i32
    return %c0_i32, %c0_i32_0 : i32, i32
  }
  func.func @transform_2(%arg0: i32) -> (i32, i32) {
    %c0_i32 = arith.constant 0 : i32
    %c0_i32_0 = arith.constant 0 : i32
    %c0_i32_1 = arith.constant 0 : i32
    return %c0_i32, %c0_i32_0 : i32, i32
  }
  func.func @transform_3(%arg0: i32) -> (i32, i32) {
    %c0_i32 = arith.constant 0 : i32
    %c0_i32_0 = arith.constant 0 : i32
    %c0_i32_1 = arith.constant 0 : i32
    return %c0_i32, %c0_i32_0 : i32, i32
  }
  func.func @transform_4(%arg0: i32) -> (i32, i32) {
    %c0_i32 = arith.constant 0 : i32
    %c0_i32_0 = arith.constant 0 : i32
    %c0_i32_1 = arith.constant 0 : i32
    return %c0_i32, %c0_i32_0 : i32, i32
  }
  func.func @transform_5(%arg0: i32) -> (i32, i32) {
    %c0_i32 = arith.constant 0 : i32
    %c0_i32_0 = arith.constant 0 : i32
    return %arg0, %c0_i32 : i32, i32
  }
  func.func @transform_6(%arg0: i32) -> (i32, i32) {
    %c0_i32 = arith.constant 0 : i32
    %c0_i32_0 = arith.constant 0 : i32
    return %arg0, %c0_i32 : i32, i32
  }
}

</mosaic_0001>

<llo_original>
// kernel: net_forward.3
$region0: #{net_forward.3}
  #allocation0 [shape = 'u32[]', space=smem, size = 0x4, offset = 0x4, fixed_abs, tag = 'smem constant byte address 0x4 - core index']
  #allocation1 [shape = 'u32[72,128]{1,0:T(1,128)}', space=vmem, size = 0x9000, scoped, tag = 'internal scratch']
  %s0 = inlined_call_operand.vmem [shape: bf16[4,288,32], index: 0, kind: input, shape index: {}]
  %s1 = inlined_call_operand.vmem [shape: bf16[32,128], index: 1, kind: input, shape index: {}]
  %s2 = inlined_call_operand.vmem [shape: f32[1,128], index: 2, kind: input, shape index: {}]
  %s3 = inlined_call_operand.vmem [shape: bf16[288,128], index: 3, kind: output, shape index: {}]
  %s4 = sld [smem:[#allocation0]]
  $region86: #{net_forward.3} parent=0
    _
  %s6 = ssub.s32 1, %s4
  %s7 = scalar_select 0, %s6, %s4
  $region1: #{net_forward.3} parent=0
    #allocation2 [shape = 'u8[294912]{0}', space=vmem, size = 0x48000, scoped, tag = 'input window, operand 0']
    loop: start=0, step=1, limit=4
    $region2: #{net_forward.3} parent=1 // loop_pre_header
      _
    $region3: #{net_forward.3} parent=1 // loop_header
      %s9 = sphi 0, %s13
      %p10 = scmp.ge.s32.totalorder %s9, 4
      %s19 = sphi 0, %s21
      %s22 = sphi 0, %s19
      %s23 = sphi 0, %s22
      %s39 = sphi 0, %s23
      %s43 = sphi 0, %s43
      %s45 = sphi 0, %s43
      %s46 = sphi 0, %s45
      %s60 = sphi 0, %s46
      %s64 = sphi 0, %s64
      %s66 = sphi 0, %s64
      %s67 = sphi 0, %s66
      %s81 = sphi 0, %s67
      %s87 = sphi 0, %s89
      %s90 = sphi 0, %s87
      %s91 = sphi 0, %s90
      %s107 = sphi 0, %s91
    $region4: #{net_forward.3} parent=1 // loop_header_branch
      %12 = sbr.rel (%p10) target = $region8
    $region5: #{net_forward.3} parent=1 // loop_body
      %s14 = ssub.s32 %s9, 1
      %s15 = ssub.s32 %s9, 2
      %s16 = sadd.s32 %s9, 1
      %s17 = ssub.s32 %s9, %s16
      %p18 = scmp.eq.s32.totalorder %s17, 0
      %s20 = sadd.s32 %s19, 1
      %s21 = scalar_select %p18, %s19, %s20
      %p24 = pneg %p18
      %p25 = scmp.eq.s32.totalorder %s9, 1
      %p26 = por %p24, %p25
      %p27 = scmp.ne.s32.totalorder %s19, %s22
      %p28 = scmp.eq.s32.totalorder %s9, 0
      %p29 = por %p27, %p28
      %p30 = scmp.ne.s32.totalorder %s19, %s22
      %p31 = scmp.eq.s32.totalorder %s14, 1
      %p32 = por %p30, %p31
      %p33 = scmp.ne.s32.totalorder %s22, %s23
      %p34 = scmp.eq.s32.totalorder %s14, 0
      %p35 = por %p33, %p34
      %p36 = scmp.ne.s32.totalorder %s22, %s23
      %p37 = scmp.eq.s32.totalorder %s15, 1
      %p38 = por %p36, %p37
      %p40 = scmp.ne.s32.totalorder %s23, %s39
      %p41 = scmp.eq.s32.totalorder %s15, 0
      %p42 = por %p40, %p41
      %s44 = sadd.s32 %s43, 1
      %p47 = scmp.eq.s32.totalorder %s9, 1
      %p48 = scmp.ne.s32.totalorder %s43, %s45
      %p49 = scmp.eq.s32.totalorder %s9, 0
      %p50 = por %p48, %p49
      %p51 = scmp.ne.s32.totalorder %s43, %s45
      %p52 = scmp.eq.s32.totalorder %s14, 1
      %p53 = por %p51, %p52
      %p54 = scmp.ne.s32.totalorder %s45, %s46
      %p55 = scmp.eq.s32.totalorder %s14, 0
      %p56 = por %p54, %p55
      %p57 = scmp.ne.s32.totalorder %s45, %s46
      %p58 = scmp.eq.s32.totalorder %s15, 1
      %p59 = por %p57, %p58
      %p61 = scmp.ne.s32.totalorder %s46, %s60
      %p62 = scmp.eq.s32.totalorder %s15, 0
      %p63 = por %p61, %p62
      %s65 = sadd.s32 %s64, 1
      %p68 = scmp.eq.s32.totalorder %s9, 1
      %p69 = scmp.ne.s32.totalorder %s64, %s66
      %p70 = scmp.eq.s32.totalorder %s9, 0
      %p71 = por %p69, %p70
      %p72 = scmp.ne.s32.totalorder %s64, %s66
      %p73 = scmp.eq.s32.totalorder %s14, 1
      %p74 = por %p72, %p73
      %p75 = scmp.ne.s32.totalorder %s66, %s67
      %p76 = scmp.eq.s32.totalorder %s14, 0
      %p77 = por %p75, %p76
      %p78 = scmp.ne.s32.totalorder %s66, %s67
      %p79 = scmp.eq.s32.totalorder %s15, 1
      %p80 = por %p78, %p79
      %p82 = scmp.ne.s32.totalorder %s67, %s81
      %p83 = scmp.eq.s32.totalorder %s15, 0
      %p84 = por %p82, %p83
      %s85 = ssub.s32 %s9, %s16
      %p86 = scmp.eq.s32.totalorder %s85, 0
      %s88 = sadd.s32 %s87, 1
      %s89 = scalar_select %p86, %s87, %s88
      %p92 = pneg %p86
      %p93 = scmp.eq.s32.totalorder %s9, 1
      %p94 = por %p92, %p93
      %p95 = scmp.ne.s32.totalorder %s87, %s90
      %p96 = scmp.eq.s32.totalorder %s9, 0
      %p97 = por %p95, %p96
      %p98 = scmp.ne.s32.totalorder %s87, %s90
      %p99 = scmp.eq.s32.totalorder %s14, 1
      %p100 = por %p98, %p99
      %p101 = scmp.ne.s32.totalorder %s90, %s91
      %p102 = scmp.eq.s32.totalorder %s14, 0
      %p103 = por %p101, %p102
      %p104 = scmp.ne.s32.totalorder %s90, %s91
      %p105 = scmp.eq.s32.totalorder %s15, 1
      %p106 = por %p104, %p105
      %p108 = scmp.ne.s32.totalorder %s91, %s107
      %p109 = scmp.eq.s32.totalorder %s15, 0
      %p110 = por %p108, %p109
      %p111 = scmp.le.s32.totalorder 1, %s9
      %p112 = scmp.lt.s32.totalorder %s9, 3
      %p113 = pnand %p111, %p112
      %p114 = pneg %p113
      // Predicated region
      $region9: #{net_forward.3} parent=5 // pred_check
        _
      $region10: #{net_forward.3} parent=5 // pred_check_branch
        %116 = sbr.rel (%p113) target = $region12
      $region11: #{net_forward.3} parent=5 // pred_region
        %s117 = ssub.s32 %s9, 1
        // Predicated region
        $region13: #{net_forward.3} parent=11 // pred_check
          %p118 = pneg %p56
        $region14: #{net_forward.3} parent=11 // pred_check_branch
          %120 = sbr.rel (%p118) target = $region16
        $region15: #{net_forward.3} parent=11 // pred_region
          _
        $region16: #{net_forward.3} parent=11 // pred_fallthru
          _
        // Predicated region
        $region17: #{net_forward.3} parent=11 // pred_check
          %p121 = pneg %p77
        $region18: #{net_forward.3} parent=11 // pred_check_branch
          %123 = sbr.rel (%p121) target = $region20
        $region19: #{net_forward.3} parent=11 // pred_region
          _
        $region20: #{net_forward.3} parent=11 // pred_fallthru
          _
      $region12: #{net_forward.3} parent=5 // pred_fallthru
        _
      %p124 = scmp.lt.s32.totalorder %s9, 2
      // Predicated region
      $region21: #{net_forward.3} parent=5 // pred_check
        %p125 = pneg %p124
      $region22: #{net_forward.3} parent=5 // pred_check_branch
        %127 = sbr.rel (%p125) target = $region24
      $region23: #{net_forward.3} parent=5 // pred_region
        // Predicated region
        $region25: #{net_forward.3} parent=23 // pred_check
          %p128 = pneg %p29
        $region26: #{net_forward.3} parent=23 // pred_check_branch
          %130 = sbr.rel (%p128) target = $region28
        $region27: #{net_forward.3} parent=23 // pred_region
          %s131 = sand.u32 %s19, 1
          %s132 = sand.u32 %s19, 1
          %s133 = smul.addr %s132, 288
          %s134 = scalar_lea.vmem [#allocation2], %s133
          %s135 = smul.u32 18, %s9
          %s136 = smul.addr %s135, 4
          %s137 = scalar_lea.vmem %s0, %s136
          // Predicated region
          $region29: #{net_forward.3} parent=27 // pred_check
            _
          $region30: #{net_forward.3} parent=27 // pred_check_branch
            %139 = sbr.rel (0) target = $region32
          $region31: #{net_forward.3} parent=27 // pred_region
            // Predicated region
            $region33: #{net_forward.3} parent=31 // pred_check
              _
            $region34: #{net_forward.3} parent=31 // pred_check_branch
              %141 = sbr.rel target = $region36
            $region35: #{net_forward.3} parent=31 // pred_region
              // Predicated region
              $region48: #{net_forward.3} parent=35 // pred_check
                _
              $region49: #{net_forward.3} parent=35 // pred_check_branch
                %299 = sbr.rel (0) target = $region51
              $region50: #{net_forward.3} parent=35 // pred_region
                loop: start=0, step=1, limit=1
                $region52: #{net_forward.3} parent=50 // loop_pre_header
                  _
                $region53: #{net_forward.3} parent=50 // loop_header
                  %s301 = sphi 0, %s305
                  %p302 = scmp.ge.s32.totalorder %s301, 1
                  %s306 = sphi %s137, %s137
                  %s307 = sphi %s134, %s134
                $region54: #{net_forward.3} parent=50 // loop_header_branch
                  %304 = sbr.rel (%p302) target = $region58
                $region55: #{net_forward.3} parent=50 // loop_body
                  _
                $region56: #{net_forward.3} parent=50 // loop_footer
                  %s305 = sadd.s32 1, %s301
                $region57: #{net_forward.3} parent=50 // loop_footer_branch
                  %300 = sbr.rel target = $region53
                $region58: #{net_forward.3} parent=50 // loop_exit
                  _
                %s309 = ssub.s32 16, 1
                loop: start=0, step=1, limit=1
                $region59: #{net_forward.3} parent=50 // loop_pre_header
                  _
                $region60: #{net_forward.3} parent=50 // loop_header
                  %s311 = sphi 0, %s315
                  %p312 = scmp.ge.s32.totalorder %s311, 1
                  %s316 = sphi %s137, %s137
                  %s317 = sphi %s134, %s134
                $region61: #{net_forward.3} parent=50 // loop_header_branch
                  %314 = sbr.rel (%p312) target = $region65
                $region62: #{net_forward.3} parent=50 // loop_body
                  %v318 = vld [vmem:[%s316] sm:%s309]
                  %319 = vst [vmem:[%s317] sm:%s309] %v318
                  %v320 = vld [vmem:[%s316 + $0x4] sm:%s309]
                  %321 = vst [vmem:[%s317 + $0x4] sm:%s309] %v320
                  %v322 = vld [vmem:[%s316 + $0x8] sm:%s309]
                  %323 = vst [vmem:[%s317 + $0x8] sm:%s309] %v322
                  %v324 = vld [vmem:[%s316 + $0xc] sm:%s309]
                  %325 = vst [vmem:[%s317 + $0xc] sm:%s309] %v324
                  %v326 = vld [vmem:[%s316 + $0x10] sm:%s309]
                  %327 = vst [vmem:[%s317 + $0x10] sm:%s309] %v326
                  %v328 = vld [vmem:[%s316 + $0x14] sm:%s309]
                  %329 = vst [vmem:[%s317 + $0x14] sm:%s309] %v328
                  %v330 = vld [vmem:[%s316 + $0x18] sm:%s309]
                  %331 = vst [vmem:[%s317 + $0x18] sm:%s309] %v330
                  %v332 = vld [vmem:[%s316 + $0x1c] sm:%s309]
                  %333 = vst [vmem:[%s317 + $0x1c] sm:%s309] %v332
                  %v334 = vld [vmem:[%s316 + $0x20] sm:%s309]
                  %335 = vst [vmem:[%s317 + $0x20] sm:%s309] %v334
                  %v336 = vld [vmem:[%s316 + $0x24] sm:%s309]
                  %337 = vst [vmem:[%s317 + $0x24] sm:%s309] %v336
                  %v338 = vld [vmem:[%s316 + $0x28] sm:%s309]
                  %339 = vst [vmem:[%s317 + $0x28] sm:%s309] %v338
                  %v340 = vld [vmem:[%s316 + $0x2c] sm:%s309]
                  %341 = vst [vmem:[%s317 + $0x2c] sm:%s309] %v340
                  %v342 = vld [vmem:[%s316 + $0x30] sm:%s309]
                  %343 = vst [vmem:[%s317 + $0x30] sm:%s309] %v342
                  %v344 = vld [vmem:[%s316 + $0x34] sm:%s309]
                  %345 = vst [vmem:[%s317 + $0x34] sm:%s309] %v344
                  %v346 = vld [vmem:[%s316 + $0x38] sm:%s309]
                  %347 = vst [vmem:[%s317 + $0x38] sm:%s309] %v346
                  %v348 = vld [vmem:[%s316 + $0x3c] sm:%s309]
                  %349 = vst [vmem:[%s317 + $0x3c] sm:%s309] %v348
                  %v350 = vld [vmem:[%s316 + $0x40] sm:%s309]
                  %351 = vst [vmem:[%s317 + $0x40] sm:%s309] %v350
                  %v352 = vld [vmem:[%s316 + $0x44] sm:%s309]
                  %353 = vst [vmem:[%s317 + $0x44] sm:%s309] %v352
                  %v354 = vld [vmem:[%s316 + $0x90] sm:%s309]
                  %355 = vst [vmem:[%s317 + $0x48] sm:%s309] %v354
                  %v356 = vld [vmem:[%s316 + $0x94] sm:%s309]
                  %357 = vst [vmem:[%s317 + $0x4c] sm:%s309] %v356
                  %v358 = vld [vmem:[%s316 + $0x98] sm:%s309]
                  %359 = vst [vmem:[%s317 + $0x50] sm:%s309] %v358
                  %v360 = vld [vmem:[%s316 + $0x9c] sm:%s309]
                  %361 = vst [vmem:[%s317 + $0x54] sm:%s309] %v360
                  %v362 = vld [vmem:[%s316 + $0xa0] sm:%s309]
                  %363 = vst [vmem:[%s317 + $0x58] sm:%s309] %v362
                  %v364 = vld [vmem:[%s316 + $0xa4] sm:%s309]
                  %365 = vst [vmem:[%s317 + $0x5c] sm:%s309] %v364
                  %v366 = vld [vmem:[%s316 + $0xa8] sm:%s309]
                  %367 = vst [vmem:[%s317 + $0x60] sm:%s309] %v366
                  %v368 = vld [vmem:[%s316 + $0xac] sm:%s309]
                  %369 = vst [vmem:[%s317 + $0x64] sm:%s309] %v368
                  %v370 = vld [vmem:[%s316 + $0xb0] sm:%s309]
                  %371 = vst [vmem:[%s317 + $0x68] sm:%s309] %v370
                  %v372 = vld [vmem:[%s316 + $0xb4] sm:%s309]
                  %373 = vst [vmem:[%s317 + $0x6c] sm:%s309] %v372
                  %v374 = vld [vmem:[%s316 + $0xb8] sm:%s309]
                  %375 = vst [vmem:[%s317 + $0x70] sm:%s309] %v374
                  %v376 = vld [vmem:[%s316 + $0xbc] sm:%s309]
                  %377 = vst [vmem:[%s317 + $0x74] sm:%s309] %v376
                  %v378 = vld [vmem:[%s316 + $0xc0] sm:%s309]
                  %379 = vst [vmem:[%s317 + $0x78] sm:%s309] %v378
                  %v380 = vld [vmem:[%s316 + $0xc4] sm:%s309]
                  %381 = vst [vmem:[%s317 + $0x7c] sm:%s309] %v380
                  %v382 = vld [vmem:[%s316 + $0xc8] sm:%s309]
                  %383 = vst [vmem:[%s317 + $0x80] sm:%s309] %v382
                  %v384 = vld [vmem:[%s316 + $0xcc] sm:%s309]
                  %385 = vst [vmem:[%s317 + $0x84] sm:%s309] %v384
                  %v386 = vld [vmem:[%s316 + $0xd0] sm:%s309]
                  %387 = vst [vmem:[%s317 + $0x88] sm:%s309] %v386
                  %v388 = vld [vmem:[%s316 + $0xd4] sm:%s309]
                  %389 = vst [vmem:[%s317 + $0x8c] sm:%s309] %v388
                  %v390 = vld [vmem:[%s316 + $0x120] sm:%s309]
                  %391 = vst [vmem:[%s317 + $0x90] sm:%s309] %v390
                  %v392 = vld [vmem:[%s316 + $0x124] sm:%s309]
                  %393 = vst [vmem:[%s317 + $0x94] sm:%s309] %v392
                  %v394 = vld [vmem:[%s316 + $0x128] sm:%s309]
                  %395 = vst [vmem:[%s317 + $0x98] sm:%s309] %v394
                  %v396 = vld [vmem:[%s316 + $0x12c] sm:%s309]
                  %397 = vst [vmem:[%s317 + $0x9c] sm:%s309] %v396
                  %v398 = vld [vmem:[%s316 + $0x130] sm:%s309]
                  %399 = vst [vmem:[%s317 + $0xa0] sm:%s309] %v398
                  %v400 = vld [vmem:[%s316 + $0x134] sm:%s309]
                  %401 = vst [vmem:[%s317 + $0xa4] sm:%s309] %v400
                  %v402 = vld [vmem:[%s316 + $0x138] sm:%s309]
                  %403 = vst [vmem:[%s317 + $0xa8] sm:%s309] %v402
                  %v404 = vld [vmem:[%s316 + $0x13c] sm:%s309]
                  %405 = vst [vmem:[%s317 + $0xac] sm:%s309] %v404
                  %v406 = vld [vmem:[%s316 + $0x140] sm:%s309]
                  %407 = vst [vmem:[%s317 + $0xb0] sm:%s309] %v406
                  %v408 = vld [vmem:[%s316 + $0x144] sm:%s309]
                  %409 = vst [vmem:[%s317 + $0xb4] sm:%s309] %v408
                  %v410 = vld [vmem:[%s316 + $0x148] sm:%s309]
                  %411 = vst [vmem:[%s317 + $0xb8] sm:%s309] %v410
                  %v412 = vld [vmem:[%s316 + $0x14c] sm:%s309]
                  %413 = vst [vmem:[%s317 + $0xbc] sm:%s309] %v412
                  %v414 = vld [vmem:[%s316 + $0x150] sm:%s309]
                  %415 = vst [vmem:[%s317 + $0xc0] sm:%s309] %v414
                  %v416 = vld [vmem:[%s316 + $0x154] sm:%s309]
                  %417 = vst [vmem:[%s317 + $0xc4] sm:%s309] %v416
                  %v418 = vld [vmem:[%s316 + $0x158] sm:%s309]
                  %419 = vst [vmem:[%s317 + $0xc8] sm:%s309] %v418
                  %v420 = vld [vmem:[%s316 + $0x15c] sm:%s309]
                  %421 = vst [vmem:[%s317 + $0xcc] sm:%s309] %v420
                  %v422 = vld [vmem:[%s316 + $0x160] sm:%s309]
                  %423 = vst [vmem:[%s317 + $0xd0] sm:%s309] %v422
                  %v424 = vld [vmem:[%s316 + $0x164] sm:%s309]
                  %425 = vst [vmem:[%s317 + $0xd4] sm:%s309] %v424
                  %v426 = vld [vmem:[%s316 + $0x1b0] sm:%s309]
                  %427 = vst [vmem:[%s317 + $0xd8] sm:%s309] %v426
                  %v428 = vld [vmem:[%s316 + $0x1b4] sm:%s309]
                  %429 = vst [vmem:[%s317 + $0xdc] sm:%s309] %v428
                  %v430 = vld [vmem:[%s316 + $0x1b8] sm:%s309]
                  %431 = vst [vmem:[%s317 + $0xe0] sm:%s309] %v430
                  %v432 = vld [vmem:[%s316 + $0x1bc] sm:%s309]
                  %433 = vst [vmem:[%s317 + $0xe4] sm:%s309] %v432
                  %v434 = vld [vmem:[%s316 + $0x1c0] sm:%s309]
                  %435 = vst [vmem:[%s317 + $0xe8] sm:%s309] %v434
                  %v436 = vld [vmem:[%s316 + $0x1c4] sm:%s309]
                  %437 = vst [vmem:[%s317 + $0xec] sm:%s309] %v436
                  %v438 = vld [vmem:[%s316 + $0x1c8] sm:%s309]
                  %439 = vst [vmem:[%s317 + $0xf0] sm:%s309] %v438
                  %v440 = vld [vmem:[%s316 + $0x1cc] sm:%s309]
                  %441 = vst [vmem:[%s317 + $0xf4] sm:%s309] %v440
                  %v442 = vld [vmem:[%s316 + $0x1d0] sm:%s309]
                  %443 = vst [vmem:[%s317 + $0xf8] sm:%s309] %v442
                  %v444 = vld [vmem:[%s316 + $0x1d4] sm:%s309]
                  %445 = vst [vmem:[%s317 + $0xfc] sm:%s309] %v444
                  %v446 = vld [vmem:[%s316 + $0x1d8] sm:%s309]
                  %447 = vst [vmem:[%s317 + $0x100] sm:%s309] %v446
                  %v448 = vld [vmem:[%s316 + $0x1dc] sm:%s309]
                  %449 = vst [vmem:[%s317 + $0x104] sm:%s309] %v448
                  %v450 = vld [vmem:[%s316 + $0x1e0] sm:%s309]
                  %451 = vst [vmem:[%s317 + $0x108] sm:%s309] %v450
                  %v452 = vld [vmem:[%s316 + $0x1e4] sm:%s309]
                  %453 = vst [vmem:[%s317 + $0x10c] sm:%s309] %v452
                  %v454 = vld [vmem:[%s316 + $0x1e8] sm:%s309]
                  %455 = vst [vmem:[%s317 + $0x110] sm:%s309] %v454
                  %v456 = vld [vmem:[%s316 + $0x1ec] sm:%s309]
                  %457 = vst [vmem:[%s317 + $0x114] sm:%s309] %v456
                  %v458 = vld [vmem:[%s316 + $0x1f0] sm:%s309]
                  %459 = vst [vmem:[%s317 + $0x118] sm:%s309] %v458
                  %v460 = vld [vmem:[%s316 + $0x1f4] sm:%s309]
                  %461 = vst [vmem:[%s317 + $0x11c] sm:%s309] %v460
                $region63: #{net_forward.3} parent=50 // loop_footer
                  %s315 = sadd.s32 1, %s311
                $region64: #{net_forward.3} parent=50 // loop_footer_branch
                  %310 = sbr.rel target = $region60
                $region65: #{net_forward.3} parent=50 // loop_exit
                  _
              $region51: #{net_forward.3} parent=35 // pred_fallthru
                _
            $region36: #{net_forward.3} parent=31 // pred_fallthru
              _
            // Predicated region
            $region37: #{net_forward.3} parent=31 // pred_check
              _
            $region38: #{net_forward.3} parent=31 // pred_check_branch
              %143 = sbr.rel (0) target = $region40
            $region39: #{net_forward.3} parent=31 // pred_region
              %s145 = ssub.s32 16, 1
              loop: start=0, step=1, limit=1
              $region41: #{net_forward.3} parent=39 // loop_pre_header
                _
              $region42: #{net_forward.3} parent=39 // loop_header
                %s147 = sphi 0, %s151
                %p148 = scmp.ge.s32.totalorder %s147, 1
                %s152 = sphi %s137, %s137
                %s153 = sphi %s134, %s134
              $region43: #{net_forward.3} parent=39 // loop_header_branch
                %150 = sbr.rel (%p148) target = $region47
              $region44: #{net_forward.3} parent=39 // loop_body
                %v154 = vld [vmem:[%s152] sm:%s145]
                %155 = vst [vmem:[%s153] sm:%s145] %v154
                %v156 = vld [vmem:[%s152 + $0x4] sm:%s145]
                %157 = vst [vmem:[%s153 + $0x4] sm:%s145] %v156
                %v158 = vld [vmem:[%s152 + $0x8] sm:%s145]
                %159 = vst [vmem:[%s153 + $0x8] sm:%s145] %v158
                %v160 = vld [vmem:[%s152 + $0xc] sm:%s145]
                %161 = vst [vmem:[%s153 + $0xc] sm:%s145] %v160
                %v162 = vld [vmem:[%s152 + $0x10] sm:%s145]
                %163 = vst [vmem:[%s153 + $0x10] sm:%s145] %v162
                %v164 = vld [vmem:[%s152 + $0x14] sm:%s145]
                %165 = vst [vmem:[%s153 + $0x14] sm:%s145] %v164
                %v166 = vld [vmem:[%s152 + $0x18] sm:%s145]
                %167 = vst [vmem:[%s153 + $0x18] sm:%s145] %v166
                %v168 = vld [vmem:[%s152 + $0x1c] sm:%s145]
                %169 = vst [vmem:[%s153 + $0x1c] sm:%s145] %v168
                %v170 = vld [vmem:[%s152 + $0x20] sm:%s145]
                %171 = vst [vmem:[%s153 + $0x20] sm:%s145] %v170
                %v172 = vld [vmem:[%s152 + $0x24] sm:%s145]
                %173 = vst [vmem:[%s153 + $0x24] sm:%s145] %v172
                %v174 = vld [vmem:[%s152 + $0x28] sm:%s145]
                %175 = vst [vmem:[%s153 + $0x28] sm:%s145] %v174
                %v176 = vld [vmem:[%s152 + $0x2c] sm:%s145]
                %177 = vst [vmem:[%s153 + $0x2c] sm:%s145] %v176
                %v178 = vld [vmem:[%s152 + $0x30] sm:%s145]
                %179 = vst [vmem:[%s153 + $0x30] sm:%s145] %v178
                %v180 = vld [vmem:[%s152 + $0x34] sm:%s145]
                %181 = vst [vmem:[%s153 + $0x34] sm:%s145] %v180
                %v182 = vld [vmem:[%s152 + $0x38] sm:%s145]
                %183 = vst [vmem:[%s153 + $0x38] sm:%s145] %v182
                %v184 = vld [vmem:[%s152 + $0x3c] sm:%s145]
                %185 = vst [vmem:[%s153 + $0x3c] sm:%s145] %v184
                %v186 = vld [vmem:[%s152 + $0x40] sm:%s145]
                %187 = vst [vmem:[%s153 + $0x40] sm:%s145] %v186
                %v188 = vld [vmem:[%s152 + $0x44] sm:%s145]
                %189 = vst [vmem:[%s153 + $0x44] sm:%s145] %v188
                %v190 = vld [vmem:[%s152 + $0x90] sm:%s145]
                %191 = vst [vmem:[%s153 + $0x48] sm:%s145] %v190
                %v192 = vld [vmem:[%s152 + $0x94] sm:%s145]
                %193 = vst [vmem:[%s153 + $0x4c] sm:%s145] %v192
                %v194 = vld [vmem:[%s152 + $0x98] sm:%s145]
                %195 = vst [vmem:[%s153 + $0x50] sm:%s145] %v194
                %v196 = vld [vmem:[%s152 + $0x9c] sm:%s145]
                %197 = vst [vmem:[%s153 + $0x54] sm:%s145] %v196
                %v198 = vld [vmem:[%s152 + $0xa0] sm:%s145]
                %199 = vst [vmem:[%s153 + $0x58] sm:%s145] %v198
                %v200 = vld [vmem:[%s152 + $0xa4] sm:%s145]
                %201 = vst [vmem:[%s153 + $0x5c] sm:%s145] %v200
                %v202 = vld [vmem:[%s152 + $0xa8] sm:%s145]
                %203 = vst [vmem:[%s153 + $0x60] sm:%s145] %v202
                %v204 = vld [vmem:[%s152 + $0xac] sm:%s145]
                %205 = vst [vmem:[%s153 + $0x64] sm:%s145] %v204
                %v206 = vld [vmem:[%s152 + $0xb0] sm:%s145]
                %207 = vst [vmem:[%s153 + $0x68] sm:%s145] %v206
                %v208 = vld [vmem:[%s152 + $0xb4] sm:%s145]
                %209 = vst [vmem:[%s153 + $0x6c] sm:%s145] %v208
                %v210 = vld [vmem:[%s152 + $0xb8] sm:%s145]
                %211 = vst [vmem:[%s153 + $0x70] sm:%s145] %v210
                %v212 = vld [vmem:[%s152 + $0xbc] sm:%s145]
                %213 = vst [vmem:[%s153 + $0x74] sm:%s145] %v212
                %v214 = vld [vmem:[%s152 + $0xc0] sm:%s145]
                %215 = vst [vmem:[%s153 + $0x78] sm:%s145] %v214
                %v216 = vld [vmem:[%s152 + $0xc4] sm:%s145]
                %217 = vst [vmem:[%s153 + $0x7c] sm:%s145] %v216
                %v218 = vld [vmem:[%s152 + $0xc8] sm:%s145]
                %219 = vst [vmem:[%s153 + $0x80] sm:%s145] %v218
                %v220 = vld [vmem:[%s152 + $0xcc] sm:%s145]
                %221 = vst [vmem:[%s153 + $0x84] sm:%s145] %v220
                %v222 = vld [vmem:[%s152 + $0xd0] sm:%s145]
                %223 = vst [vmem:[%s153 + $0x88] sm:%s145] %v222
                %v224 = vld [vmem:[%s152 + $0xd4] sm:%s145]
                %225 = vst [vmem:[%s153 + $0x8c] sm:%s145] %v224
                %v226 = vld [vmem:[%s152 + $0x120] sm:%s145]
                %227 = vst [vmem:[%s153 + $0x90] sm:%s145] %v226
                %v228 = vld [vmem:[%s152 + $0x124] sm:%s145]
                %229 = vst [vmem:[%s153 + $0x94] sm:%s145] %v228
                %v230 = vld [vmem:[%s152 + $0x128] sm:%s145]
                %231 = vst [vmem:[%s153 + $0x98] sm:%s145] %v230
                %v232 = vld [vmem:[%s152 + $0x12c] sm:%s145]
                %233 = vst [vmem:[%s153 + $0x9c] sm:%s145] %v232
                %v234 = vld [vmem:[%s152 + $0x130] sm:%s145]
                %235 = vst [vmem:[%s153 + $0xa0] sm:%s145] %v234
                %v236 = vld [vmem:[%s152 + $0x134] sm:%s145]
                %237 = vst [vmem:[%s153 + $0xa4] sm:%s145] %v236
                %v238 = vld [vmem:[%s152 + $0x138] sm:%s145]
                %239 = vst [vmem:[%s153 + $0xa8] sm:%s145] %v238
                %v240 = vld [vmem:[%s152 + $0x13c] sm:%s145]
                %241 = vst [vmem:[%s153 + $0xac] sm:%s145] %v240
                %v242 = vld [vmem:[%s152 + $0x140] sm:%s145]
                %243 = vst [vmem:[%s153 + $0xb0] sm:%s145] %v242
                %v244 = vld [vmem:[%s152 + $0x144] sm:%s145]
                %245 = vst [vmem:[%s153 + $0xb4] sm:%s145] %v244
                %v246 = vld [vmem:[%s152 + $0x148] sm:%s145]
                %247 = vst [vmem:[%s153 + $0xb8] sm:%s145] %v246
                %v248 = vld [vmem:[%s152 + $0x14c] sm:%s145]
                %249 = vst [vmem:[%s153 + $0xbc] sm:%s145] %v248
                %v250 = vld [vmem:[%s152 + $0x150] sm:%s145]
                %251 = vst [vmem:[%s153 + $0xc0] sm:%s145] %v250
                %v252 = vld [vmem:[%s152 + $0x154] sm:%s145]
                %253 = vst [vmem:[%s153 + $0xc4] sm:%s145] %v252
                %v254 = vld [vmem:[%s152 + $0x158] sm:%s145]
                %255 = vst [vmem:[%s153 + $0xc8] sm:%s145] %v254
                %v256 = vld [vmem:[%s152 + $0x15c] sm:%s145]
                %257 = vst [vmem:[%s153 + $0xcc] sm:%s145] %v256
                %v258 = vld [vmem:[%s152 + $0x160] sm:%s145]
                %259 = vst [vmem:[%s153 + $0xd0] sm:%s145] %v258
                %v260 = vld [vmem:[%s152 + $0x164] sm:%s145]
                %261 = vst [vmem:[%s153 + $0xd4] sm:%s145] %v260
                %v262 = vld [vmem:[%s152 + $0x1b0] sm:%s145]
                %263 = vst [vmem:[%s153 + $0xd8] sm:%s145] %v262
                %v264 = vld [vmem:[%s152 + $0x1b4] sm:%s145]
                %265 = vst [vmem:[%s153 + $0xdc] sm:%s145] %v264
                %v266 = vld [vmem:[%s152 + $0x1b8] sm:%s145]
                %267 = vst [vmem:[%s153 + $0xe0] sm:%s145] %v266
                %v268 = vld [vmem:[%s152 + $0x1bc] sm:%s145]
                %269 = vst [vmem:[%s153 + $0xe4] sm:%s145] %v268
                %v270 = vld [vmem:[%s152 + $0x1c0] sm:%s145]
                %271 = vst [vmem:[%s153 + $0xe8] sm:%s145] %v270
                %v272 = vld [vmem:[%s152 + $0x1c4] sm:%s145]
                %273 = vst [vmem:[%s153 + $0xec] sm:%s145] %v272
                %v274 = vld [vmem:[%s152 + $0x1c8] sm:%s145]
                %275 = vst [vmem:[%s153 + $0xf0] sm:%s145] %v274
                %v276 = vld [vmem:[%s152 + $0x1cc] sm:%s145]
                %277 = vst [vmem:[%s153 + $0xf4] sm:%s145] %v276
                %v278 = vld [vmem:[%s152 + $0x1d0] sm:%s145]
                %279 = vst [vmem:[%s153 + $0xf8] sm:%s145] %v278
                %v280 = vld [vmem:[%s152 + $0x1d4] sm:%s145]
                %281 = vst [vmem:[%s153 + $0xfc] sm:%s145] %v280
                %v282 = vld [vmem:[%s152 + $0x1d8] sm:%s145]
                %283 = vst [vmem:[%s153 + $0x100] sm:%s145] %v282
                %v284 = vld [vmem:[%s152 + $0x1dc] sm:%s145]
                %285 = vst [vmem:[%s153 + $0x104] sm:%s145] %v284
                %v286 = vld [vmem:[%s152 + $0x1e0] sm:%s145]
                %287 = vst [vmem:[%s153 + $0x108] sm:%s145] %v286
                %v288 = vld [vmem:[%s152 + $0x1e4] sm:%s145]
                %289 = vst [vmem:[%s153 + $0x10c] sm:%s145] %v288
                %v290 = vld [vmem:[%s152 + $0x1e8] sm:%s145]
                %291 = vst [vmem:[%s153 + $0x110] sm:%s145] %v290
                %v292 = vld [vmem:[%s152 + $0x1ec] sm:%s145]
                %293 = vst [vmem:[%s153 + $0x114] sm:%s145] %v292
                %v294 = vld [vmem:[%s152 + $0x1f0] sm:%s145]
                %295 = vst [vmem:[%s153 + $0x118] sm:%s145] %v294
                %v296 = vld [vmem:[%s152 + $0x1f4] sm:%s145]
                %297 = vst [vmem:[%s153 + $0x11c] sm:%s145] %v296
              $region45: #{net_forward.3} parent=39 // loop_footer
                %s151 = sadd.s32 1, %s147
              $region46: #{net_forward.3} parent=39 // loop_footer_branch
                %146 = sbr.rel target = $region42
              $region47: #{net_forward.3} parent=39 // loop_exit
                _
            $region40: #{net_forward.3} parent=31 // pred_fallthru
              _
          $region32: #{net_forward.3} parent=27 // pred_fallthru
            _
          %462 = vnop
        $region28: #{net_forward.3} parent=23 // pred_fallthru
          _
      $region24: #{net_forward.3} parent=5 // pred_fallthru
        _
      %p463 = scmp.le.s32.totalorder 1, %s9
      %p464 = scmp.lt.s32.totalorder %s9, 3
      %p465 = pnand %p463, %p464
      %p466 = pneg %p465
      // Predicated region
      $region66: #{net_forward.3} parent=5 // pred_check
        _
      $region67: #{net_forward.3} parent=5 // pred_check_branch
        %468 = sbr.rel (%p465) target = $region69
      $region68: #{net_forward.3} parent=5 // pred_region
        %s469 = ssub.s32 %s9, 1
        %s470 = sand.u32 %s22, 1
        %s471 = sand.u32 %s22, 1
        %s472 = smul.addr %s471, 288
        %s473 = scalar_lea.vmem [#allocation2], %s472
        // Predicated region
        $region70: #{net_forward.3} parent=68 // pred_check
          %p474 = pneg %p35
        $region71: #{net_forward.3} parent=68 // pred_check_branch
          %476 = sbr.rel (%p474) target = $region73
        $region72: #{net_forward.3} parent=68 // pred_region
          _
        $region73: #{net_forward.3} parent=68 // pred_fallthru
          _
        %s477 = sand.u32 %s22, 1
        %s478 = sand.u32 %s22, 1
        %s479 = smul.addr %s478, 288
        %s480 = scalar_lea.vmem [#allocation2], %s479
        %p481 = pneg %p35
        %p482 = pneg %p32
        %p483 = pneg %p56
        %p484 = pneg %p53
        %p485 = pneg %p77
        %p486 = pneg %p74
        %p487 = pneg %p103
        %p488 = pneg %p100
        %s489 = smul.u32 18, %s14
        %p490 = scmp.lt.s32.totalorder %s489, 35
        %s491 = scalar_select %p490, %s489, 35
        %s492 = smul.addr %s491, 4
        %s493 = scalar_lea.vmem %s3, %s492
        %s494 = smul.u32 18, %s14
        %s495 = smul.u32 18, %s14
        %p496 = scmp.lt.s32.totalorder %s495, 35
        %s497 = scalar_select %p496, %s495, 35
        %s498 = smul.addr %s497, 4
        %s499 = scalar_lea.vmem %s3, %s498
        %s500 = smul.u32 18, %s14
        %v502 = vld [vmem:[%s473] sm:$0xf]
        %v503 = vld [vmem:[%s473 + $0x4] sm:$0xf]
        %v504 = vld [vmem:[%s473 + $0x8] sm:$0xf]
        %v505 = vld [vmem:[%s473 + $0xc] sm:$0xf]
        %v506 = vld [vmem:[%s473 + $0x10] sm:$0xf]
        %v507 = vld [vmem:[%s473 + $0x14] sm:$0xf]
        %v508 = vld [vmem:[%s473 + $0x18] sm:$0xf]
        %v509 = vld [vmem:[%s473 + $0x1c] sm:$0xf]
        %v510 = vld [vmem:[%s473 + $0x20] sm:$0xf]
        %v511 = vld [vmem:[%s473 + $0x24] sm:$0xf]
        %v512 = vld [vmem:[%s473 + $0x28] sm:$0xf]
        %v513 = vld [vmem:[%s473 + $0x2c] sm:$0xf]
        %v514 = vld [vmem:[%s473 + $0x30] sm:$0xf]
        %v515 = vld [vmem:[%s473 + $0x34] sm:$0xf]
        %v516 = vld [vmem:[%s473 + $0x38] sm:$0xf]
        %v517 = vld [vmem:[%s473 + $0x3c] sm:$0xf]
        %v518 = vld [vmem:[%s473 + $0x40] sm:$0xf]
        %v519 = vld [vmem:[%s473 + $0x44] sm:$0xf]
        %v520 = vld [vmem:[%s473 + $0x48] sm:$0xf]
        %v521 = vld [vmem:[%s473 + $0x4c] sm:$0xf]
        %v522 = vld [vmem:[%s473 + $0x50] sm:$0xf]
        %v523 = vld [vmem:[%s473 + $0x54] sm:$0xf]
        %v524 = vld [vmem:[%s473 + $0x58] sm:$0xf]
        %v525 = vld [vmem:[%s473 + $0x5c] sm:$0xf]
        %v526 = vld [vmem:[%s473 + $0x60] sm:$0xf]
        %v527 = vld [vmem:[%s473 + $0x64] sm:$0xf]
        %v528 = vld [vmem:[%s473 + $0x68] sm:$0xf]
        %v529 = vld [vmem:[%s473 + $0x6c] sm:$0xf]
        %v530 = vld [vmem:[%s473 + $0x70] sm:$0xf]
        %v531 = vld [vmem:[%s473 + $0x74] sm:$0xf]
        %v532 = vld [vmem:[%s473 + $0x78] sm:$0xf]
        %v533 = vld [vmem:[%s473 + $0x7c] sm:$0xf]
        %v534 = vld [vmem:[%s473 + $0x80] sm:$0xf]
        %v535 = vld [vmem:[%s473 + $0x84] sm:$0xf]
        %v536 = vld [vmem:[%s473 + $0x88] sm:$0xf]
        %v537 = vld [vmem:[%s473 + $0x8c] sm:$0xf]
        %v538 = vld [vmem:[%s473 + $0x90] sm:$0xf]
        %v539 = vld [vmem:[%s473 + $0x94] sm:$0xf]
        %v540 = vld [vmem:[%s473 + $0x98] sm:$0xf]
        %v541 = vld [vmem:[%s473 + $0x9c] sm:$0xf]
        %v542 = vld [vmem:[%s473 + $0xa0] sm:$0xf]
        %v543 = vld [vmem:[%s473 + $0xa4] sm:$0xf]
        %v544 = vld [vmem:[%s473 + $0xa8] sm:$0xf]
        %v545 = vld [vmem:[%s473 + $0xac] sm:$0xf]
        %v546 = vld [vmem:[%s473 + $0xb0] sm:$0xf]
        %v547 = vld [vmem:[%s473 + $0xb4] sm:$0xf]
        %v548 = vld [vmem:[%s473 + $0xb8] sm:$0xf]
        %v549 = vld [vmem:[%s473 + $0xbc] sm:$0xf]
        %v550 = vld [vmem:[%s473 + $0xc0] sm:$0xf]
        %v551 = vld [vmem:[%s473 + $0xc4] sm:$0xf]
        %v552 = vld [vmem:[%s473 + $0xc8] sm:$0xf]
        %v553 = vld [vmem:[%s473 + $0xcc] sm:$0xf]
        %v554 = vld [vmem:[%s473 + $0xd0] sm:$0xf]
        %v555 = vld [vmem:[%s473 + $0xd4] sm:$0xf]
        %v556 = vld [vmem:[%s473 + $0xd8] sm:$0xf]
        %v557 = vld [vmem:[%s473 + $0xdc] sm:$0xf]
        %v558 = vld [vmem:[%s473 + $0xe0] sm:$0xf]
        %v559 = vld [vmem:[%s473 + $0xe4] sm:$0xf]
        %v560 = vld [vmem:[%s473 + $0xe8] sm:$0xf]
        %v561 = vld [vmem:[%s473 + $0xec] sm:$0xf]
        %v562 = vld [vmem:[%s473 + $0xf0] sm:$0xf]
        %v563 = vld [vmem:[%s473 + $0xf4] sm:$0xf]
        %v564 = vld [vmem:[%s473 + $0xf8] sm:$0xf]
        %v565 = vld [vmem:[%s473 + $0xfc] sm:$0xf]
        %v566 = vld [vmem:[%s473 + $0x100] sm:$0xf]
        %v567 = vld [vmem:[%s473 + $0x104] sm:$0xf]
        %v568 = vld [vmem:[%s473 + $0x108] sm:$0xf]
        %v569 = vld [vmem:[%s473 + $0x10c] sm:$0xf]
        %v570 = vld [vmem:[%s473 + $0x110] sm:$0xf]
        %v571 = vld [vmem:[%s473 + $0x114] sm:$0xf]
        %v572 = vld [vmem:[%s473 + $0x118] sm:$0xf]
        %v573 = vld [vmem:[%s473 + $0x11c] sm:$0xf]
        %v574 = vld [vmem:[%s1] sm:$0xf]
        %v575 = vld [vmem:[%s1 + $0x4] sm:$0xf]
        %v576 = vld [vmem:[%s1 + $0x8] sm:$0xf]
        %v577 = vld [vmem:[%s1 + $0xc] sm:$0xf]
        %v650 = vunpack.c.l.b16 %v502
        %v651 = vunpack.c.l.b16 %v503
        %v652 = vunpack.c.l.b16 %v504
        %v653 = vunpack.c.l.b16 %v505
        %v654 = vunpack.c.l.b16 %v506
        %v655 = vunpack.c.l.b16 %v507
        %v656 = vunpack.c.l.b16 %v508
        %v657 = vunpack.c.l.b16 %v509
        %v658 = vunpack.c.l.b16 %v510
        %v659 = vunpack.c.l.b16 %v511
        %v660 = vunpack.c.l.b16 %v512
        %v661 = vunpack.c.l.b16 %v513
        %v662 = vunpack.c.l.b16 %v514
        %v663 = vunpack.c.l.b16 %v515
        %v664 = vunpack.c.l.b16 %v516
        %v665 = vunpack.c.l.b16 %v517
        %v666 = vunpack.c.l.b16 %v518
        %v667 = vunpack.c.l.b16 %v519
        %v668 = vunpack.c.l.b16 %v520
        %v669 = vunpack.c.l.b16 %v521
        %v670 = vunpack.c.l.b16 %v522
        %v671 = vunpack.c.l.b16 %v523
        %v672 = vunpack.c.l.b16 %v524
        %v673 = vunpack.c.l.b16 %v525
        %v674 = vunpack.c.l.b16 %v526
        %v675 = vunpack.c.l.b16 %v527
        %v676 = vunpack.c.l.b16 %v528
        %v677 = vunpack.c.l.b16 %v529
        %v678 = vunpack.c.l.b16 %v530
        %v679 = vunpack.c.l.b16 %v531
        %v680 = vunpack.c.l.b16 %v532
        %v681 = vunpack.c.l.b16 %v533
        %v682 = vunpack.c.l.b16 %v534
        %v683 = vunpack.c.l.b16 %v535
        %v684 = vunpack.c.l.b16 %v536
        %v685 = vunpack.c.l.b16 %v537
        %v686 = vunpack.c.l.b16 %v538
        %v687 = vunpack.c.l.b16 %v539
        %v688 = vunpack.c.l.b16 %v540
        %v689 = vunpack.c.l.b16 %v541
        %v690 = vunpack.c.l.b16 %v542
        %v691 = vunpack.c.l.b16 %v543
        %v692 = vunpack.c.l.b16 %v544
        %v693 = vunpack.c.l.b16 %v545
        %v694 = vunpack.c.l.b16 %v546
        %v695 = vunpack.c.l.b16 %v547
        %v696 = vunpack.c.l.b16 %v548
        %v697 = vunpack.c.l.b16 %v549
        %v698 = vunpack.c.l.b16 %v550
        %v699 = vunpack.c.l.b16 %v551
        %v700 = vunpack.c.l.b16 %v552
        %v701 = vunpack.c.l.b16 %v553
        %v702 = vunpack.c.l.b16 %v554
        %v703 = vunpack.c.l.b16 %v555
        %v704 = vunpack.c.l.b16 %v556
        %v705 = vunpack.c.l.b16 %v557
        %v706 = vunpack.c.l.b16 %v558
        %v707 = vunpack.c.l.b16 %v559
        %v708 = vunpack.c.l.b16 %v560
        %v709 = vunpack.c.l.b16 %v561
        %v710 = vunpack.c.l.b16 %v562
        %v711 = vunpack.c.l.b16 %v563
        %v712 = vunpack.c.l.b16 %v564
        %v713 = vunpack.c.l.b16 %v565
        %v714 = vunpack.c.l.b16 %v566
        %v715 = vunpack.c.l.b16 %v567
        %v716 = vunpack.c.l.b16 %v568
        %v717 = vunpack.c.l.b16 %v569
        %v718 = vunpack.c.l.b16 %v570
        %v719 = vunpack.c.l.b16 %v571
        %v720 = vunpack.c.l.b16 %v572
        %v721 = vunpack.c.l.b16 %v573
        %v722 = vpack.c.b16 %v651, %v650
        %v723 = vpack.c.b16 %v653, %v652
        %v724 = vpack.c.b16 %v655, %v654
        %v725 = vpack.c.b16 %v657, %v656
        %v726 = vpack.c.b16 %v659, %v658
        %v727 = vpack.c.b16 %v661, %v660
        %v728 = vpack.c.b16 %v663, %v662
        %v729 = vpack.c.b16 %v665, %v664
        %v730 = vpack.c.b16 %v667, %v666
        %v731 = vpack.c.b16 %v669, %v668
        %v732 = vpack.c.b16 %v671, %v670
        %v733 = vpack.c.b16 %v673, %v672
        %v734 = vpack.c.b16 %v675, %v674
        %v735 = vpack.c.b16 %v677, %v676
        %v736 = vpack.c.b16 %v679, %v678
        %v737 = vpack.c.b16 %v681, %v680
        %v738 = vpack.c.b16 %v683, %v682
        %v739 = vpack.c.b16 %v685, %v684
        %v740 = vpack.c.b16 %v687, %v686
        %v741 = vpack.c.b16 %v689, %v688
        %v742 = vpack.c.b16 %v691, %v690
        %v743 = vpack.c.b16 %v693, %v692
        %v744 = vpack.c.b16 %v695, %v694
        %v745 = vpack.c.b16 %v697, %v696
        %v746 = vpack.c.b16 %v699, %v698
        %v747 = vpack.c.b16 %v701, %v700
        %v748 = vpack.c.b16 %v703, %v702
        %v749 = vpack.c.b16 %v705, %v704
        %v750 = vpack.c.b16 %v707, %v706
        %v751 = vpack.c.b16 %v709, %v708
        %v752 = vpack.c.b16 %v711, %v710
        %v753 = vpack.c.b16 %v713, %v712
        %v754 = vpack.c.b16 %v715, %v714
        %v755 = vpack.c.b16 %v717, %v716
        %v756 = vpack.c.b16 %v719, %v718
        %v757 = vpack.c.b16 %v721, %v720
        %v762 = vunpack.c.l.b16 %v574
        %v763 = vunpack.c.l.b16 %v575
        %v764 = vunpack.c.l.b16 %v576
        %v765 = vunpack.c.l.b16 %v577
        %v766 = vpack.c.b16 %v763, %v762
        %v767 = vpack.c.b16 %v765, %v764
        %vm770 = vcmask 261120
        %v772 = vsel %vm770, %v722, 0
        %v775 = vsel %vm770, %v723, 0
        %v778 = vsel %vm770, %v724, 0
        %v781 = vsel %vm770, %v725, 0
        %v784 = vsel %vm770, %v726, 0
        %v787 = vsel %vm770, %v727, 0
        %v790 = vsel %vm770, %v728, 0
        %v793 = vsel %vm770, %v729, 0
        %v796 = vsel %vm770, %v730, 0
        %v799 = vsel %vm770, %v731, 0
        %v802 = vsel %vm770, %v732, 0
        %v805 = vsel %vm770, %v733, 0
        %v808 = vsel %vm770, %v734, 0
        %v811 = vsel %vm770, %v735, 0
        %v814 = vsel %vm770, %v736, 0
        %v817 = vsel %vm770, %v737, 0
        %v820 = vsel %vm770, %v738, 0
        %v823 = vsel %vm770, %v739, 0
        %v826 = vsel %vm770, %v740, 0
        %v829 = vsel %vm770, %v741, 0
        %v832 = vsel %vm770, %v742, 0
        %v835 = vsel %vm770, %v743, 0
        %v838 = vsel %vm770, %v744, 0
        %v841 = vsel %vm770, %v745, 0
        %v844 = vsel %vm770, %v746, 0
        %v847 = vsel %vm770, %v747, 0
        %v850 = vsel %vm770, %v748, 0
        %v853 = vsel %vm770, %v749, 0
        %v856 = vsel %vm770, %v750, 0
        %v859 = vsel %vm770, %v751, 0
        %v862 = vsel %vm770, %v752, 0
        %v865 = vsel %vm770, %v753, 0
        %v868 = vsel %vm770, %v754, 0
        %v871 = vsel %vm770, %v755, 0
        %v874 = vsel %vm770, %v756, 0
        %v877 = vsel %vm770, %v757, 0
        %879 = vmatpush.bf16.msra.mxu0 0
        %880 = vmatpush.bf16.msra.mxu0 0
        %881 = vmatpush.bf16.msra.mxu0 0
        %882 = vmatpush.bf16.msra.mxu0 0
        %883 = vmatpush.bf16.msra.mxu0 0
        %884 = vmatpush.bf16.msra.mxu0 0
        %885 = vmatpush.bf16.msra.mxu0 %v767
        %886 = vmatpush.bf16.msra.mxu0 %v766
        %887 = vmatmul.bf16.gmra.mxu0 %v772
        %v888 = vpop.f32.mrf.mxu0
        %v889 = vadd.f32 0.0, %v888
        %v890 = vpop.f32.mrf.mxu0
        %v891 = vadd.f32 0.0, %v890
        %892 = vmatmul.bf16.gmra.mxu0 %v775
        %v893 = vpop.f32.mrf.mxu0
        %v894 = vadd.f32 0.0, %v893
        %v895 = vpop.f32.mrf.mxu0
        %v896 = vadd.f32 0.0, %v895
        %897 = vmatmul.bf16.gmra.mxu0 %v778
        %v898 = vpop.f32.mrf.mxu0
        %v899 = vadd.f32 0.0, %v898
        %v900 = vpop.f32.mrf.mxu0
        %v901 = vadd.f32 0.0, %v900
        %902 = vmatmul.bf16.gmra.mxu0 %v781
        %v903 = vpop.f32.mrf.mxu0
        %v904 = vadd.f32 0.0, %v903
        %v905 = vpop.f32.mrf.mxu0
        %v906 = vadd.f32 0.0, %v905
        %907 = vmatmul.bf16.gmra.mxu0 %v784
        %v908 = vpop.f32.mrf.mxu0
        %v909 = vadd.f32 0.0, %v908
        %v910 = vpop.f32.mrf.mxu0
        %v911 = vadd.f32 0.0, %v910
        %912 = vmatmul.bf16.gmra.mxu0 %v787
        %v913 = vpop.f32.mrf.mxu0
        %v914 = vadd.f32 0.0, %v913
        %v915 = vpop.f32.mrf.mxu0
        %v916 = vadd.f32 0.0, %v915
        %917 = vmatmul.bf16.gmra.mxu0 %v790
        %v918 = vpop.f32.mrf.mxu0
        %v919 = vadd.f32 0.0, %v918
        %v920 = vpop.f32.mrf.mxu0
        %v921 = vadd.f32 0.0, %v920
        %922 = vmatmul.bf16.gmra.mxu0 %v793
        %v923 = vpop.f32.mrf.mxu0
        %v924 = vadd.f32 0.0, %v923
        %v925 = vpop.f32.mrf.mxu0
        %v926 = vadd.f32 0.0, %v925
        %927 = vmatmul.bf16.gmra.mxu0 %v796
        %v928 = vpop.f32.mrf.mxu0
        %v929 = vadd.f32 0.0, %v928
        %v930 = vpop.f32.mrf.mxu0
        %v931 = vadd.f32 0.0, %v930
        %932 = vmatmul.bf16.gmra.mxu0 %v799
        %v933 = vpop.f32.mrf.mxu0
        %v934 = vadd.f32 0.0, %v933
        %v935 = vpop.f32.mrf.mxu0
        %v936 = vadd.f32 0.0, %v935
        %937 = vmatmul.bf16.gmra.mxu0 %v802
        %v938 = vpop.f32.mrf.mxu0
        %v939 = vadd.f32 0.0, %v938
        %v940 = vpop.f32.mrf.mxu0
        %v941 = vadd.f32 0.0, %v940
        %942 = vmatmul.bf16.gmra.mxu0 %v805
        %v943 = vpop.f32.mrf.mxu0
        %v944 = vadd.f32 0.0, %v943
        %v945 = vpop.f32.mrf.mxu0
        %v946 = vadd.f32 0.0, %v945
        %947 = vmatmul.bf16.gmra.mxu0 %v808
        %v948 = vpop.f32.mrf.mxu0
        %v949 = vadd.f32 0.0, %v948
        %v950 = vpop.f32.mrf.mxu0
        %v951 = vadd.f32 0.0, %v950
        %952 = vmatmul.bf16.gmra.mxu0 %v811
        %v953 = vpop.f32.mrf.mxu0
        %v954 = vadd.f32 0.0, %v953
        %v955 = vpop.f32.mrf.mxu0
        %v956 = vadd.f32 0.0, %v955
        %957 = vmatmul.bf16.gmra.mxu0 %v814
        %v958 = vpop.f32.mrf.mxu0
        %v959 = vadd.f32 0.0, %v958
        %v960 = vpop.f32.mrf.mxu0
        %v961 = vadd.f32 0.0, %v960
        %962 = vmatmul.bf16.gmra.mxu0 %v817
        %v963 = vpop.f32.mrf.mxu0
        %v964 = vadd.f32 0.0, %v963
        %v965 = vpop.f32.mrf.mxu0
        %v966 = vadd.f32 0.0, %v965
        %967 = vmatmul.bf16.gmra.mxu0 %v820
        %v968 = vpop.f32.mrf.mxu0
        %v969 = vadd.f32 0.0, %v968
        %v970 = vpop.f32.mrf.mxu0
        %v971 = vadd.f32 0.0, %v970
        %972 = vmatmul.bf16.gmra.mxu0 %v823
        %v973 = vpop.f32.mrf.mxu0
        %v974 = vadd.f32 0.0, %v973
        %v975 = vpop.f32.mrf.mxu0
        %v976 = vadd.f32 0.0, %v975
        %977 = vmatmul.bf16.gmra.mxu0 %v826
        %v978 = vpop.f32.mrf.mxu0
        %v979 = vadd.f32 0.0, %v978
        %v980 = vpop.f32.mrf.mxu0
        %v981 = vadd.f32 0.0, %v980
        %982 = vmatmul.bf16.gmra.mxu0 %v829
        %v983 = vpop.f32.mrf.mxu0
        %v984 = vadd.f32 0.0, %v983
        %v985 = vpop.f32.mrf.mxu0
        %v986 = vadd.f32 0.0, %v985
        %987 = vmatmul.bf16.gmra.mxu0 %v832
        %v988 = vpop.f32.mrf.mxu0
        %v989 = vadd.f32 0.0, %v988
        %v990 = vpop.f32.mrf.mxu0
        %v991 = vadd.f32 0.0, %v990
        %992 = vmatmul.bf16.gmra.mxu0 %v835
        %v993 = vpop.f32.mrf.mxu0
        %v994 = vadd.f32 0.0, %v993
        %v995 = vpop.f32.mrf.mxu0
        %v996 = vadd.f32 0.0, %v995
        %997 = vmatmul.bf16.gmra.mxu0 %v838
        %v998 = vpop.f32.mrf.mxu0
        %v999 = vadd.f32 0.0, %v998
        %v1000 = vpop.f32.mrf.mxu0
        %v1001 = vadd.f32 0.0, %v1000
        %1002 = vmatmul.bf16.gmra.mxu0 %v841
        %v1003 = vpop.f32.mrf.mxu0
        %v1004 = vadd.f32 0.0, %v1003
        %v1005 = vpop.f32.mrf.mxu0
        %v1006 = vadd.f32 0.0, %v1005
        %1007 = vmatmul.bf16.gmra.mxu0 %v844
        %v1008 = vpop.f32.mrf.mxu0
        %v1009 = vadd.f32 0.0, %v1008
        %v1010 = vpop.f32.mrf.mxu0
        %v1011 = vadd.f32 0.0, %v1010
        %1012 = vmatmul.bf16.gmra.mxu0 %v847
        %v1013 = vpop.f32.mrf.mxu0
        %v1014 = vadd.f32 0.0, %v1013
        %v1015 = vpop.f32.mrf.mxu0
        %v1016 = vadd.f32 0.0, %v1015
        %1017 = vmatmul.bf16.gmra.mxu0 %v850
        %v1018 = vpop.f32.mrf.mxu0
        %v1019 = vadd.f32 0.0, %v1018
        %v1020 = vpop.f32.mrf.mxu0
        %v1021 = vadd.f32 0.0, %v1020
        %1022 = vmatmul.bf16.gmra.mxu0 %v853
        %v1023 = vpop.f32.mrf.mxu0
        %v1024 = vadd.f32 0.0, %v1023
        %v1025 = vpop.f32.mrf.mxu0
        %v1026 = vadd.f32 0.0, %v1025
        %1027 = vmatmul.bf16.gmra.mxu0 %v856
        %v1028 = vpop.f32.mrf.mxu0
        %v1029 = vadd.f32 0.0, %v1028
        %v1030 = vpop.f32.mrf.mxu0
        %v1031 = vadd.f32 0.0, %v1030
        %1032 = vmatmul.bf16.gmra.mxu0 %v859
        %v1033 = vpop.f32.mrf.mxu0
        %v1034 = vadd.f32 0.0, %v1033
        %v1035 = vpop.f32.mrf.mxu0
        %v1036 = vadd.f32 0.0, %v1035
        %1037 = vmatmul.bf16.gmra.mxu0 %v862
        %v1038 = vpop.f32.mrf.mxu0
        %v1039 = vadd.f32 0.0, %v1038
        %v1040 = vpop.f32.mrf.mxu0
        %v1041 = vadd.f32 0.0, %v1040
        %1042 = vmatmul.bf16.gmra.mxu0 %v865
        %v1043 = vpop.f32.mrf.mxu0
        %v1044 = vadd.f32 0.0, %v1043
        %v1045 = vpop.f32.mrf.mxu0
        %v1046 = vadd.f32 0.0, %v1045
        %1047 = vmatmul.bf16.gmra.mxu0 %v868
        %v1048 = vpop.f32.mrf.mxu0
        %v1049 = vadd.f32 0.0, %v1048
        %v1050 = vpop.f32.mrf.mxu0
        %v1051 = vadd.f32 0.0, %v1050
        %1052 = vmatmul.bf16.gmra.mxu0 %v871
        %v1053 = vpop.f32.mrf.mxu0
        %v1054 = vadd.f32 0.0, %v1053
        %v1055 = vpop.f32.mrf.mxu0
        %v1056 = vadd.f32 0.0, %v1055
        %1057 = vmatmul.bf16.gmra.mxu0 %v874
        %v1058 = vpop.f32.mrf.mxu0
        %v1059 = vadd.f32 0.0, %v1058
        %v1060 = vpop.f32.mrf.mxu0
        %v1061 = vadd.f32 0.0, %v1060
        %1062 = vmatmul.bf16.gmra.mxu0 %v877
        %v1063 = vpop.f32.mrf.mxu0
        %v1064 = vadd.f32 0.0, %v1063
        %v1065 = vpop.f32.mrf.mxu0
        %v1066 = vadd.f32 0.0, %v1065
        %1067 = vdwg.mxu0
        %v1068 = vmax.f32 %v889, %v934
        %v1069 = vmax.f32 %v891, %v936
        %v1070 = vmax.f32 %v894, %v939
        %v1071 = vmax.f32 %v896, %v941
        %v1072 = vmax.f32 %v899, %v944
        %v1073 = vmax.f32 %v901, %v946
        %v1074 = vmax.f32 %v904, %v949
        %v1075 = vmax.f32 %v906, %v951
        %v1076 = vmax.f32 %v909, %v954
        %v1077 = vmax.f32 %v911, %v956
        %v1078 = vmax.f32 %v914, %v959
        %v1079 = vmax.f32 %v916, %v961
        %v1080 = vmax.f32 %v919, %v964
        %v1081 = vmax.f32 %v921, %v966
        %v1082 = vmax.f32 %v924, %v969
        %v1083 = vmax.f32 %v926, %v971
        %v1084 = vmax.f32 %v929, %v974
        %v1085 = vmax.f32 %v931, %v976
        %v1086 = vmax.f32 %v979, %v1024
        %v1087 = vmax.f32 %v981, %v1026
        %v1088 = vmax.f32 %v984, %v1029
        %v1089 = vmax.f32 %v986, %v1031
        %v1090 = vmax.f32 %v989, %v1034
        %v1091 = vmax.f32 %v991, %v1036
        %v1092 = vmax.f32 %v994, %v1039
        %v1093 = vmax.f32 %v996, %v1041
        %v1094 = vmax.f32 %v999, %v1044
        %v1095 = vmax.f32 %v1001, %v1046
        %v1096 = vmax.f32 %v1004, %v1049
        %v1097 = vmax.f32 %v1006, %v1051
        %v1098 = vmax.f32 %v1009, %v1054
        %v1099 = vmax.f32 %v1011, %v1056
        %v1100 = vmax.f32 %v1014, %v1059
        %v1101 = vmax.f32 %v1016, %v1061
        %v1102 = vmax.f32 %v1019, %v1064
        %v1103 = vmax.f32 %v1021, %v1066
        %v1104 = vmax.f32 %v1068, %v1086
        %v1105 = vmax.f32 %v1069, %v1087
        %v1106 = vmax.f32 %v1070, %v1088
        %v1107 = vmax.f32 %v1071, %v1089
        %v1108 = vmax.f32 %v1072, %v1090
        %v1109 = vmax.f32 %v1073, %v1091
        %v1110 = vmax.f32 %v1074, %v1092
        %v1111 = vmax.f32 %v1075, %v1093
        %v1112 = vmax.f32 %v1076, %v1094
        %v1113 = vmax.f32 %v1077, %v1095
        %v1114 = vmax.f32 %v1078, %v1096
        %v1115 = vmax.f32 %v1079, %v1097
        %v1116 = vmax.f32 %v1080, %v1098
        %v1117 = vmax.f32 %v1081, %v1099
        %v1118 = vmax.f32 %v1082, %v1100
        %v1119 = vmax.f32 %v1083, %v1101
        %v1120 = vmax.f32 %v1084, %v1102
        %v1121 = vmax.f32 %v1085, %v1103
        %v1122 = vld [vmem:[%s2] sm:$0x1]
        %v1124 = vperm.slane %v1122, 0
        %v1126 = vadd.f32 %v1104, %v1124
        %v1127 = vadd.f32 %v1105, %v1124
        %v1128 = vadd.f32 %v1106, %v1124
        %v1129 = vadd.f32 %v1107, %v1124
        %v1130 = vadd.f32 %v1108, %v1124
        %v1131 = vadd.f32 %v1109, %v1124
        %v1132 = vadd.f32 %v1110, %v1124
        %v1133 = vadd.f32 %v1111, %v1124
        %v1134 = vadd.f32 %v1112, %v1124
        %v1135 = vadd.f32 %v1113, %v1124
        %v1136 = vadd.f32 %v1114, %v1124
        %v1137 = vadd.f32 %v1115, %v1124
        %v1138 = vadd.f32 %v1116, %v1124
        %v1139 = vadd.f32 %v1117, %v1124
        %v1140 = vadd.f32 %v1118, %v1124
        %v1141 = vadd.f32 %v1119, %v1124
        %v1142 = vadd.f32 %v1120, %v1124
        %v1143 = vadd.f32 %v1121, %v1124
        %v1144 = vmax.f32 %v1126, 0.0
        %v1145 = vmax.f32 %v1127, 0.0
        %v1146 = vmax.f32 %v1128, 0.0
        %v1147 = vmax.f32 %v1129, 0.0
        %v1148 = vmax.f32 %v1130, 0.0
        %v1149 = vmax.f32 %v1131, 0.0
        %v1150 = vmax.f32 %v1132, 0.0
        %v1151 = vmax.f32 %v1133, 0.0
        %v1152 = vmax.f32 %v1134, 0.0
        %v1153 = vmax.f32 %v1135, 0.0
        %v1154 = vmax.f32 %v1136, 0.0
        %v1155 = vmax.f32 %v1137, 0.0
        %v1156 = vmax.f32 %v1138, 0.0
        %v1157 = vmax.f32 %v1139, 0.0
        %v1158 = vmax.f32 %v1140, 0.0
        %v1159 = vmax.f32 %v1141, 0.0
        %v1160 = vmax.f32 %v1142, 0.0
        %v1161 = vmax.f32 %v1143, 0.0
        %v1162 = vpack.c.bf16 %v1144, %v1144
        %v1163 = vpack.c.bf16 %v1145, %v1145
        %v1164 = vpack.c.bf16 %v1146, %v1146
        %v1165 = vpack.c.bf16 %v1147, %v1147
        %v1166 = vpack.c.bf16 %v1148, %v1148
        %v1167 = vpack.c.bf16 %v1149, %v1149
        %v1168 = vpack.c.bf16 %v1150, %v1150
        %v1169 = vpack.c.bf16 %v1151, %v1151
        %v1170 = vpack.c.bf16 %v1152, %v1152
        %v1171 = vpack.c.bf16 %v1153, %v1153
        %v1172 = vpack.c.bf16 %v1154, %v1154
        %v1173 = vpack.c.bf16 %v1155, %v1155
        %v1174 = vpack.c.bf16 %v1156, %v1156
        %v1175 = vpack.c.bf16 %v1157, %v1157
        %v1176 = vpack.c.bf16 %v1158, %v1158
        %v1177 = vpack.c.bf16 %v1159, %v1159
        %v1178 = vpack.c.bf16 %v1160, %v1160
        %v1179 = vpack.c.bf16 %v1161, %v1161
        %1180 = vst [vmem:[%s499] sm:$0xf] %v1162
        %1181 = vst [vmem:[%s499 + $0x4] sm:$0xf] %v1163
        %1182 = vst [vmem:[%s499 + $0x8] sm:$0xf] %v1164
        %1183 = vst [vmem:[%s499 + $0xc] sm:$0xf] %v1165
        %1184 = vst [vmem:[%s499 + $0x10] sm:$0xf] %v1166
        %1185 = vst [vmem:[%s499 + $0x14] sm:$0xf] %v1167
        %1186 = vst [vmem:[%s499 + $0x18] sm:$0xf] %v1168
        %1187 = vst [vmem:[%s499 + $0x1c] sm:$0xf] %v1169
        %1188 = vst [vmem:[%s499 + $0x20] sm:$0xf] %v1170
        %1189 = vst [vmem:[%s499 + $0x24] sm:$0xf] %v1171
        %1190 = vst [vmem:[%s499 + $0x28] sm:$0xf] %v1172
        %1191 = vst [vmem:[%s499 + $0x2c] sm:$0xf] %v1173
        %1192 = vst [vmem:[%s499 + $0x30] sm:$0xf] %v1174
        %1193 = vst [vmem:[%s499 + $0x34] sm:$0xf] %v1175
        %1194 = vst [vmem:[%s499 + $0x38] sm:$0xf] %v1176
        %1195 = vst [vmem:[%s499 + $0x3c] sm:$0xf] %v1177
        %1196 = vst [vmem:[%s499 + $0x40] sm:$0xf] %v1178
        %1197 = vst [vmem:[%s499 + $0x44] sm:$0xf] %v1179
        %s1198 = smul.u32 18, %s14
        %p1199 = scmp.lt.s32.totalorder %s1198, 35
        %s1200 = scalar_select %p1199, %s1198, 35
        %s1201 = smul.addr %s1200, 4
        %s1202 = scalar_lea.vmem %s3, %s1201
        // Predicated region
        $region74: #{net_forward.3} parent=68 // pred_check
          %p1203 = pneg %p100
        $region75: #{net_forward.3} parent=68 // pred_check_branch
          %1205 = sbr.rel (%p1203) target = $region77
        $region76: #{net_forward.3} parent=68 // pred_region
          %s1206 = smul.u32 18, %s14
        $region77: #{net_forward.3} parent=68 // pred_fallthru
          _
      $region69: #{net_forward.3} parent=5 // pred_fallthru
        _
      %p1207 = scmp.le.s32.totalorder 2, %s9
      // Predicated region
      $region78: #{net_forward.3} parent=5 // pred_check
        %p1208 = pneg %p1207
      $region79: #{net_forward.3} parent=5 // pred_check_branch
        %1210 = sbr.rel (%p1208) target = $region81
      $region80: #{net_forward.3} parent=5 // pred_region
        %s1211 = ssub.s32 %s9, 2
        // Predicated region
        $region82: #{net_forward.3} parent=80 // pred_check
          %p1212 = pneg %p106
        $region83: #{net_forward.3} parent=80 // pred_check_branch
          %1214 = sbr.rel (%p1212) target = $region85
        $region84: #{net_forward.3} parent=80 // pred_region
          %s1215 = smul.u32 18, %s15
          %p1216 = scmp.lt.s32.totalorder %s1215, 35
          %s1217 = scalar_select %p1216, %s1215, 35
          %s1218 = smul.addr %s1217, 4
          %s1219 = scalar_lea.vmem %s3, %s1218
        $region85: #{net_forward.3} parent=80 // pred_fallthru
          _
      $region81: #{net_forward.3} parent=5 // pred_fallthru
        _
    $region6: #{net_forward.3} parent=1 // loop_footer
      %s13 = sadd.s32 1, %s9
    $region7: #{net_forward.3} parent=1 // loop_footer_branch
      %8 = sbr.rel target = $region3
    $region8: #{net_forward.3} parent=1 // loop_exit
      _

// kernel: net_forward.4
$region0: #{net_forward.4}
  #allocation0 [shape = 'u32[]', space=smem, size = 0x4, offset = 0x4, fixed_abs, tag = 'smem constant byte address 0x4 - core index']
  #allocation1 [shape = 'u32[72,128]{1,0:T(1,128)}', space=vmem, size = 0x9000, scoped, tag = 'internal scratch']
  %s0 = inlined_call_operand.vmem [shape: bf16[4,32,512], index: 0, kind: input, shape index: {}]
  %s1 = inlined_call_operand.vmem [shape: bf16[512,128], index: 1, kind: input, shape index: {}]
  %s2 = inlined_call_operand.vmem [shape: f32[1,128], index: 2, kind: input, shape index: {}]
  %s3 = inlined_call_operand.vmem [shape: bf16[32,128], index: 3, kind: output, shape index: {}]
  %s4 = sld [smem:[#allocation0]]
  $region68: #{net_forward.4} parent=0
    _
  %s6 = ssub.s32 1, %s4
  %s7 = scalar_select 0, %s6, %s4
  $region1: #{net_forward.4} parent=0
    #allocation2 [shape = 'u8[131072]{0}', space=vmem, size = 0x20000, scoped, tag = 'input window, operand 0']
    loop: start=0, step=1, limit=4
    $region2: #{net_forward.4} parent=1 // loop_pre_header
      _
    $region3: #{net_forward.4} parent=1 // loop_header
      %s9 = sphi 0, %s13
      %p10 = scmp.ge.s32.totalorder %s9, 4
      %s19 = sphi 0, %s21
      %s22 = sphi 0, %s19
      %s23 = sphi 0, %s22
      %s39 = sphi 0, %s23
      %s43 = sphi 0, %s43
      %s45 = sphi 0, %s43
      %s46 = sphi 0, %s45
      %s60 = sphi 0, %s46
      %s64 = sphi 0, %s64
      %s66 = sphi 0, %s64
      %s67 = sphi 0, %s66
      %s81 = sphi 0, %s67
      %s87 = sphi 0, %s89
      %s90 = sphi 0, %s87
      %s91 = sphi 0, %s90
      %s107 = sphi 0, %s91
    $region4: #{net_forward.4} parent=1 // loop_header_branch
      %12 = sbr.rel (%p10) target = $region8
    $region5: #{net_forward.4} parent=1 // loop_body
      %s14 = ssub.s32 %s9, 1
      %s15 = ssub.s32 %s9, 2
      %s16 = sadd.s32 %s9, 1
      %s17 = ssub.s32 %s9, %s16
      %p18 = scmp.eq.s32.totalorder %s17, 0
      %s20 = sadd.s32 %s19, 1
      %s21 = scalar_select %p18, %s19, %s20
      %p24 = pneg %p18
      %p25 = scmp.eq.s32.totalorder %s9, 1
      %p26 = por %p24, %p25
      %p27 = scmp.ne.s32.totalorder %s19, %s22
      %p28 = scmp.eq.s32.totalorder %s9, 0
      %p29 = por %p27, %p28
      %p30 = scmp.ne.s32.totalorder %s19, %s22
      %p31 = scmp.eq.s32.totalorder %s14, 1
      %p32 = por %p30, %p31
      %p33 = scmp.ne.s32.totalorder %s22, %s23
      %p34 = scmp.eq.s32.totalorder %s14, 0
      %p35 = por %p33, %p34
      %p36 = scmp.ne.s32.totalorder %s22, %s23
      %p37 = scmp.eq.s32.totalorder %s15, 1
      %p38 = por %p36, %p37
      %p40 = scmp.ne.s32.totalorder %s23, %s39
      %p41 = scmp.eq.s32.totalorder %s15, 0
      %p42 = por %p40, %p41
      %s44 = sadd.s32 %s43, 1
      %p47 = scmp.eq.s32.totalorder %s9, 1
      %p48 = scmp.ne.s32.totalorder %s43, %s45
      %p49 = scmp.eq.s32.totalorder %s9, 0
      %p50 = por %p48, %p49
      %p51 = scmp.ne.s32.totalorder %s43, %s45
      %p52 = scmp.eq.s32.totalorder %s14, 1
      %p53 = por %p51, %p52
      %p54 = scmp.ne.s32.totalorder %s45, %s46
      %p55 = scmp.eq.s32.totalorder %s14, 0
      %p56 = por %p54, %p55
      %p57 = scmp.ne.s32.totalorder %s45, %s46
      %p58 = scmp.eq.s32.totalorder %s15, 1
      %p59 = por %p57, %p58
      %p61 = scmp.ne.s32.totalorder %s46, %s60
      %p62 = scmp.eq.s32.totalorder %s15, 0
      %p63 = por %p61, %p62
      %s65 = sadd.s32 %s64, 1
      %p68 = scmp.eq.s32.totalorder %s9, 1
      %p69 = scmp.ne.s32.totalorder %s64, %s66
      %p70 = scmp.eq.s32.totalorder %s9, 0
      %p71 = por %p69, %p70
      %p72 = scmp.ne.s32.totalorder %s64, %s66
      %p73 = scmp.eq.s32.totalorder %s14, 1
      %p74 = por %p72, %p73
      %p75 = scmp.ne.s32.totalorder %s66, %s67
      %p76 = scmp.eq.s32.totalorder %s14, 0
      %p77 = por %p75, %p76
      %p78 = scmp.ne.s32.totalorder %s66, %s67
      %p79 = scmp.eq.s32.totalorder %s15, 1
      %p80 = por %p78, %p79
      %p82 = scmp.ne.s32.totalorder %s67, %s81
      %p83 = scmp.eq.s32.totalorder %s15, 0
      %p84 = por %p82, %p83
      %s85 = ssub.s32 %s9, %s16
      %p86 = scmp.eq.s32.totalorder %s85, 0
      %s88 = sadd.s32 %s87, 1
      %s89 = scalar_select %p86, %s87, %s88
      %p92 = pneg %p86
      %p93 = scmp.eq.s32.totalorder %s9, 1
      %p94 = por %p92, %p93
      %p95 = scmp.ne.s32.totalorder %s87, %s90
      %p96 = scmp.eq.s32.totalorder %s9, 0
      %p97 = por %p95, %p96
      %p98 = scmp.ne.s32.totalorder %s87, %s90
      %p99 = scmp.eq.s32.totalorder %s14, 1
      %p100 = por %p98, %p99
      %p101 = scmp.ne.s32.totalorder %s90, %s91
      %p102 = scmp.eq.s32.totalorder %s14, 0
      %p103 = por %p101, %p102
      %p104 = scmp.ne.s32.totalorder %s90, %s91
      %p105 = scmp.eq.s32.totalorder %s15, 1
      %p106 = por %p104, %p105
      %p108 = scmp.ne.s32.totalorder %s91, %s107
      %p109 = scmp.eq.s32.totalorder %s15, 0
      %p110 = por %p108, %p109
      %p111 = scmp.le.s32.totalorder 1, %s9
      %p112 = scmp.lt.s32.totalorder %s9, 3
      %p113 = pnand %p111, %p112
      %p114 = pneg %p113
      // Predicated region
      $region9: #{net_forward.4} parent=5 // pred_check
        _
      $region10: #{net_forward.4} parent=5 // pred_check_branch
        %116 = sbr.rel (%p113) target = $region12
      $region11: #{net_forward.4} parent=5 // pred_region
        %s117 = ssub.s32 %s9, 1
        // Predicated region
        $region13: #{net_forward.4} parent=11 // pred_check
          %p118 = pneg %p56
        $region14: #{net_forward.4} parent=11 // pred_check_branch
          %120 = sbr.rel (%p118) target = $region16
        $region15: #{net_forward.4} parent=11 // pred_region
          _
        $region16: #{net_forward.4} parent=11 // pred_fallthru
          _
        // Predicated region
        $region17: #{net_forward.4} parent=11 // pred_check
          %p121 = pneg %p77
        $region18: #{net_forward.4} parent=11 // pred_check_branch
          %123 = sbr.rel (%p121) target = $region20
        $region19: #{net_forward.4} parent=11 // pred_region
          _
        $region20: #{net_forward.4} parent=11 // pred_fallthru
          _
      $region12: #{net_forward.4} parent=5 // pred_fallthru
        _
      %p124 = scmp.lt.s32.totalorder %s9, 2
      // Predicated region
      $region21: #{net_forward.4} parent=5 // pred_check
        %p125 = pneg %p124
      $region22: #{net_forward.4} parent=5 // pred_check_branch
        %127 = sbr.rel (%p125) target = $region24
      $region23: #{net_forward.4} parent=5 // pred_region
        // Predicated region
        $region25: #{net_forward.4} parent=23 // pred_check
          %p128 = pneg %p29
        $region26: #{net_forward.4} parent=23 // pred_check_branch
          %130 = sbr.rel (%p128) target = $region28
        $region27: #{net_forward.4} parent=23 // pred_region
          %s131 = sand.u32 %s19, 1
          %s132 = sand.u32 %s19, 1
          %s133 = smul.addr %s132, 128
          %s134 = scalar_lea.vmem [#allocation2], %s133
          %s135 = smul.u32 2, %s9
          %s136 = smul.addr %s135, 4
          %s137 = smul.addr %s136, 4
          %s138 = scalar_lea.vmem %s0, %s137
          // Predicated region
          $region29: #{net_forward.4} parent=27 // pred_check
            _
          $region30: #{net_forward.4} parent=27 // pred_check_branch
            %140 = sbr.rel (0) target = $region32
          $region31: #{net_forward.4} parent=27 // pred_region
            // Predicated region
            $region33: #{net_forward.4} parent=31 // pred_check
              _
            $region34: #{net_forward.4} parent=31 // pred_check_branch
              %142 = sbr.rel (0) target = $region36
            $region35: #{net_forward.4} parent=31 // pred_region
              loop: start=0, step=1, limit=1
              $region37: #{net_forward.4} parent=35 // loop_pre_header
                _
              $region38: #{net_forward.4} parent=35 // loop_header
                %s144 = sphi 0, %s148
                %p145 = scmp.ge.s32.totalorder %s144, 1
                %s149 = sphi %s138, %s138
                %s150 = sphi %s134, %s134
              $region39: #{net_forward.4} parent=35 // loop_header_branch
                %147 = sbr.rel (%p145) target = $region43
              $region40: #{net_forward.4} parent=35 // loop_body
                %v151 = vld [vmem:[%s149] sm:$0xff]
                %152 = vst [vmem:[%s150] sm:$0xff] %v151
                %v153 = vld [vmem:[%s149 + $0x8] sm:$0xff]
                %154 = vst [vmem:[%s150 + $0x8] sm:$0xff] %v153
                %v155 = vld [vmem:[%s149 + $0x10] sm:$0xff]
                %156 = vst [vmem:[%s150 + $0x10] sm:$0xff] %v155
                %v157 = vld [vmem:[%s149 + $0x18] sm:$0xff]
                %158 = vst [vmem:[%s150 + $0x18] sm:$0xff] %v157
                %v159 = vld [vmem:[%s149 + $0x40] sm:$0xff]
                %160 = vst [vmem:[%s150 + $0x20] sm:$0xff] %v159
                %v161 = vld [vmem:[%s149 + $0x48] sm:$0xff]
                %162 = vst [vmem:[%s150 + $0x28] sm:$0xff] %v161
                %v163 = vld [vmem:[%s149 + $0x50] sm:$0xff]
                %164 = vst [vmem:[%s150 + $0x30] sm:$0xff] %v163
                %v165 = vld [vmem:[%s149 + $0x58] sm:$0xff]
                %166 = vst [vmem:[%s150 + $0x38] sm:$0xff] %v165
                %v167 = vld [vmem:[%s149 + $0x80] sm:$0xff]
                %168 = vst [vmem:[%s150 + $0x40] sm:$0xff] %v167
                %v169 = vld [vmem:[%s149 + $0x88] sm:$0xff]
                %170 = vst [vmem:[%s150 + $0x48] sm:$0xff] %v169
                %v171 = vld [vmem:[%s149 + $0x90] sm:$0xff]
                %172 = vst [vmem:[%s150 + $0x50] sm:$0xff] %v171
                %v173 = vld [vmem:[%s149 + $0x98] sm:$0xff]
                %174 = vst [vmem:[%s150 + $0x58] sm:$0xff] %v173
                %v175 = vld [vmem:[%s149 + $0xc0] sm:$0xff]
                %176 = vst [vmem:[%s150 + $0x60] sm:$0xff] %v175
                %v177 = vld [vmem:[%s149 + $0xc8] sm:$0xff]
                %178 = vst [vmem:[%s150 + $0x68] sm:$0xff] %v177
                %v179 = vld [vmem:[%s149 + $0xd0] sm:$0xff]
                %180 = vst [vmem:[%s150 + $0x70] sm:$0xff] %v179
                %v181 = vld [vmem:[%s149 + $0xd8] sm:$0xff]
                %182 = vst [vmem:[%s150 + $0x78] sm:$0xff] %v181
              $region41: #{net_forward.4} parent=35 // loop_footer
                %s148 = sadd.s32 1, %s144
              $region42: #{net_forward.4} parent=35 // loop_footer_branch
                %143 = sbr.rel target = $region38
              $region43: #{net_forward.4} parent=35 // loop_exit
                _
            $region36: #{net_forward.4} parent=31 // pred_fallthru
              _
            // Predicated region
            $region44: #{net_forward.4} parent=31 // pred_check
              _
            $region45: #{net_forward.4} parent=31 // pred_check_branch
              %184 = sbr.rel target = $region47
            $region46: #{net_forward.4} parent=31 // pred_region
              _
            $region47: #{net_forward.4} parent=31 // pred_fallthru
              _
          $region32: #{net_forward.4} parent=27 // pred_fallthru
            _
          %185 = vnop
        $region28: #{net_forward.4} parent=23 // pred_fallthru
          _
      $region24: #{net_forward.4} parent=5 // pred_fallthru
        _
      %p186 = scmp.le.s32.totalorder 1, %s9
      %p187 = scmp.lt.s32.totalorder %s9, 3
      %p188 = pnand %p186, %p187
      %p189 = pneg %p188
      // Predicated region
      $region48: #{net_forward.4} parent=5 // pred_check
        _
      $region49: #{net_forward.4} parent=5 // pred_check_branch
        %191 = sbr.rel (%p188) target = $region51
      $region50: #{net_forward.4} parent=5 // pred_region
        %s192 = ssub.s32 %s9, 1
        %s193 = sand.u32 %s22, 1
        %s194 = sand.u32 %s22, 1
        %s195 = smul.addr %s194, 128
        %s196 = scalar_lea.vmem [#allocation2], %s195
        // Predicated region
        $region52: #{net_forward.4} parent=50 // pred_check
          %p197 = pneg %p35
        $region53: #{net_forward.4} parent=50 // pred_check_branch
          %199 = sbr.rel (%p197) target = $region55
        $region54: #{net_forward.4} parent=50 // pred_region
          _
        $region55: #{net_forward.4} parent=50 // pred_fallthru
          _
        %s200 = sand.u32 %s22, 1
        %s201 = sand.u32 %s22, 1
        %s202 = smul.addr %s201, 128
        %s203 = scalar_lea.vmem [#allocation2], %s202
        %p204 = pneg %p35
        %p205 = pneg %p32
        %p206 = pneg %p56
        %p207 = pneg %p53
        %p208 = pneg %p77
        %p209 = pneg %p74
        %p210 = pneg %p103
        %p211 = pneg %p100
        %s212 = smul.u32 2, %s14
        %p213 = scmp.lt.s32.totalorder %s212, 3
        %s214 = scalar_select %p213, %s212, 3
        %s215 = smul.addr %s214, 4
        %s216 = scalar_lea.vmem %s3, %s215
        %s217 = smul.u32 2, %s14
        %s218 = smul.u32 2, %s14
        %p219 = scmp.lt.s32.totalorder %s218, 3
        %s220 = scalar_select %p219, %s218, 3
        %s221 = smul.addr %s220, 4
        %s222 = scalar_lea.vmem %s3, %s221
        %s223 = smul.u32 2, %s14
        %v224 = vld [vmem:[%s196] sm:$0xff]
        %v225 = vld [vmem:[%s196 + $0x8] sm:$0xff]
        %v226 = vld [vmem:[%s196 + $0x10] sm:$0xff]
        %v227 = vld [vmem:[%s196 + $0x18] sm:$0xff]
        %v228 = vld [vmem:[%s196 + $0x20] sm:$0xff]
        %v229 = vld [vmem:[%s196 + $0x28] sm:$0xff]
        %v230 = vld [vmem:[%s196 + $0x30] sm:$0xff]
        %v231 = vld [vmem:[%s196 + $0x38] sm:$0xff]
        %v232 = vld [vmem:[%s196 + $0x40] sm:$0xff]
        %v233 = vld [vmem:[%s196 + $0x48] sm:$0xff]
        %v234 = vld [vmem:[%s196 + $0x50] sm:$0xff]
        %v235 = vld [vmem:[%s196 + $0x58] sm:$0xff]
        %v236 = vld [vmem:[%s196 + $0x60] sm:$0xff]
        %v237 = vld [vmem:[%s196 + $0x68] sm:$0xff]
        %v238 = vld [vmem:[%s196 + $0x70] sm:$0xff]
        %v239 = vld [vmem:[%s196 + $0x78] sm:$0xff]
        %v240 = vld [vmem:[%s1] sm:$0xf]
        %v241 = vld [vmem:[%s1 + $0x4] sm:$0xf]
        %v242 = vld [vmem:[%s1 + $0x8] sm:$0xf]
        %v243 = vld [vmem:[%s1 + $0xc] sm:$0xf]
        %v244 = vld [vmem:[%s1 + $0x10] sm:$0xf]
        %v245 = vld [vmem:[%s1 + $0x14] sm:$0xf]
        %v246 = vld [vmem:[%s1 + $0x18] sm:$0xf]
        %v247 = vld [vmem:[%s1 + $0x1c] sm:$0xf]
        %v248 = vld [vmem:[%s1 + $0x20] sm:$0xf]
        %v249 = vld [vmem:[%s1 + $0x24] sm:$0xf]
        %v250 = vld [vmem:[%s1 + $0x28] sm:$0xf]
        %v251 = vld [vmem:[%s1 + $0x2c] sm:$0xf]
        %v252 = vld [vmem:[%s1 + $0x30] sm:$0xf]
        %v253 = vld [vmem:[%s1 + $0x34] sm:$0xf]
        %v254 = vld [vmem:[%s1 + $0x38] sm:$0xf]
        %v255 = vld [vmem:[%s1 + $0x3c] sm:$0xf]
        %v256 = vld [vmem:[%s1 + $0x40] sm:$0xf]
        %v257 = vld [vmem:[%s1 + $0x44] sm:$0xf]
        %v258 = vld [vmem:[%s1 + $0x48] sm:$0xf]
        %v259 = vld [vmem:[%s1 + $0x4c] sm:$0xf]
        %v260 = vld [vmem:[%s1 + $0x50] sm:$0xf]
        %v261 = vld [vmem:[%s1 + $0x54] sm:$0xf]
        %v262 = vld [vmem:[%s1 + $0x58] sm:$0xf]
        %v263 = vld [vmem:[%s1 + $0x5c] sm:$0xf]
        %v264 = vld [vmem:[%s1 + $0x60] sm:$0xf]
        %v265 = vld [vmem:[%s1 + $0x64] sm:$0xf]
        %v266 = vld [vmem:[%s1 + $0x68] sm:$0xf]
        %v267 = vld [vmem:[%s1 + $0x6c] sm:$0xf]
        %v268 = vld [vmem:[%s1 + $0x70] sm:$0xf]
        %v269 = vld [vmem:[%s1 + $0x74] sm:$0xf]
        %v270 = vld [vmem:[%s1 + $0x78] sm:$0xf]
        %v271 = vld [vmem:[%s1 + $0x7c] sm:$0xf]
        %v272 = vld [vmem:[%s1 + $0x80] sm:$0xf]
        %v273 = vld [vmem:[%s1 + $0x84] sm:$0xf]
        %v274 = vld [vmem:[%s1 + $0x88] sm:$0xf]
        %v275 = vld [vmem:[%s1 + $0x8c] sm:$0xf]
        %v276 = vld [vmem:[%s1 + $0x90] sm:$0xf]
        %v277 = vld [vmem:[%s1 + $0x94] sm:$0xf]
        %v278 = vld [vmem:[%s1 + $0x98] sm:$0xf]
        %v279 = vld [vmem:[%s1 + $0x9c] sm:$0xf]
        %v280 = vld [vmem:[%s1 + $0xa0] sm:$0xf]
        %v281 = vld [vmem:[%s1 + $0xa4] sm:$0xf]
        %v282 = vld [vmem:[%s1 + $0xa8] sm:$0xf]
        %v283 = vld [vmem:[%s1 + $0xac] sm:$0xf]
        %v284 = vld [vmem:[%s1 + $0xb0] sm:$0xf]
        %v285 = vld [vmem:[%s1 + $0xb4] sm:$0xf]
        %v286 = vld [vmem:[%s1 + $0xb8] sm:$0xf]
        %v287 = vld [vmem:[%s1 + $0xbc] sm:$0xf]
        %v288 = vld [vmem:[%s1 + $0xc0] sm:$0xf]
        %v289 = vld [vmem:[%s1 + $0xc4] sm:$0xf]
        %v290 = vld [vmem:[%s1 + $0xc8] sm:$0xf]
        %v291 = vld [vmem:[%s1 + $0xcc] sm:$0xf]
        %v292 = vld [vmem:[%s1 + $0xd0] sm:$0xf]
        %v293 = vld [vmem:[%s1 + $0xd4] sm:$0xf]
        %v294 = vld [vmem:[%s1 + $0xd8] sm:$0xf]
        %v295 = vld [vmem:[%s1 + $0xdc] sm:$0xf]
        %v296 = vld [vmem:[%s1 + $0xe0] sm:$0xf]
        %v297 = vld [vmem:[%s1 + $0xe4] sm:$0xf]
        %v298 = vld [vmem:[%s1 + $0xe8] sm:$0xf]
        %v299 = vld [vmem:[%s1 + $0xec] sm:$0xf]
        %v300 = vld [vmem:[%s1 + $0xf0] sm:$0xf]
        %v301 = vld [vmem:[%s1 + $0xf4] sm:$0xf]
        %v302 = vld [vmem:[%s1 + $0xf8] sm:$0xf]
        %v303 = vld [vmem:[%s1 + $0xfc] sm:$0xf]
        %v320 = vunpack.c.l.b16 %v224
        %v321 = vunpack.c.h.b16 %v224
        %v322 = vunpack.c.l.b16 %v225
        %v323 = vunpack.c.h.b16 %v225
        %v324 = vunpack.c.l.b16 %v226
        %v325 = vunpack.c.h.b16 %v226
        %v326 = vunpack.c.l.b16 %v227
        %v327 = vunpack.c.h.b16 %v227
        %v328 = vunpack.c.l.b16 %v228
        %v329 = vunpack.c.h.b16 %v228
        %v330 = vunpack.c.l.b16 %v229
        %v331 = vunpack.c.h.b16 %v229
        %v332 = vunpack.c.l.b16 %v230
        %v333 = vunpack.c.h.b16 %v230
        %v334 = vunpack.c.l.b16 %v231
        %v335 = vunpack.c.h.b16 %v231
        %v336 = vunpack.c.l.b16 %v232
        %v337 = vunpack.c.h.b16 %v232
        %v338 = vunpack.c.l.b16 %v233
        %v339 = vunpack.c.h.b16 %v233
        %v340 = vunpack.c.l.b16 %v234
        %v341 = vunpack.c.h.b16 %v234
        %v342 = vunpack.c.l.b16 %v235
        %v343 = vunpack.c.h.b16 %v235
        %v344 = vunpack.c.l.b16 %v236
        %v345 = vunpack.c.h.b16 %v236
        %v346 = vunpack.c.l.b16 %v237
        %v347 = vunpack.c.h.b16 %v237
        %v348 = vunpack.c.l.b16 %v238
        %v349 = vunpack.c.h.b16 %v238
        %v350 = vunpack.c.l.b16 %v239
        %v351 = vunpack.c.h.b16 %v239
        %v352 = vpack.c.b16 %v324, %v320
        %v353 = vpack.c.b16 %v325, %v321
        %v354 = vpack.c.b16 %v326, %v322
        %v355 = vpack.c.b16 %v327, %v323
        %v356 = vpack.c.b16 %v332, %v328
        %v357 = vpack.c.b16 %v333, %v329
        %v358 = vpack.c.b16 %v334, %v330
        %v359 = vpack.c.b16 %v335, %v331
        %v360 = vpack.c.b16 %v340, %v336
        %v361 = vpack.c.b16 %v341, %v337
        %v362 = vpack.c.b16 %v342, %v338
        %v363 = vpack.c.b16 %v343, %v339
        %v364 = vpack.c.b16 %v348, %v344
        %v365 = vpack.c.b16 %v349, %v345
        %v366 = vpack.c.b16 %v350, %v346
        %v367 = vpack.c.b16 %v351, %v347
        %v448 = vunpack.c.l.b16 %v240
        %v449 = vunpack.c.l.b16 %v241
        %v450 = vunpack.c.l.b16 %v242
        %v451 = vunpack.c.l.b16 %v243
        %v452 = vunpack.c.l.b16 %v244
        %v453 = vunpack.c.l.b16 %v245
        %v454 = vunpack.c.l.b16 %v246
        %v455 = vunpack.c.l.b16 %v247
        %v456 = vunpack.c.l.b16 %v248
        %v457 = vunpack.c.l.b16 %v249
        %v458 = vunpack.c.l.b16 %v250
        %v459 = vunpack.c.l.b16 %v251
        %v460 = vunpack.c.l.b16 %v252
        %v461 = vunpack.c.l.b16 %v253
        %v462 = vunpack.c.l.b16 %v254
        %v463 = vunpack.c.l.b16 %v255
        %v464 = vunpack.c.l.b16 %v256
        %v465 = vunpack.c.l.b16 %v257
        %v466 = vunpack.c.l.b16 %v258
        %v467 = vunpack.c.l.b16 %v259
        %v468 = vunpack.c.l.b16 %v260
        %v469 = vunpack.c.l.b16 %v261
        %v470 = vunpack.c.l.b16 %v262
        %v471 = vunpack.c.l.b16 %v263
        %v472 = vunpack.c.l.b16 %v264
        %v473 = vunpack.c.l.b16 %v265
        %v474 = vunpack.c.l.b16 %v266
        %v475 = vunpack.c.l.b16 %v267
        %v476 = vunpack.c.l.b16 %v268
        %v477 = vunpack.c.l.b16 %v269
        %v478 = vunpack.c.l.b16 %v270
        %v479 = vunpack.c.l.b16 %v271
        %v480 = vunpack.c.l.b16 %v272
        %v481 = vunpack.c.l.b16 %v273
        %v482 = vunpack.c.l.b16 %v274
        %v483 = vunpack.c.l.b16 %v275
        %v484 = vunpack.c.l.b16 %v276
        %v485 = vunpack.c.l.b16 %v277
        %v486 = vunpack.c.l.b16 %v278
        %v487 = vunpack.c.l.b16 %v279
        %v488 = vunpack.c.l.b16 %v280
        %v489 = vunpack.c.l.b16 %v281
        %v490 = vunpack.c.l.b16 %v282
        %v491 = vunpack.c.l.b16 %v283
        %v492 = vunpack.c.l.b16 %v284
        %v493 = vunpack.c.l.b16 %v285
        %v494 = vunpack.c.l.b16 %v286
        %v495 = vunpack.c.l.b16 %v287
        %v496 = vunpack.c.l.b16 %v288
        %v497 = vunpack.c.l.b16 %v289
        %v498 = vunpack.c.l.b16 %v290
        %v499 = vunpack.c.l.b16 %v291
        %v500 = vunpack.c.l.b16 %v292
        %v501 = vunpack.c.l.b16 %v293
        %v502 = vunpack.c.l.b16 %v294
        %v503 = vunpack.c.l.b16 %v295
        %v504 = vunpack.c.l.b16 %v296
        %v505 = vunpack.c.l.b16 %v297
        %v506 = vunpack.c.l.b16 %v298
        %v507 = vunpack.c.l.b16 %v299
        %v508 = vunpack.c.l.b16 %v300
        %v509 = vunpack.c.l.b16 %v301
        %v510 = vunpack.c.l.b16 %v302
        %v511 = vunpack.c.l.b16 %v303
        %v512 = vpack.c.b16 %v449, %v448
        %v513 = vpack.c.b16 %v451, %v450
        %v514 = vpack.c.b16 %v453, %v452
        %v515 = vpack.c.b16 %v455, %v454
        %v516 = vpack.c.b16 %v457, %v456
        %v517 = vpack.c.b16 %v459, %v458
        %v518 = vpack.c.b16 %v461, %v460
        %v519 = vpack.c.b16 %v463, %v462
        %v520 = vpack.c.b16 %v465, %v464
        %v521 = vpack.c.b16 %v467, %v466
        %v522 = vpack.c.b16 %v469, %v468
        %v523 = vpack.c.b16 %v471, %v470
        %v524 = vpack.c.b16 %v473, %v472
        %v525 = vpack.c.b16 %v475, %v474
        %v526 = vpack.c.b16 %v477, %v476
        %v527 = vpack.c.b16 %v479, %v478
        %v528 = vpack.c.b16 %v481, %v480
        %v529 = vpack.c.b16 %v483, %v482
        %v530 = vpack.c.b16 %v485, %v484
        %v531 = vpack.c.b16 %v487, %v486
        %v532 = vpack.c.b16 %v489, %v488
        %v533 = vpack.c.b16 %v491, %v490
        %v534 = vpack.c.b16 %v493, %v492
        %v535 = vpack.c.b16 %v495, %v494
        %v536 = vpack.c.b16 %v497, %v496
        %v537 = vpack.c.b16 %v499, %v498
        %v538 = vpack.c.b16 %v501, %v500
        %v539 = vpack.c.b16 %v503, %v502
        %v540 = vpack.c.b16 %v505, %v504
        %v541 = vpack.c.b16 %v507, %v506
        %v542 = vpack.c.b16 %v509, %v508
        %v543 = vpack.c.b16 %v511, %v510
        %576 = vmatpush.bf16.msra.mxu0 %v519
        %577 = vmatpush.bf16.msra.mxu0 %v518
        %578 = vmatpush.bf16.msra.mxu0 %v517
        %579 = vmatpush.bf16.msra.mxu0 %v516
        %580 = vmatpush.bf16.msra.mxu0 %v515
        %581 = vmatpush.bf16.msra.mxu0 %v514
        %582 = vmatpush.bf16.msra.mxu0 %v513
        %583 = vmatpush.bf16.msra.mxu0 %v512
        %584 = vmatmul.bf16.gmra.mxu0 %v352
        %v585 = vpop.f32.mrf.mxu0
        %v586 = vadd.f32 0.0, %v585
        %v587 = vpop.f32.mrf.mxu0
        %v588 = vadd.f32 0.0, %v587
        %589 = vmatmul.bf16.gmra.mxu0 %v356
        %v590 = vpop.f32.mrf.mxu0
        %v591 = vadd.f32 0.0, %v590
        %v592 = vpop.f32.mrf.mxu0
        %v593 = vadd.f32 0.0, %v592
        %594 = vmatmul.bf16.gmra.mxu0 %v360
        %v595 = vpop.f32.mrf.mxu0
        %v596 = vadd.f32 0.0, %v595
        %v597 = vpop.f32.mrf.mxu0
        %v598 = vadd.f32 0.0, %v597
        %599 = vmatmul.bf16.gmra.mxu0 %v364
        %v600 = vpop.f32.mrf.mxu0
        %v601 = vadd.f32 0.0, %v600
        %v602 = vpop.f32.mrf.mxu0
        %v603 = vadd.f32 0.0, %v602
        %604 = vdwg.mxu0
        %605 = vmatpush.bf16.msra.mxu0 %v527
        %606 = vmatpush.bf16.msra.mxu0 %v526
        %607 = vmatpush.bf16.msra.mxu0 %v525
        %608 = vmatpush.bf16.msra.mxu0 %v524
        %609 = vmatpush.bf16.msra.mxu0 %v523
        %610 = vmatpush.bf16.msra.mxu0 %v522
        %611 = vmatpush.bf16.msra.mxu0 %v521
        %612 = vmatpush.bf16.msra.mxu0 %v520
        %613 = vmatmul.bf16.gmra.mxu0 %v353
        %v614 = vpop.f32.mrf.mxu0
        %v615 = vadd.f32 %v586, %v614
        %v616 = vpop.f32.mrf.mxu0
        %v617 = vadd.f32 %v588, %v616
        %618 = vmatmul.bf16.gmra.mxu0 %v357
        %v619 = vpop.f32.mrf.mxu0
        %v620 = vadd.f32 %v591, %v619
        %v621 = vpop.f32.mrf.mxu0
        %v622 = vadd.f32 %v593, %v621
        %623 = vmatmul.bf16.gmra.mxu0 %v361
        %v624 = vpop.f32.mrf.mxu0
        %v625 = vadd.f32 %v596, %v624
        %v626 = vpop.f32.mrf.mxu0
        %v627 = vadd.f32 %v598, %v626
        %628 = vmatmul.bf16.gmra.mxu0 %v365
        %v629 = vpop.f32.mrf.mxu0
        %v630 = vadd.f32 %v601, %v629
        %v631 = vpop.f32.mrf.mxu0
        %v632 = vadd.f32 %v603, %v631
        %633 = vdwg.mxu0
        %634 = vmatpush.bf16.msra.mxu0 %v535
        %635 = vmatpush.bf16.msra.mxu0 %v534
        %636 = vmatpush.bf16.msra.mxu0 %v533
        %637 = vmatpush.bf16.msra.mxu0 %v532
        %638 = vmatpush.bf16.msra.mxu0 %v531
        %639 = vmatpush.bf16.msra.mxu0 %v530
        %640 = vmatpush.bf16.msra.mxu0 %v529
        %641 = vmatpush.bf16.msra.mxu0 %v528
        %642 = vmatmul.bf16.gmra.mxu0 %v354
        %v643 = vpop.f32.mrf.mxu0
        %v644 = vadd.f32 %v615, %v643
        %v645 = vpop.f32.mrf.mxu0
        %v646 = vadd.f32 %v617, %v645
        %647 = vmatmul.bf16.gmra.mxu0 %v358
        %v648 = vpop.f32.mrf.mxu0
        %v649 = vadd.f32 %v620, %v648
        %v650 = vpop.f32.mrf.mxu0
        %v651 = vadd.f32 %v622, %v650
        %652 = vmatmul.bf16.gmra.mxu0 %v362
        %v653 = vpop.f32.mrf.mxu0
        %v654 = vadd.f32 %v625, %v653
        %v655 = vpop.f32.mrf.mxu0
        %v656 = vadd.f32 %v627, %v655
        %657 = vmatmul.bf16.gmra.mxu0 %v366
        %v658 = vpop.f32.mrf.mxu0
        %v659 = vadd.f32 %v630, %v658
        %v660 = vpop.f32.mrf.mxu0
        %v661 = vadd.f32 %v632, %v660
        %662 = vdwg.mxu0
        %663 = vmatpush.bf16.msra.mxu0 %v543
        %664 = vmatpush.bf16.msra.mxu0 %v542
        %665 = vmatpush.bf16.msra.mxu0 %v541
        %666 = vmatpush.bf16.msra.mxu0 %v540
        %667 = vmatpush.bf16.msra.mxu0 %v539
        %668 = vmatpush.bf16.msra.mxu0 %v538
        %669 = vmatpush.bf16.msra.mxu0 %v537
        %670 = vmatpush.bf16.msra.mxu0 %v536
        %671 = vmatmul.bf16.gmra.mxu0 %v355
        %v672 = vpop.f32.mrf.mxu0
        %v673 = vadd.f32 %v644, %v672
        %v674 = vpop.f32.mrf.mxu0
        %v675 = vadd.f32 %v646, %v674
        %676 = vmatmul.bf16.gmra.mxu0 %v359
        %v677 = vpop.f32.mrf.mxu0
        %v678 = vadd.f32 %v649, %v677
        %v679 = vpop.f32.mrf.mxu0
        %v680 = vadd.f32 %v651, %v679
        %681 = vmatmul.bf16.gmra.mxu0 %v363
        %v682 = vpop.f32.mrf.mxu0
        %v683 = vadd.f32 %v654, %v682
        %v684 = vpop.f32.mrf.mxu0
        %v685 = vadd.f32 %v656, %v684
        %686 = vmatmul.bf16.gmra.mxu0 %v367
        %v687 = vpop.f32.mrf.mxu0
        %v688 = vadd.f32 %v659, %v687
        %v689 = vpop.f32.mrf.mxu0
        %v690 = vadd.f32 %v661, %v689
        %691 = vdwg.mxu0
        %v692 = vmax.f32 %v673, %v678
        %v693 = vmax.f32 %v675, %v680
        %v694 = vmax.f32 %v683, %v688
        %v695 = vmax.f32 %v685, %v690
        %v696 = vmax.f32 %v692, %v694
        %v697 = vmax.f32 %v693, %v695
        %v698 = vld [vmem:[%s2] sm:$0x1]
        %v700 = vperm.slane %v698, 0
        %v702 = vadd.f32 %v696, %v700
        %v703 = vadd.f32 %v697, %v700
        %v704 = vmax.f32 %v702, 0.0
        %v705 = vmax.f32 %v703, 0.0
        %v706 = vpack.c.bf16 %v704, %v704
        %v707 = vpack.c.bf16 %v705, %v705
        %708 = vst [vmem:[%s222] sm:$0xf] %v706
        %709 = vst [vmem:[%s222 + $0x4] sm:$0xf] %v707
        %s710 = smul.u32 2, %s14
        %p711 = scmp.lt.s32.totalorder %s710, 3
        %s712 = scalar_select %p711, %s710, 3
        %s713 = smul.addr %s712, 4
        %s714 = scalar_lea.vmem %s3, %s713
        // Predicated region
        $region56: #{net_forward.4} parent=50 // pred_check
          %p715 = pneg %p100
        $region57: #{net_forward.4} parent=50 // pred_check_branch
          %717 = sbr.rel (%p715) target = $region59
        $region58: #{net_forward.4} parent=50 // pred_region
          %s718 = smul.u32 2, %s14
        $region59: #{net_forward.4} parent=50 // pred_fallthru
          _
      $region51: #{net_forward.4} parent=5 // pred_fallthru
        _
      %p719 = scmp.le.s32.totalorder 2, %s9
      // Predicated region
      $region60: #{net_forward.4} parent=5 // pred_check
        %p720 = pneg %p719
      $region61: #{net_forward.4} parent=5 // pred_check_branch
        %722 = sbr.rel (%p720) target = $region63
      $region62: #{net_forward.4} parent=5 // pred_region
        %s723 = ssub.s32 %s9, 2
        // Predicated region
        $region64: #{net_forward.4} parent=62 // pred_check
          %p724 = pneg %p106
        $region65: #{net_forward.4} parent=62 // pred_check_branch
          %726 = sbr.rel (%p724) target = $region67
        $region66: #{net_forward.4} parent=62 // pred_region
          %s727 = smul.u32 2, %s15
          %p728 = scmp.lt.s32.totalorder %s727, 3
          %s729 = scalar_select %p728, %s727, 3
          %s730 = smul.addr %s729, 4
          %s731 = scalar_lea.vmem %s3, %s730
        $region67: #{net_forward.4} parent=62 // pred_fallthru
          _
      $region63: #{net_forward.4} parent=5 // pred_fallthru
        _
    $region6: #{net_forward.4} parent=1 // loop_footer
      %s13 = sadd.s32 1, %s9
    $region7: #{net_forward.4} parent=1 // loop_footer_branch
      %8 = sbr.rel target = $region3
    $region8: #{net_forward.4} parent=1 // loop_exit
      _

// kernel: net_forward.5
$region0: #{net_forward.5}
  #allocation0 [shape = 'u32[]', space=smem, size = 0x4, offset = 0x4, fixed_abs, tag = 'smem constant byte address 0x4 - core index']
  #allocation1 [shape = 'u32[72,128]{1,0:T(1,128)}', space=vmem, size = 0x9000, scoped, tag = 'internal scratch']
  %s0 = inlined_call_operand.vmem [shape: bf16[8,2048], index: 0, kind: input, shape index: {}]
  %s1 = inlined_call_operand.vmem [shape: bf16[2048,512], index: 1, kind: input, shape index: {}]
  %s2 = inlined_call_operand.vmem [shape: f32[1,512], index: 2, kind: input, shape index: {}]
  %s3 = inlined_call_operand.vmem [shape: bf16[512,128], index: 3, kind: input, shape index: {}]
  %s4 = inlined_call_operand.vmem [shape: f32[1,128], index: 4, kind: input, shape index: {}]
  %s5 = inlined_call_operand.vmem [shape: f32[8,512], index: 5, kind: output, shape index: {0}]
  %s6 = inlined_call_operand.vmem [shape: f32[8,128], index: 6, kind: output, shape index: {1}]
  %7 = xla_tuple %s5, %s6
  %s8 = sld [smem:[#allocation0]]
  $region38: #{net_forward.5} parent=0
    _
  %s10 = ssub.s32 1, %s8
  %s11 = scalar_select 0, %s10, %s8
  // Predicated region
  $region2: #{net_forward.5} parent=0 // pred_check
    _
  $region3: #{net_forward.5} parent=0 // pred_check_branch
    %13 = sbr.rel (0) target = $region5
  $region4: #{net_forward.5} parent=0 // pred_region
    _
  $region5: #{net_forward.5} parent=0 // pred_fallthru
    _
  // Predicated region
  $region6: #{net_forward.5} parent=0 // pred_check
    _
  $region7: #{net_forward.5} parent=0 // pred_check_branch
    %15 = sbr.rel (0) target = $region9
  $region8: #{net_forward.5} parent=0 // pred_region
    _
  $region9: #{net_forward.5} parent=0 // pred_fallthru
    _
  // Predicated region
  $region10: #{net_forward.5} parent=0 // pred_check
    _
  $region11: #{net_forward.5} parent=0 // pred_check_branch
    %17 = sbr.rel (0) target = $region13
  $region12: #{net_forward.5} parent=0 // pred_region
    _
  $region13: #{net_forward.5} parent=0 // pred_fallthru
    _
  // Predicated region
  $region14: #{net_forward.5} parent=0 // pred_check
    _
  $region15: #{net_forward.5} parent=0 // pred_check_branch
    %19 = sbr.rel (0) target = $region17
  $region16: #{net_forward.5} parent=0 // pred_region
    _
  $region17: #{net_forward.5} parent=0 // pred_fallthru
    _
  // Predicated region
  $region18: #{net_forward.5} parent=0 // pred_check
    _
  $region19: #{net_forward.5} parent=0 // pred_check_branch
    %21 = sbr.rel (0) target = $region21
  $region20: #{net_forward.5} parent=0 // pred_region
    _
  $region21: #{net_forward.5} parent=0 // pred_fallthru
    _
  %v22 = vld [vmem:[%s0] sm:$0xff]
  %v23 = vld [vmem:[%s0 + $0x8] sm:$0xff]
  %v24 = vld [vmem:[%s0 + $0x10] sm:$0xff]
  %v25 = vld [vmem:[%s0 + $0x18] sm:$0xff]
  %v26 = vld [vmem:[%s0 + $0x20] sm:$0xff]
  %v27 = vld [vmem:[%s0 + $0x28] sm:$0xff]
  %v28 = vld [vmem:[%s0 + $0x30] sm:$0xff]
  %v29 = vld [vmem:[%s0 + $0x38] sm:$0xff]
  %v30 = vld [vmem:[%s1] sm:$0xff]
  %v31 = vld [vmem:[%s1 + $0x8] sm:$0xff]
  %v32 = vld [vmem:[%s1 + $0x10] sm:$0xff]
  %v33 = vld [vmem:[%s1 + $0x18] sm:$0xff]
  %v34 = vld [vmem:[%s1 + $0x20] sm:$0xff]
  %v35 = vld [vmem:[%s1 + $0x28] sm:$0xff]
  %v36 = vld [vmem:[%s1 + $0x30] sm:$0xff]
  %v37 = vld [vmem:[%s1 + $0x38] sm:$0xff]
  %v38 = vld [vmem:[%s1 + $0x40] sm:$0xff]
  %v39 = vld [vmem:[%s1 + $0x48] sm:$0xff]
  %v40 = vld [vmem:[%s1 + $0x50] sm:$0xff]
  %v41 = vld [vmem:[%s1 + $0x58] sm:$0xff]
  %v42 = vld [vmem:[%s1 + $0x60] sm:$0xff]
  %v43 = vld [vmem:[%s1 + $0x68] sm:$0xff]
  %v44 = vld [vmem:[%s1 + $0x70] sm:$0xff]
  %v45 = vld [vmem:[%s1 + $0x78] sm:$0xff]
  %v46 = vld [vmem:[%s1 + $0x80] sm:$0xff]
  %v47 = vld [vmem:[%s1 + $0x88] sm:$0xff]
  %v48 = vld [vmem:[%s1 + $0x90] sm:$0xff]
  %v49 = vld [vmem:[%s1 + $0x98] sm:$0xff]
  %v50 = vld [vmem:[%s1 + $0xa0] sm:$0xff]
  %v51 = vld [vmem:[%s1 + $0xa8] sm:$0xff]
  %v52 = vld [vmem:[%s1 + $0xb0] sm:$0xff]
  %v53 = vld [vmem:[%s1 + $0xb8] sm:$0xff]
  %v54 = vld [vmem:[%s1 + $0xc0] sm:$0xff]
  %v55 = vld [vmem:[%s1 + $0xc8] sm:$0xff]
  %v56 = vld [vmem:[%s1 + $0xd0] sm:$0xff]
  %v57 = vld [vmem:[%s1 + $0xd8] sm:$0xff]
  %v58 = vld [vmem:[%s1 + $0xe0] sm:$0xff]
  %v59 = vld [vmem:[%s1 + $0xe8] sm:$0xff]
  %v60 = vld [vmem:[%s1 + $0xf0] sm:$0xff]
  %v61 = vld [vmem:[%s1 + $0xf8] sm:$0xff]
  %v62 = vld [vmem:[%s1 + $0x100] sm:$0xff]
  %v63 = vld [vmem:[%s1 + $0x108] sm:$0xff]
  %v64 = vld [vmem:[%s1 + $0x110] sm:$0xff]
  %v65 = vld [vmem:[%s1 + $0x118] sm:$0xff]
  %v66 = vld [vmem:[%s1 + $0x120] sm:$0xff]
  %v67 = vld [vmem:[%s1 + $0x128] sm:$0xff]
  %v68 = vld [vmem:[%s1 + $0x130] sm:$0xff]
  %v69 = vld [vmem:[%s1 + $0x138] sm:$0xff]
  %v70 = vld [vmem:[%s1 + $0x140] sm:$0xff]
  %v71 = vld [vmem:[%s1 + $0x148] sm:$0xff]
  %v72 = vld [vmem:[%s1 + $0x150] sm:$0xff]
  %v73 = vld [vmem:[%s1 + $0x158] sm:$0xff]
  %v74 = vld [vmem:[%s1 + $0x160] sm:$0xff]
  %v75 = vld [vmem:[%s1 + $0x168] sm:$0xff]
  %v76 = vld [vmem:[%s1 + $0x170] sm:$0xff]
  %v77 = vld [vmem:[%s1 + $0x178] sm:$0xff]
  %v78 = vld [vmem:[%s1 + $0x180] sm:$0xff]
  %v79 = vld [vmem:[%s1 + $0x188] sm:$0xff]
  %v80 = vld [vmem:[%s1 + $0x190] sm:$0xff]
  %v81 = vld [vmem:[%s1 + $0x198] sm:$0xff]
  %v82 = vld [vmem:[%s1 + $0x1a0] sm:$0xff]
  %v83 = vld [vmem:[%s1 + $0x1a8] sm:$0xff]
  %v84 = vld [vmem:[%s1 + $0x1b0] sm:$0xff]
  %v85 = vld [vmem:[%s1 + $0x1b8] sm:$0xff]
  %v86 = vld [vmem:[%s1 + $0x1c0] sm:$0xff]
  %v87 = vld [vmem:[%s1 + $0x1c8] sm:$0xff]
  %v88 = vld [vmem:[%s1 + $0x1d0] sm:$0xff]
  %v89 = vld [vmem:[%s1 + $0x1d8] sm:$0xff]
  %v90 = vld [vmem:[%s1 + $0x1e0] sm:$0xff]
  %v91 = vld [vmem:[%s1 + $0x1e8] sm:$0xff]
  %v92 = vld [vmem:[%s1 + $0x1f0] sm:$0xff]
  %v93 = vld [vmem:[%s1 + $0x1f8] sm:$0xff]
  %v94 = vld [vmem:[%s1 + $0x200] sm:$0xff]
  %v95 = vld [vmem:[%s1 + $0x208] sm:$0xff]
  %v96 = vld [vmem:[%s1 + $0x210] sm:$0xff]
  %v97 = vld [vmem:[%s1 + $0x218] sm:$0xff]
  %v98 = vld [vmem:[%s1 + $0x220] sm:$0xff]
  %v99 = vld [vmem:[%s1 + $0x228] sm:$0xff]
  %v100 = vld [vmem:[%s1 + $0x230] sm:$0xff]
  %v101 = vld [vmem:[%s1 + $0x238] sm:$0xff]
  %v102 = vld [vmem:[%s1 + $0x240] sm:$0xff]
  %v103 = vld [vmem:[%s1 + $0x248] sm:$0xff]
  %v104 = vld [vmem:[%s1 + $0x250] sm:$0xff]
  %v105 = vld [vmem:[%s1 + $0x258] sm:$0xff]
  %v106 = vld [vmem:[%s1 + $0x260] sm:$0xff]
  %v107 = vld [vmem:[%s1 + $0x268] sm:$0xff]
  %v108 = vld [vmem:[%s1 + $0x270] sm:$0xff]
  %v109 = vld [vmem:[%s1 + $0x278] sm:$0xff]
  %v110 = vld [vmem:[%s1 + $0x280] sm:$0xff]
  %v111 = vld [vmem:[%s1 + $0x288] sm:$0xff]
  %v112 = vld [vmem:[%s1 + $0x290] sm:$0xff]
  %v113 = vld [vmem:[%s1 + $0x298] sm:$0xff]
  %v114 = vld [vmem:[%s1 + $0x2a0] sm:$0xff]
  %v115 = vld [vmem:[%s1 + $0x2a8] sm:$0xff]
  %v116 = vld [vmem:[%s1 + $0x2b0] sm:$0xff]
  %v117 = vld [vmem:[%s1 + $0x2b8] sm:$0xff]
  %v118 = vld [vmem:[%s1 + $0x2c0] sm:$0xff]
  %v119 = vld [vmem:[%s1 + $0x2c8] sm:$0xff]
  %v120 = vld [vmem:[%s1 + $0x2d0] sm:$0xff]
  %v121 = vld [vmem:[%s1 + $0x2d8] sm:$0xff]
  %v122 = vld [vmem:[%s1 + $0x2e0] sm:$0xff]
  %v123 = vld [vmem:[%s1 + $0x2e8] sm:$0xff]
  %v124 = vld [vmem:[%s1 + $0x2f0] sm:$0xff]
  %v125 = vld [vmem:[%s1 + $0x2f8] sm:$0xff]
  %v126 = vld [vmem:[%s1 + $0x300] sm:$0xff]
  %v127 = vld [vmem:[%s1 + $0x308] sm:$0xff]
  %v128 = vld [vmem:[%s1 + $0x310] sm:$0xff]
  %v129 = vld [vmem:[%s1 + $0x318] sm:$0xff]
  %v130 = vld [vmem:[%s1 + $0x320] sm:$0xff]
  %v131 = vld [vmem:[%s1 + $0x328] sm:$0xff]
  %v132 = vld [vmem:[%s1 + $0x330] sm:$0xff]
  %v133 = vld [vmem:[%s1 + $0x338] sm:$0xff]
  %v134 = vld [vmem:[%s1 + $0x340] sm:$0xff]
  %v135 = vld [vmem:[%s1 + $0x348] sm:$0xff]
  %v136 = vld [vmem:[%s1 + $0x350] sm:$0xff]
  %v137 = vld [vmem:[%s1 + $0x358] sm:$0xff]
  %v138 = vld [vmem:[%s1 + $0x360] sm:$0xff]
  %v139 = vld [vmem:[%s1 + $0x368] sm:$0xff]
  %v140 = vld [vmem:[%s1 + $0x370] sm:$0xff]
  %v141 = vld [vmem:[%s1 + $0x378] sm:$0xff]
  %v142 = vld [vmem:[%s1 + $0x380] sm:$0xff]
  %v143 = vld [vmem:[%s1 + $0x388] sm:$0xff]
  %v144 = vld [vmem:[%s1 + $0x390] sm:$0xff]
  %v145 = vld [vmem:[%s1 + $0x398] sm:$0xff]
  %v146 = vld [vmem:[%s1 + $0x3a0] sm:$0xff]
  %v147 = vld [vmem:[%s1 + $0x3a8] sm:$0xff]
  %v148 = vld [vmem:[%s1 + $0x3b0] sm:$0xff]
  %v149 = vld [vmem:[%s1 + $0x3b8] sm:$0xff]
  %v150 = vld [vmem:[%s1 + $0x3c0] sm:$0xff]
  %v151 = vld [vmem:[%s1 + $0x3c8] sm:$0xff]
  %v152 = vld [vmem:[%s1 + $0x3d0] sm:$0xff]
  %v153 = vld [vmem:[%s1 + $0x3d8] sm:$0xff]
  %v154 = vld [vmem:[%s1 + $0x3e0] sm:$0xff]
  %v155 = vld [vmem:[%s1 + $0x3e8] sm:$0xff]
  %v156 = vld [vmem:[%s1 + $0x3f0] sm:$0xff]
  %v157 = vld [vmem:[%s1 + $0x3f8] sm:$0xff]
  %v158 = vld [vmem:[%s1 + $0x400] sm:$0xff]
  %v159 = vld [vmem:[%s1 + $0x408] sm:$0xff]
  %v160 = vld [vmem:[%s1 + $0x410] sm:$0xff]
  %v161 = vld [vmem:[%s1 + $0x418] sm:$0xff]
  %v162 = vld [vmem:[%s1 + $0x420] sm:$0xff]
  %v163 = vld [vmem:[%s1 + $0x428] sm:$0xff]
  %v164 = vld [vmem:[%s1 + $0x430] sm:$0xff]
  %v165 = vld [vmem:[%s1 + $0x438] sm:$0xff]
  %v166 = vld [vmem:[%s1 + $0x440] sm:$0xff]
  %v167 = vld [vmem:[%s1 + $0x448] sm:$0xff]
  %v168 = vld [vmem:[%s1 + $0x450] sm:$0xff]
  %v169 = vld [vmem:[%s1 + $0x458] sm:$0xff]
  %v170 = vld [vmem:[%s1 + $0x460] sm:$0xff]
  %v171 = vld [vmem:[%s1 + $0x468] sm:$0xff]
  %v172 = vld [vmem:[%s1 + $0x470] sm:$0xff]
  %v173 = vld [vmem:[%s1 + $0x478] sm:$0xff]
  %v174 = vld [vmem:[%s1 + $0x480] sm:$0xff]
  %v175 = vld [vmem:[%s1 + $0x488] sm:$0xff]
  %v176 = vld [vmem:[%s1 + $0x490] sm:$0xff]
  %v177 = vld [vmem:[%s1 + $0x498] sm:$0xff]
  %v178 = vld [vmem:[%s1 + $0x4a0] sm:$0xff]
  %v179 = vld [vmem:[%s1 + $0x4a8] sm:$0xff]
  %v180 = vld [vmem:[%s1 + $0x4b0] sm:$0xff]
  %v181 = vld [vmem:[%s1 + $0x4b8] sm:$0xff]
  %v182 = vld [vmem:[%s1 + $0x4c0] sm:$0xff]
  %v183 = vld [vmem:[%s1 + $0x4c8] sm:$0xff]
  %v184 = vld [vmem:[%s1 + $0x4d0] sm:$0xff]
  %v185 = vld [vmem:[%s1 + $0x4d8] sm:$0xff]
  %v186 = vld [vmem:[%s1 + $0x4e0] sm:$0xff]
  %v187 = vld [vmem:[%s1 + $0x4e8] sm:$0xff]
  %v188 = vld [vmem:[%s1 + $0x4f0] sm:$0xff]
  %v189 = vld [vmem:[%s1 + $0x4f8] sm:$0xff]
  %v190 = vld [vmem:[%s1 + $0x500] sm:$0xff]
  %v191 = vld [vmem:[%s1 + $0x508] sm:$0xff]
  %v192 = vld [vmem:[%s1 + $0x510] sm:$0xff]
  %v193 = vld [vmem:[%s1 + $0x518] sm:$0xff]
  %v194 = vld [vmem:[%s1 + $0x520] sm:$0xff]
  %v195 = vld [vmem:[%s1 + $0x528] sm:$0xff]
  %v196 = vld [vmem:[%s1 + $0x530] sm:$0xff]
  %v197 = vld [vmem:[%s1 + $0x538] sm:$0xff]
  %v198 = vld [vmem:[%s1 + $0x540] sm:$0xff]
  %v199 = vld [vmem:[%s1 + $0x548] sm:$0xff]
  %v200 = vld [vmem:[%s1 + $0x550] sm:$0xff]
  %v201 = vld [vmem:[%s1 + $0x558] sm:$0xff]
  %v202 = vld [vmem:[%s1 + $0x560] sm:$0xff]
  %v203 = vld [vmem:[%s1 + $0x568] sm:$0xff]
  %v204 = vld [vmem:[%s1 + $0x570] sm:$0xff]
  %v205 = vld [vmem:[%s1 + $0x578] sm:$0xff]
  %v206 = vld [vmem:[%s1 + $0x580] sm:$0xff]
  %v207 = vld [vmem:[%s1 + $0x588] sm:$0xff]
  %v208 = vld [vmem:[%s1 + $0x590] sm:$0xff]
  %v209 = vld [vmem:[%s1 + $0x598] sm:$0xff]
  %v210 = vld [vmem:[%s1 + $0x5a0] sm:$0xff]
  %v211 = vld [vmem:[%s1 + $0x5a8] sm:$0xff]
  %v212 = vld [vmem:[%s1 + $0x5b0] sm:$0xff]
  %v213 = vld [vmem:[%s1 + $0x5b8] sm:$0xff]
  %v214 = vld [vmem:[%s1 + $0x5c0] sm:$0xff]
  %v215 = vld [vmem:[%s1 + $0x5c8] sm:$0xff]
  %v216 = vld [vmem:[%s1 + $0x5d0] sm:$0xff]
  %v217 = vld [vmem:[%s1 + $0x5d8] sm:$0xff]
  %v218 = vld [vmem:[%s1 + $0x5e0] sm:$0xff]
  %v219 = vld [vmem:[%s1 + $0x5e8] sm:$0xff]
  %v220 = vld [vmem:[%s1 + $0x5f0] sm:$0xff]
  %v221 = vld [vmem:[%s1 + $0x5f8] sm:$0xff]
  %v222 = vld [vmem:[%s1 + $0x600] sm:$0xff]
  %v223 = vld [vmem:[%s1 + $0x608] sm:$0xff]
  %v224 = vld [vmem:[%s1 + $0x610] sm:$0xff]
  %v225 = vld [vmem:[%s1 + $0x618] sm:$0xff]
  %v226 = vld [vmem:[%s1 + $0x620] sm:$0xff]
  %v227 = vld [vmem:[%s1 + $0x628] sm:$0xff]
  %v228 = vld [vmem:[%s1 + $0x630] sm:$0xff]
  %v229 = vld [vmem:[%s1 + $0x638] sm:$0xff]
  %v230 = vld [vmem:[%s1 + $0x640] sm:$0xff]
  %v231 = vld [vmem:[%s1 + $0x648] sm:$0xff]
  %v232 = vld [vmem:[%s1 + $0x650] sm:$0xff]
  %v233 = vld [vmem:[%s1 + $0x658] sm:$0xff]
  %v234 = vld [vmem:[%s1 + $0x660] sm:$0xff]
  %v235 = vld [vmem:[%s1 + $0x668] sm:$0xff]
  %v236 = vld [vmem:[%s1 + $0x670] sm:$0xff]
  %v237 = vld [vmem:[%s1 + $0x678] sm:$0xff]
  %v238 = vld [vmem:[%s1 + $0x680] sm:$0xff]
  %v239 = vld [vmem:[%s1 + $0x688] sm:$0xff]
  %v240 = vld [vmem:[%s1 + $0x690] sm:$0xff]
  %v241 = vld [vmem:[%s1 + $0x698] sm:$0xff]
  %v242 = vld [vmem:[%s1 + $0x6a0] sm:$0xff]
  %v243 = vld [vmem:[%s1 + $0x6a8] sm:$0xff]
  %v244 = vld [vmem:[%s1 + $0x6b0] sm:$0xff]
  %v245 = vld [vmem:[%s1 + $0x6b8] sm:$0xff]
  %v246 = vld [vmem:[%s1 + $0x6c0] sm:$0xff]
  %v247 = vld [vmem:[%s1 + $0x6c8] sm:$0xff]
  %v248 = vld [vmem:[%s1 + $0x6d0] sm:$0xff]
  %v249 = vld [vmem:[%s1 + $0x6d8] sm:$0xff]
  %v250 = vld [vmem:[%s1 + $0x6e0] sm:$0xff]
  %v251 = vld [vmem:[%s1 + $0x6e8] sm:$0xff]
  %v252 = vld [vmem:[%s1 + $0x6f0] sm:$0xff]
  %v253 = vld [vmem:[%s1 + $0x6f8] sm:$0xff]
  %v254 = vld [vmem:[%s1 + $0x700] sm:$0xff]
  %v255 = vld [vmem:[%s1 + $0x708] sm:$0xff]
  %v256 = vld [vmem:[%s1 + $0x710] sm:$0xff]
  %v257 = vld [vmem:[%s1 + $0x718] sm:$0xff]
  %v258 = vld [vmem:[%s1 + $0x720] sm:$0xff]
  %v259 = vld [vmem:[%s1 + $0x728] sm:$0xff]
  %v260 = vld [vmem:[%s1 + $0x730] sm:$0xff]
  %v261 = vld [vmem:[%s1 + $0x738] sm:$0xff]
  %v262 = vld [vmem:[%s1 + $0x740] sm:$0xff]
  %v263 = vld [vmem:[%s1 + $0x748] sm:$0xff]
  %v264 = vld [vmem:[%s1 + $0x750] sm:$0xff]
  %v265 = vld [vmem:[%s1 + $0x758] sm:$0xff]
  %v266 = vld [vmem:[%s1 + $0x760] sm:$0xff]
  %v267 = vld [vmem:[%s1 + $0x768] sm:$0xff]
  %v268 = vld [vmem:[%s1 + $0x770] sm:$0xff]
  %v269 = vld [vmem:[%s1 + $0x778] sm:$0xff]
  %v270 = vld [vmem:[%s1 + $0x780] sm:$0xff]
  %v271 = vld [vmem:[%s1 + $0x788] sm:$0xff]
  %v272 = vld [vmem:[%s1 + $0x790] sm:$0xff]
  %v273 = vld [vmem:[%s1 + $0x798] sm:$0xff]
  %v274 = vld [vmem:[%s1 + $0x7a0] sm:$0xff]
  %v275 = vld [vmem:[%s1 + $0x7a8] sm:$0xff]
  %v276 = vld [vmem:[%s1 + $0x7b0] sm:$0xff]
  %v277 = vld [vmem:[%s1 + $0x7b8] sm:$0xff]
  %v278 = vld [vmem:[%s1 + $0x7c0] sm:$0xff]
  %v279 = vld [vmem:[%s1 + $0x7c8] sm:$0xff]
  %v280 = vld [vmem:[%s1 + $0x7d0] sm:$0xff]
  %v281 = vld [vmem:[%s1 + $0x7d8] sm:$0xff]
  %v282 = vld [vmem:[%s1 + $0x7e0] sm:$0xff]
  %v283 = vld [vmem:[%s1 + $0x7e8] sm:$0xff]
  %v284 = vld [vmem:[%s1 + $0x7f0] sm:$0xff]
  %v285 = vld [vmem:[%s1 + $0x7f8] sm:$0xff]
  %v286 = vld [vmem:[%s1 + $0x800] sm:$0xff]
  %v287 = vld [vmem:[%s1 + $0x808] sm:$0xff]
  %v288 = vld [vmem:[%s1 + $0x810] sm:$0xff]
  %v289 = vld [vmem:[%s1 + $0x818] sm:$0xff]
  %v290 = vld [vmem:[%s1 + $0x820] sm:$0xff]
  %v291 = vld [vmem:[%s1 + $0x828] sm:$0xff]
  %v292 = vld [vmem:[%s1 + $0x830] sm:$0xff]
  %v293 = vld [vmem:[%s1 + $0x838] sm:$0xff]
  %v294 = vld [vmem:[%s1 + $0x840] sm:$0xff]
  %v295 = vld [vmem:[%s1 + $0x848] sm:$0xff]
  %v296 = vld [vmem:[%s1 + $0x850] sm:$0xff]
  %v297 = vld [vmem:[%s1 + $0x858] sm:$0xff]
  %v298 = vld [vmem:[%s1 + $0x860] sm:$0xff]
  %v299 = vld [vmem:[%s1 + $0x868] sm:$0xff]
  %v300 = vld [vmem:[%s1 + $0x870] sm:$0xff]
  %v301 = vld [vmem:[%s1 + $0x878] sm:$0xff]
  %v302 = vld [vmem:[%s1 + $0x880] sm:$0xff]
  %v303 = vld [vmem:[%s1 + $0x888] sm:$0xff]
  %v304 = vld [vmem:[%s1 + $0x890] sm:$0xff]
  %v305 = vld [vmem:[%s1 + $0x898] sm:$0xff]
  %v306 = vld [vmem:[%s1 + $0x8a0] sm:$0xff]
  %v307 = vld [vmem:[%s1 + $0x8a8] sm:$0xff]
  %v308 = vld [vmem:[%s1 + $0x8b0] sm:$0xff]
  %v309 = vld [vmem:[%s1 + $0x8b8] sm:$0xff]
  %v310 = vld [vmem:[%s1 + $0x8c0] sm:$0xff]
  %v311 = vld [vmem:[%s1 + $0x8c8] sm:$0xff]
  %v312 = vld [vmem:[%s1 + $0x8d0] sm:$0xff]
  %v313 = vld [vmem:[%s1 + $0x8d8] sm:$0xff]
  %v314 = vld [vmem:[%s1 + $0x8e0] sm:$0xff]
  %v315 = vld [vmem:[%s1 + $0x8e8] sm:$0xff]
  %v316 = vld [vmem:[%s1 + $0x8f0] sm:$0xff]
  %v317 = vld [vmem:[%s1 + $0x8f8] sm:$0xff]
  %v318 = vld [vmem:[%s1 + $0x900] sm:$0xff]
  %v319 = vld [vmem:[%s1 + $0x908] sm:$0xff]
  %v320 = vld [vmem:[%s1 + $0x910] sm:$0xff]
  %v321 = vld [vmem:[%s1 + $0x918] sm:$0xff]
  %v322 = vld [vmem:[%s1 + $0x920] sm:$0xff]
  %v323 = vld [vmem:[%s1 + $0x928] sm:$0xff]
  %v324 = vld [vmem:[%s1 + $0x930] sm:$0xff]
  %v325 = vld [vmem:[%s1 + $0x938] sm:$0xff]
  %v326 = vld [vmem:[%s1 + $0x940] sm:$0xff]
  %v327 = vld [vmem:[%s1 + $0x948] sm:$0xff]
  %v328 = vld [vmem:[%s1 + $0x950] sm:$0xff]
  %v329 = vld [vmem:[%s1 + $0x958] sm:$0xff]
  %v330 = vld [vmem:[%s1 + $0x960] sm:$0xff]
  %v331 = vld [vmem:[%s1 + $0x968] sm:$0xff]
  %v332 = vld [vmem:[%s1 + $0x970] sm:$0xff]
  %v333 = vld [vmem:[%s1 + $0x978] sm:$0xff]
  %v334 = vld [vmem:[%s1 + $0x980] sm:$0xff]
  %v335 = vld [vmem:[%s1 + $0x988] sm:$0xff]
  %v336 = vld [vmem:[%s1 + $0x990] sm:$0xff]
  %v337 = vld [vmem:[%s1 + $0x998] sm:$0xff]
  %v338 = vld [vmem:[%s1 + $0x9a0] sm:$0xff]
  %v339 = vld [vmem:[%s1 + $0x9a8] sm:$0xff]
  %v340 = vld [vmem:[%s1 + $0x9b0] sm:$0xff]
  %v341 = vld [vmem:[%s1 + $0x9b8] sm:$0xff]
  %v342 = vld [vmem:[%s1 + $0x9c0] sm:$0xff]
  %v343 = vld [vmem:[%s1 + $0x9c8] sm:$0xff]
  %v344 = vld [vmem:[%s1 + $0x9d0] sm:$0xff]
  %v345 = vld [vmem:[%s1 + $0x9d8] sm:$0xff]
  %v346 = vld [vmem:[%s1 + $0x9e0] sm:$0xff]
  %v347 = vld [vmem:[%s1 + $0x9e8] sm:$0xff]
  %v348 = vld [vmem:[%s1 + $0x9f0] sm:$0xff]
  %v349 = vld [vmem:[%s1 + $0x9f8] sm:$0xff]
  %v350 = vld [vmem:[%s1 + $0xa00] sm:$0xff]
  %v351 = vld [vmem:[%s1 + $0xa08] sm:$0xff]
  %v352 = vld [vmem:[%s1 + $0xa10] sm:$0xff]
  %v353 = vld [vmem:[%s1 + $0xa18] sm:$0xff]
  %v354 = vld [vmem:[%s1 + $0xa20] sm:$0xff]
  %v355 = vld [vmem:[%s1 + $0xa28] sm:$0xff]
  %v356 = vld [vmem:[%s1 + $0xa30] sm:$0xff]
  %v357 = vld [vmem:[%s1 + $0xa38] sm:$0xff]
  %v358 = vld [vmem:[%s1 + $0xa40] sm:$0xff]
  %v359 = vld [vmem:[%s1 + $0xa48] sm:$0xff]
  %v360 = vld [vmem:[%s1 + $0xa50] sm:$0xff]
  %v361 = vld [vmem:[%s1 + $0xa58] sm:$0xff]
  %v362 = vld [vmem:[%s1 + $0xa60] sm:$0xff]
  %v363 = vld [vmem:[%s1 + $0xa68] sm:$0xff]
  %v364 = vld [vmem:[%s1 + $0xa70] sm:$0xff]
  %v365 = vld [vmem:[%s1 + $0xa78] sm:$0xff]
  %v366 = vld [vmem:[%s1 + $0xa80] sm:$0xff]
  %v367 = vld [vmem:[%s1 + $0xa88] sm:$0xff]
  %v368 = vld [vmem:[%s1 + $0xa90] sm:$0xff]
  %v369 = vld [vmem:[%s1 + $0xa98] sm:$0xff]
  %v370 = vld [vmem:[%s1 + $0xaa0] sm:$0xff]
  %v371 = vld [vmem:[%s1 + $0xaa8] sm:$0xff]
  %v372 = vld [vmem:[%s1 + $0xab0] sm:$0xff]
  %v373 = vld [vmem:[%s1 + $0xab8] sm:$0xff]
  %v374 = vld [vmem:[%s1 + $0xac0] sm:$0xff]
  %v375 = vld [vmem:[%s1 + $0xac8] sm:$0xff]
  %v376 = vld [vmem:[%s1 + $0xad0] sm:$0xff]
  %v377 = vld [vmem:[%s1 + $0xad8] sm:$0xff]
  %v378 = vld [vmem:[%s1 + $0xae0] sm:$0xff]
  %v379 = vld [vmem:[%s1 + $0xae8] sm:$0xff]
  %v380 = vld [vmem:[%s1 + $0xaf0] sm:$0xff]
  %v381 = vld [vmem:[%s1 + $0xaf8] sm:$0xff]
  %v382 = vld [vmem:[%s1 + $0xb00] sm:$0xff]
  %v383 = vld [vmem:[%s1 + $0xb08] sm:$0xff]
  %v384 = vld [vmem:[%s1 + $0xb10] sm:$0xff]
  %v385 = vld [vmem:[%s1 + $0xb18] sm:$0xff]
  %v386 = vld [vmem:[%s1 + $0xb20] sm:$0xff]
  %v387 = vld [vmem:[%s1 + $0xb28] sm:$0xff]
  %v388 = vld [vmem:[%s1 + $0xb30] sm:$0xff]
  %v389 = vld [vmem:[%s1 + $0xb38] sm:$0xff]
  %v390 = vld [vmem:[%s1 + $0xb40] sm:$0xff]
  %v391 = vld [vmem:[%s1 + $0xb48] sm:$0xff]
  %v392 = vld [vmem:[%s1 + $0xb50] sm:$0xff]
  %v393 = vld [vmem:[%s1 + $0xb58] sm:$0xff]
  %v394 = vld [vmem:[%s1 + $0xb60] sm:$0xff]
  %v395 = vld [vmem:[%s1 + $0xb68] sm:$0xff]
  %v396 = vld [vmem:[%s1 + $0xb70] sm:$0xff]
  %v397 = vld [vmem:[%s1 + $0xb78] sm:$0xff]
  %v398 = vld [vmem:[%s1 + $0xb80] sm:$0xff]
  %v399 = vld [vmem:[%s1 + $0xb88] sm:$0xff]
  %v400 = vld [vmem:[%s1 + $0xb90] sm:$0xff]
  %v401 = vld [vmem:[%s1 + $0xb98] sm:$0xff]
  %v402 = vld [vmem:[%s1 + $0xba0] sm:$0xff]
  %v403 = vld [vmem:[%s1 + $0xba8] sm:$0xff]
  %v404 = vld [vmem:[%s1 + $0xbb0] sm:$0xff]
  %v405 = vld [vmem:[%s1 + $0xbb8] sm:$0xff]
  %v406 = vld [vmem:[%s1 + $0xbc0] sm:$0xff]
  %v407 = vld [vmem:[%s1 + $0xbc8] sm:$0xff]
  %v408 = vld [vmem:[%s1 + $0xbd0] sm:$0xff]
  %v409 = vld [vmem:[%s1 + $0xbd8] sm:$0xff]
  %v410 = vld [vmem:[%s1 + $0xbe0] sm:$0xff]
  %v411 = vld [vmem:[%s1 + $0xbe8] sm:$0xff]
  %v412 = vld [vmem:[%s1 + $0xbf0] sm:$0xff]
  %v413 = vld [vmem:[%s1 + $0xbf8] sm:$0xff]
  %v414 = vld [vmem:[%s1 + $0xc00] sm:$0xff]
  %v415 = vld [vmem:[%s1 + $0xc08] sm:$0xff]
  %v416 = vld [vmem:[%s1 + $0xc10] sm:$0xff]
  %v417 = vld [vmem:[%s1 + $0xc18] sm:$0xff]
  %v418 = vld [vmem:[%s1 + $0xc20] sm:$0xff]
  %v419 = vld [vmem:[%s1 + $0xc28] sm:$0xff]
  %v420 = vld [vmem:[%s1 + $0xc30] sm:$0xff]
  %v421 = vld [vmem:[%s1 + $0xc38] sm:$0xff]
  %v422 = vld [vmem:[%s1 + $0xc40] sm:$0xff]
  %v423 = vld [vmem:[%s1 + $0xc48] sm:$0xff]
  %v424 = vld [vmem:[%s1 + $0xc50] sm:$0xff]
  %v425 = vld [vmem:[%s1 + $0xc58] sm:$0xff]
  %v426 = vld [vmem:[%s1 + $0xc60] sm:$0xff]
  %v427 = vld [vmem:[%s1 + $0xc68] sm:$0xff]
  %v428 = vld [vmem:[%s1 + $0xc70] sm:$0xff]
  %v429 = vld [vmem:[%s1 + $0xc78] sm:$0xff]
  %v430 = vld [vmem:[%s1 + $0xc80] sm:$0xff]
  %v431 = vld [vmem:[%s1 + $0xc88] sm:$0xff]
  %v432 = vld [vmem:[%s1 + $0xc90] sm:$0xff]
  %v433 = vld [vmem:[%s1 + $0xc98] sm:$0xff]
  %v434 = vld [vmem:[%s1 + $0xca0] sm:$0xff]
  %v435 = vld [vmem:[%s1 + $0xca8] sm:$0xff]
  %v436 = vld [vmem:[%s1 + $0xcb0] sm:$0xff]
  %v437 = vld [vmem:[%s1 + $0xcb8] sm:$0xff]
  %v438 = vld [vmem:[%s1 + $0xcc0] sm:$0xff]
  %v439 = vld [vmem:[%s1 + $0xcc8] sm:$0xff]
  %v440 = vld [vmem:[%s1 + $0xcd0] sm:$0xff]
  %v441 = vld [vmem:[%s1 + $0xcd8] sm:$0xff]
  %v442 = vld [vmem:[%s1 + $0xce0] sm:$0xff]
  %v443 = vld [vmem:[%s1 + $0xce8] sm:$0xff]
  %v444 = vld [vmem:[%s1 + $0xcf0] sm:$0xff]
  %v445 = vld [vmem:[%s1 + $0xcf8] sm:$0xff]
  %v446 = vld [vmem:[%s1 + $0xd00] sm:$0xff]
  %v447 = vld [vmem:[%s1 + $0xd08] sm:$0xff]
  %v448 = vld [vmem:[%s1 + $0xd10] sm:$0xff]
  %v449 = vld [vmem:[%s1 + $0xd18] sm:$0xff]
  %v450 = vld [vmem:[%s1 + $0xd20] sm:$0xff]
  %v451 = vld [vmem:[%s1 + $0xd28] sm:$0xff]
  %v452 = vld [vmem:[%s1 + $0xd30] sm:$0xff]
  %v453 = vld [vmem:[%s1 + $0xd38] sm:$0xff]
  %v454 = vld [vmem:[%s1 + $0xd40] sm:$0xff]
  %v455 = vld [vmem:[%s1 + $0xd48] sm:$0xff]
  %v456 = vld [vmem:[%s1 + $0xd50] sm:$0xff]
  %v457 = vld [vmem:[%s1 + $0xd58] sm:$0xff]
  %v458 = vld [vmem:[%s1 + $0xd60] sm:$0xff]
  %v459 = vld [vmem:[%s1 + $0xd68] sm:$0xff]
  %v460 = vld [vmem:[%s1 + $0xd70] sm:$0xff]
  %v461 = vld [vmem:[%s1 + $0xd78] sm:$0xff]
  %v462 = vld [vmem:[%s1 + $0xd80] sm:$0xff]
  %v463 = vld [vmem:[%s1 + $0xd88] sm:$0xff]
  %v464 = vld [vmem:[%s1 + $0xd90] sm:$0xff]
  %v465 = vld [vmem:[%s1 + $0xd98] sm:$0xff]
  %v466 = vld [vmem:[%s1 + $0xda0] sm:$0xff]
  %v467 = vld [vmem:[%s1 + $0xda8] sm:$0xff]
  %v468 = vld [vmem:[%s1 + $0xdb0] sm:$0xff]
  %v469 = vld [vmem:[%s1 + $0xdb8] sm:$0xff]
  %v470 = vld [vmem:[%s1 + $0xdc0] sm:$0xff]
  %v471 = vld [vmem:[%s1 + $0xdc8] sm:$0xff]
  %v472 = vld [vmem:[%s1 + $0xdd0] sm:$0xff]
  %v473 = vld [vmem:[%s1 + $0xdd8] sm:$0xff]
  %v474 = vld [vmem:[%s1 + $0xde0] sm:$0xff]
  %v475 = vld [vmem:[%s1 + $0xde8] sm:$0xff]
  %v476 = vld [vmem:[%s1 + $0xdf0] sm:$0xff]
  %v477 = vld [vmem:[%s1 + $0xdf8] sm:$0xff]
  %v478 = vld [vmem:[%s1 + $0xe00] sm:$0xff]
  %v479 = vld [vmem:[%s1 + $0xe08] sm:$0xff]
  %v480 = vld [vmem:[%s1 + $0xe10] sm:$0xff]
  %v481 = vld [vmem:[%s1 + $0xe18] sm:$0xff]
  %v482 = vld [vmem:[%s1 + $0xe20] sm:$0xff]
  %v483 = vld [vmem:[%s1 + $0xe28] sm:$0xff]
  %v484 = vld [vmem:[%s1 + $0xe30] sm:$0xff]
  %v485 = vld [vmem:[%s1 + $0xe38] sm:$0xff]
  %v486 = vld [vmem:[%s1 + $0xe40] sm:$0xff]
  %v487 = vld [vmem:[%s1 + $0xe48] sm:$0xff]
  %v488 = vld [vmem:[%s1 + $0xe50] sm:$0xff]
  %v489 = vld [vmem:[%s1 + $0xe58] sm:$0xff]
  %v490 = vld [vmem:[%s1 + $0xe60] sm:$0xff]
  %v491 = vld [vmem:[%s1 + $0xe68] sm:$0xff]
  %v492 = vld [vmem:[%s1 + $0xe70] sm:$0xff]
  %v493 = vld [vmem:[%s1 + $0xe78] sm:$0xff]
  %v494 = vld [vmem:[%s1 + $0xe80] sm:$0xff]
  %v495 = vld [vmem:[%s1 + $0xe88] sm:$0xff]
  %v496 = vld [vmem:[%s1 + $0xe90] sm:$0xff]
  %v497 = vld [vmem:[%s1 + $0xe98] sm:$0xff]
  %v498 = vld [vmem:[%s1 + $0xea0] sm:$0xff]
  %v499 = vld [vmem:[%s1 + $0xea8] sm:$0xff]
  %v500 = vld [vmem:[%s1 + $0xeb0] sm:$0xff]
  %v501 = vld [vmem:[%s1 + $0xeb8] sm:$0xff]
  %v502 = vld [vmem:[%s1 + $0xec0] sm:$0xff]
  %v503 = vld [vmem:[%s1 + $0xec8] sm:$0xff]
  %v504 = vld [vmem:[%s1 + $0xed0] sm:$0xff]
  %v505 = vld [vmem:[%s1 + $0xed8] sm:$0xff]
  %v506 = vld [vmem:[%s1 + $0xee0] sm:$0xff]
  %v507 = vld [vmem:[%s1 + $0xee8] sm:$0xff]
  %v508 = vld [vmem:[%s1 + $0xef0] sm:$0xff]
  %v509 = vld [vmem:[%s1 + $0xef8] sm:$0xff]
  %v510 = vld [vmem:[%s1 + $0xf00] sm:$0xff]
  %v511 = vld [vmem:[%s1 + $0xf08] sm:$0xff]
  %v512 = vld [vmem:[%s1 + $0xf10] sm:$0xff]
  %v513 = vld [vmem:[%s1 + $0xf18] sm:$0xff]
  %v514 = vld [vmem:[%s1 + $0xf20] sm:$0xff]
  %v515 = vld [vmem:[%s1 + $0xf28] sm:$0xff]
  %v516 = vld [vmem:[%s1 + $0xf30] sm:$0xff]
  %v517 = vld [vmem:[%s1 + $0xf38] sm:$0xff]
  %v518 = vld [vmem:[%s1 + $0xf40] sm:$0xff]
  %v519 = vld [vmem:[%s1 + $0xf48] sm:$0xff]
  %v520 = vld [vmem:[%s1 + $0xf50] sm:$0xff]
  %v521 = vld [vmem:[%s1 + $0xf58] sm:$0xff]
  %v522 = vld [vmem:[%s1 + $0xf60] sm:$0xff]
  %v523 = vld [vmem:[%s1 + $0xf68] sm:$0xff]
  %v524 = vld [vmem:[%s1 + $0xf70] sm:$0xff]
  %v525 = vld [vmem:[%s1 + $0xf78] sm:$0xff]
  %v526 = vld [vmem:[%s1 + $0xf80] sm:$0xff]
  %v527 = vld [vmem:[%s1 + $0xf88] sm:$0xff]
  %v528 = vld [vmem:[%s1 + $0xf90] sm:$0xff]
  %v529 = vld [vmem:[%s1 + $0xf98] sm:$0xff]
  %v530 = vld [vmem:[%s1 + $0xfa0] sm:$0xff]
  %v531 = vld [vmem:[%s1 + $0xfa8] sm:$0xff]
  %v532 = vld [vmem:[%s1 + $0xfb0] sm:$0xff]
  %v533 = vld [vmem:[%s1 + $0xfb8] sm:$0xff]
  %v534 = vld [vmem:[%s1 + $0xfc0] sm:$0xff]
  %v535 = vld [vmem:[%s1 + $0xfc8] sm:$0xff]
  %v536 = vld [vmem:[%s1 + $0xfd0] sm:$0xff]
  %v537 = vld [vmem:[%s1 + $0xfd8] sm:$0xff]
  %v538 = vld [vmem:[%s1 + $0xfe0] sm:$0xff]
  %v539 = vld [vmem:[%s1 + $0xfe8] sm:$0xff]
  %v540 = vld [vmem:[%s1 + $0xff0] sm:$0xff]
  %v541 = vld [vmem:[%s1 + $0xff8] sm:$0xff]
  %v542 = vld [vmem:[%s2] sm:$0xf]
  %v544 = vperm.slane %v542, 0
  %v545 = vperm.slane %v542, 1
  %v546 = vperm.slane %v542, 2
  %v547 = vperm.slane %v542, 3
  %v560 = vunpack.c.l.b16 %v22
  %v561 = vunpack.c.h.b16 %v22
  %v562 = vunpack.c.l.b16 %v23
  %v563 = vunpack.c.h.b16 %v23
  %v564 = vunpack.c.l.b16 %v24
  %v565 = vunpack.c.h.b16 %v24
  %v566 = vunpack.c.l.b16 %v25
  %v567 = vunpack.c.h.b16 %v25
  %v568 = vunpack.c.l.b16 %v26
  %v569 = vunpack.c.h.b16 %v26
  %v570 = vunpack.c.l.b16 %v27
  %v571 = vunpack.c.h.b16 %v27
  %v572 = vunpack.c.l.b16 %v28
  %v573 = vunpack.c.h.b16 %v28
  %v574 = vunpack.c.l.b16 %v29
  %v575 = vunpack.c.h.b16 %v29
  %v576 = vpack.c.b16 %v560, %v560
  %v577 = vpack.c.b16 %v561, %v561
  %v578 = vpack.c.b16 %v562, %v562
  %v579 = vpack.c.b16 %v563, %v563
  %v580 = vpack.c.b16 %v564, %v564
  %v581 = vpack.c.b16 %v565, %v565
  %v582 = vpack.c.b16 %v566, %v566
  %v583 = vpack.c.b16 %v567, %v567
  %v584 = vpack.c.b16 %v568, %v568
  %v585 = vpack.c.b16 %v569, %v569
  %v586 = vpack.c.b16 %v570, %v570
  %v587 = vpack.c.b16 %v571, %v571
  %v588 = vpack.c.b16 %v572, %v572
  %v589 = vpack.c.b16 %v573, %v573
  %v590 = vpack.c.b16 %v574, %v574
  %v591 = vpack.c.b16 %v575, %v575
  %v1120 = vunpack.c.l.b16 %v30
  %v1121 = vunpack.c.h.b16 %v30
  %v1122 = vunpack.c.l.b16 %v31
  %v1123 = vunpack.c.h.b16 %v31
  %v1124 = vunpack.c.l.b16 %v32
  %v1125 = vunpack.c.h.b16 %v32
  %v1126 = vunpack.c.l.b16 %v33
  %v1127 = vunpack.c.h.b16 %v33
  %v1128 = vunpack.c.l.b16 %v34
  %v1129 = vunpack.c.h.b16 %v34
  %v1130 = vunpack.c.l.b16 %v35
  %v1131 = vunpack.c.h.b16 %v35
  %v1132 = vunpack.c.l.b16 %v36
  %v1133 = vunpack.c.h.b16 %v36
  %v1134 = vunpack.c.l.b16 %v37
  %v1135 = vunpack.c.h.b16 %v37
  %v1136 = vunpack.c.l.b16 %v38
  %v1137 = vunpack.c.h.b16 %v38
  %v1138 = vunpack.c.l.b16 %v39
  %v1139 = vunpack.c.h.b16 %v39
  %v1140 = vunpack.c.l.b16 %v40
  %v1141 = vunpack.c.h.b16 %v40
  %v1142 = vunpack.c.l.b16 %v41
  %v1143 = vunpack.c.h.b16 %v41
  %v1144 = vunpack.c.l.b16 %v42
  %v1145 = vunpack.c.h.b16 %v42
  %v1146 = vunpack.c.l.b16 %v43
  %v1147 = vunpack.c.h.b16 %v43
  %v1148 = vunpack.c.l.b16 %v44
  %v1149 = vunpack.c.h.b16 %v44
  %v1150 = vunpack.c.l.b16 %v45
  %v1151 = vunpack.c.h.b16 %v45
  %v1152 = vunpack.c.l.b16 %v46
  %v1153 = vunpack.c.h.b16 %v46
  %v1154 = vunpack.c.l.b16 %v47
  %v1155 = vunpack.c.h.b16 %v47
  %v1156 = vunpack.c.l.b16 %v48
  %v1157 = vunpack.c.h.b16 %v48
  %v1158 = vunpack.c.l.b16 %v49
  %v1159 = vunpack.c.h.b16 %v49
  %v1160 = vunpack.c.l.b16 %v50
  %v1161 = vunpack.c.h.b16 %v50
  %v1162 = vunpack.c.l.b16 %v51
  %v1163 = vunpack.c.h.b16 %v51
  %v1164 = vunpack.c.l.b16 %v52
  %v1165 = vunpack.c.h.b16 %v52
  %v1166 = vunpack.c.l.b16 %v53
  %v1167 = vunpack.c.h.b16 %v53
  %v1168 = vunpack.c.l.b16 %v54
  %v1169 = vunpack.c.h.b16 %v54
  %v1170 = vunpack.c.l.b16 %v55
  %v1171 = vunpack.c.h.b16 %v55
  %v1172 = vunpack.c.l.b16 %v56
  %v1173 = vunpack.c.h.b16 %v56
  %v1174 = vunpack.c.l.b16 %v57
  %v1175 = vunpack.c.h.b16 %v57
  %v1176 = vunpack.c.l.b16 %v58
  %v1177 = vunpack.c.h.b16 %v58
  %v1178 = vunpack.c.l.b16 %v59
  %v1179 = vunpack.c.h.b16 %v59
  %v1180 = vunpack.c.l.b16 %v60
  %v1181 = vunpack.c.h.b16 %v60
  %v1182 = vunpack.c.l.b16 %v61
  %v1183 = vunpack.c.h.b16 %v61
  %v1184 = vunpack.c.l.b16 %v62
  %v1185 = vunpack.c.h.b16 %v62
  %v1186 = vunpack.c.l.b16 %v63
  %v1187 = vunpack.c.h.b16 %v63
  %v1188 = vunpack.c.l.b16 %v64
  %v1189 = vunpack.c.h.b16 %v64
  %v1190 = vunpack.c.l.b16 %v65
  %v1191 = vunpack.c.h.b16 %v65
  %v1192 = vunpack.c.l.b16 %v66
  %v1193 = vunpack.c.h.b16 %v66
  %v1194 = vunpack.c.l.b16 %v67
  %v1195 = vunpack.c.h.b16 %v67
  %v1196 = vunpack.c.l.b16 %v68
  %v1197 = vunpack.c.h.b16 %v68
  %v1198 = vunpack.c.l.b16 %v69
  %v1199 = vunpack.c.h.b16 %v69
  %v1200 = vunpack.c.l.b16 %v70
  %v1201 = vunpack.c.h.b16 %v70
  %v1202 = vunpack.c.l.b16 %v71
  %v1203 = vunpack.c.h.b16 %v71
  %v1204 = vunpack.c.l.b16 %v72
  %v1205 = vunpack.c.h.b16 %v72
  %v1206 = vunpack.c.l.b16 %v73
  %v1207 = vunpack.c.h.b16 %v73
  %v1208 = vunpack.c.l.b16 %v74
  %v1209 = vunpack.c.h.b16 %v74
  %v1210 = vunpack.c.l.b16 %v75
  %v1211 = vunpack.c.h.b16 %v75
  %v1212 = vunpack.c.l.b16 %v76
  %v1213 = vunpack.c.h.b16 %v76
  %v1214 = vunpack.c.l.b16 %v77
  %v1215 = vunpack.c.h.b16 %v77
  %v1216 = vunpack.c.l.b16 %v78
  %v1217 = vunpack.c.h.b16 %v78
  %v1218 = vunpack.c.l.b16 %v79
  %v1219 = vunpack.c.h.b16 %v79
  %v1220 = vunpack.c.l.b16 %v80
  %v1221 = vunpack.c.h.b16 %v80
  %v1222 = vunpack.c.l.b16 %v81
  %v1223 = vunpack.c.h.b16 %v81
  %v1224 = vunpack.c.l.b16 %v82
  %v1225 = vunpack.c.h.b16 %v82
  %v1226 = vunpack.c.l.b16 %v83
  %v1227 = vunpack.c.h.b16 %v83
  %v1228 = vunpack.c.l.b16 %v84
  %v1229 = vunpack.c.h.b16 %v84
  %v1230 = vunpack.c.l.b16 %v85
  %v1231 = vunpack.c.h.b16 %v85
  %v1232 = vunpack.c.l.b16 %v86
  %v1233 = vunpack.c.h.b16 %v86
  %v1234 = vunpack.c.l.b16 %v87
  %v1235 = vunpack.c.h.b16 %v87
  %v1236 = vunpack.c.l.b16 %v88
  %v1237 = vunpack.c.h.b16 %v88
  %v1238 = vunpack.c.l.b16 %v89
  %v1239 = vunpack.c.h.b16 %v89
  %v1240 = vunpack.c.l.b16 %v90
  %v1241 = vunpack.c.h.b16 %v90
  %v1242 = vunpack.c.l.b16 %v91
  %v1243 = vunpack.c.h.b16 %v91
  %v1244 = vunpack.c.l.b16 %v92
  %v1245 = vunpack.c.h.b16 %v92
  %v1246 = vunpack.c.l.b16 %v93
  %v1247 = vunpack.c.h.b16 %v93
  %v1248 = vunpack.c.l.b16 %v94
  %v1249 = vunpack.c.h.b16 %v94
  %v1250 = vunpack.c.l.b16 %v95
  %v1251 = vunpack.c.h.b16 %v95
  %v1252 = vunpack.c.l.b16 %v96
  %v1253 = vunpack.c.h.b16 %v96
  %v1254 = vunpack.c.l.b16 %v97
  %v1255 = vunpack.c.h.b16 %v97
  %v1256 = vunpack.c.l.b16 %v98
  %v1257 = vunpack.c.h.b16 %v98
  %v1258 = vunpack.c.l.b16 %v99
  %v1259 = vunpack.c.h.b16 %v99
  %v1260 = vunpack.c.l.b16 %v100
  %v1261 = vunpack.c.h.b16 %v100
  %v1262 = vunpack.c.l.b16 %v101
  %v1263 = vunpack.c.h.b16 %v101
  %v1264 = vunpack.c.l.b16 %v102
  %v1265 = vunpack.c.h.b16 %v102
  %v1266 = vunpack.c.l.b16 %v103
  %v1267 = vunpack.c.h.b16 %v103
  %v1268 = vunpack.c.l.b16 %v104
  %v1269 = vunpack.c.h.b16 %v104
  %v1270 = vunpack.c.l.b16 %v105
  %v1271 = vunpack.c.h.b16 %v105
  %v1272 = vunpack.c.l.b16 %v106
  %v1273 = vunpack.c.h.b16 %v106
  %v1274 = vunpack.c.l.b16 %v107
  %v1275 = vunpack.c.h.b16 %v107
  %v1276 = vunpack.c.l.b16 %v108
  %v1277 = vunpack.c.h.b16 %v108
  %v1278 = vunpack.c.l.b16 %v109
  %v1279 = vunpack.c.h.b16 %v109
  %v1280 = vunpack.c.l.b16 %v110
  %v1281 = vunpack.c.h.b16 %v110
  %v1282 = vunpack.c.l.b16 %v111
  %v1283 = vunpack.c.h.b16 %v111
  %v1284 = vunpack.c.l.b16 %v112
  %v1285 = vunpack.c.h.b16 %v112
  %v1286 = vunpack.c.l.b16 %v113
  %v1287 = vunpack.c.h.b16 %v113
  %v1288 = vunpack.c.l.b16 %v114
  %v1289 = vunpack.c.h.b16 %v114
  %v1290 = vunpack.c.l.b16 %v115
  %v1291 = vunpack.c.h.b16 %v115
  %v1292 = vunpack.c.l.b16 %v116
  %v1293 = vunpack.c.h.b16 %v116
  %v1294 = vunpack.c.l.b16 %v117
  %v1295 = vunpack.c.h.b16 %v117
  %v1296 = vunpack.c.l.b16 %v118
  %v1297 = vunpack.c.h.b16 %v118
  %v1298 = vunpack.c.l.b16 %v119
  %v1299 = vunpack.c.h.b16 %v119
  %v1300 = vunpack.c.l.b16 %v120
  %v1301 = vunpack.c.h.b16 %v120
  %v1302 = vunpack.c.l.b16 %v121
  %v1303 = vunpack.c.h.b16 %v121
  %v1304 = vunpack.c.l.b16 %v122
  %v1305 = vunpack.c.h.b16 %v122
  %v1306 = vunpack.c.l.b16 %v123
  %v1307 = vunpack.c.h.b16 %v123
  %v1308 = vunpack.c.l.b16 %v124
  %v1309 = vunpack.c.h.b16 %v124
  %v1310 = vunpack.c.l.b16 %v125
  %v1311 = vunpack.c.h.b16 %v125
  %v1312 = vunpack.c.l.b16 %v126
  %v1313 = vunpack.c.h.b16 %v126
  %v1314 = vunpack.c.l.b16 %v127
  %v1315 = vunpack.c.h.b16 %v127
  %v1316 = vunpack.c.l.b16 %v128
  %v1317 = vunpack.c.h.b16 %v128
  %v1318 = vunpack.c.l.b16 %v129
  %v1319 = vunpack.c.h.b16 %v129
  %v1320 = vunpack.c.l.b16 %v130
  %v1321 = vunpack.c.h.b16 %v130
  %v1322 = vunpack.c.l.b16 %v131
  %v1323 = vunpack.c.h.b16 %v131
  %v1324 = vunpack.c.l.b16 %v132
  %v1325 = vunpack.c.h.b16 %v132
  %v1326 = vunpack.c.l.b16 %v133
  %v1327 = vunpack.c.h.b16 %v133
  %v1328 = vunpack.c.l.b16 %v134
  %v1329 = vunpack.c.h.b16 %v134
  %v1330 = vunpack.c.l.b16 %v135
  %v1331 = vunpack.c.h.b16 %v135
  %v1332 = vunpack.c.l.b16 %v136
  %v1333 = vunpack.c.h.b16 %v136
  %v1334 = vunpack.c.l.b16 %v137
  %v1335 = vunpack.c.h.b16 %v137
  %v1336 = vunpack.c.l.b16 %v138
  %v1337 = vunpack.c.h.b16 %v138
  %v1338 = vunpack.c.l.b16 %v139
  %v1339 = vunpack.c.h.b16 %v139
  %v1340 = vunpack.c.l.b16 %v140
  %v1341 = vunpack.c.h.b16 %v140
  %v1342 = vunpack.c.l.b16 %v141
  %v1343 = vunpack.c.h.b16 %v141
  %v1344 = vunpack.c.l.b16 %v142
  %v1345 = vunpack.c.h.b16 %v142
  %v1346 = vunpack.c.l.b16 %v143
  %v1347 = vunpack.c.h.b16 %v143
  %v1348 = vunpack.c.l.b16 %v144
  %v1349 = vunpack.c.h.b16 %v144
  %v1350 = vunpack.c.l.b16 %v145
  %v1351 = vunpack.c.h.b16 %v145
  %v1352 = vunpack.c.l.b16 %v146
  %v1353 = vunpack.c.h.b16 %v146
  %v1354 = vunpack.c.l.b16 %v147
  %v1355 = vunpack.c.h.b16 %v147
  %v1356 = vunpack.c.l.b16 %v148
  %v1357 = vunpack.c.h.b16 %v148
  %v1358 = vunpack.c.l.b16 %v149
  %v1359 = vunpack.c.h.b16 %v149
  %v1360 = vunpack.c.l.b16 %v150
  %v1361 = vunpack.c.h.b16 %v150
  %v1362 = vunpack.c.l.b16 %v151
  %v1363 = vunpack.c.h.b16 %v151
  %v1364 = vunpack.c.l.b16 %v152
  %v1365 = vunpack.c.h.b16 %v152
  %v1366 = vunpack.c.l.b16 %v153
  %v1367 = vunpack.c.h.b16 %v153
  %v1368 = vunpack.c.l.b16 %v154
  %v1369 = vunpack.c.h.b16 %v154
  %v1370 = vunpack.c.l.b16 %v155
  %v1371 = vunpack.c.h.b16 %v155
  %v1372 = vunpack.c.l.b16 %v156
  %v1373 = vunpack.c.h.b16 %v156
  %v1374 = vunpack.c.l.b16 %v157
  %v1375 = vunpack.c.h.b16 %v157
  %v1376 = vunpack.c.l.b16 %v158
  %v1377 = vunpack.c.h.b16 %v158
  %v1378 = vunpack.c.l.b16 %v159
  %v1379 = vunpack.c.h.b16 %v159
  %v1380 = vunpack.c.l.b16 %v160
  %v1381 = vunpack.c.h.b16 %v160
  %v1382 = vunpack.c.l.b16 %v161
  %v1383 = vunpack.c.h.b16 %v161
  %v1384 = vunpack.c.l.b16 %v162
  %v1385 = vunpack.c.h.b16 %v162
  %v1386 = vunpack.c.l.b16 %v163
  %v1387 = vunpack.c.h.b16 %v163
  %v1388 = vunpack.c.l.b16 %v164
  %v1389 = vunpack.c.h.b16 %v164
  %v1390 = vunpack.c.l.b16 %v165
  %v1391 = vunpack.c.h.b16 %v165
  %v1392 = vunpack.c.l.b16 %v166
  %v1393 = vunpack.c.h.b16 %v166
  %v1394 = vunpack.c.l.b16 %v167
  %v1395 = vunpack.c.h.b16 %v167
  %v1396 = vunpack.c.l.b16 %v168
  %v1397 = vunpack.c.h.b16 %v168
  %v1398 = vunpack.c.l.b16 %v169
  %v1399 = vunpack.c.h.b16 %v169
  %v1400 = vunpack.c.l.b16 %v170
  %v1401 = vunpack.c.h.b16 %v170
  %v1402 = vunpack.c.l.b16 %v171
  %v1403 = vunpack.c.h.b16 %v171
  %v1404 = vunpack.c.l.b16 %v172
  %v1405 = vunpack.c.h.b16 %v172
  %v1406 = vunpack.c.l.b16 %v173
  %v1407 = vunpack.c.h.b16 %v173
  %v1408 = vunpack.c.l.b16 %v174
  %v1409 = vunpack.c.h.b16 %v174
  %v1410 = vunpack.c.l.b16 %v175
  %v1411 = vunpack.c.h.b16 %v175
  %v1412 = vunpack.c.l.b16 %v176
  %v1413 = vunpack.c.h.b16 %v176
  %v1414 = vunpack.c.l.b16 %v177
  %v1415 = vunpack.c.h.b16 %v177
  %v1416 = vunpack.c.l.b16 %v178
  %v1417 = vunpack.c.h.b16 %v178
  %v1418 = vunpack.c.l.b16 %v179
  %v1419 = vunpack.c.h.b16 %v179
  %v1420 = vunpack.c.l.b16 %v180
  %v1421 = vunpack.c.h.b16 %v180
  %v1422 = vunpack.c.l.b16 %v181
  %v1423 = vunpack.c.h.b16 %v181
  %v1424 = vunpack.c.l.b16 %v182
  %v1425 = vunpack.c.h.b16 %v182
  %v1426 = vunpack.c.l.b16 %v183
  %v1427 = vunpack.c.h.b16 %v183
  %v1428 = vunpack.c.l.b16 %v184
  %v1429 = vunpack.c.h.b16 %v184
  %v1430 = vunpack.c.l.b16 %v185
  %v1431 = vunpack.c.h.b16 %v185
  %v1432 = vunpack.c.l.b16 %v186
  %v1433 = vunpack.c.h.b16 %v186
  %v1434 = vunpack.c.l.b16 %v187
  %v1435 = vunpack.c.h.b16 %v187
  %v1436 = vunpack.c.l.b16 %v188
  %v1437 = vunpack.c.h.b16 %v188
  %v1438 = vunpack.c.l.b16 %v189
  %v1439 = vunpack.c.h.b16 %v189
  %v1440 = vunpack.c.l.b16 %v190
  %v1441 = vunpack.c.h.b16 %v190
  %v1442 = vunpack.c.l.b16 %v191
  %v1443 = vunpack.c.h.b16 %v191
  %v1444 = vunpack.c.l.b16 %v192
  %v1445 = vunpack.c.h.b16 %v192
  %v1446 = vunpack.c.l.b16 %v193
  %v1447 = vunpack.c.h.b16 %v193
  %v1448 = vunpack.c.l.b16 %v194
  %v1449 = vunpack.c.h.b16 %v194
  %v1450 = vunpack.c.l.b16 %v195
  %v1451 = vunpack.c.h.b16 %v195
  %v1452 = vunpack.c.l.b16 %v196
  %v1453 = vunpack.c.h.b16 %v196
  %v1454 = vunpack.c.l.b16 %v197
  %v1455 = vunpack.c.h.b16 %v197
  %v1456 = vunpack.c.l.b16 %v198
  %v1457 = vunpack.c.h.b16 %v198
  %v1458 = vunpack.c.l.b16 %v199
  %v1459 = vunpack.c.h.b16 %v199
  %v1460 = vunpack.c.l.b16 %v200
  %v1461 = vunpack.c.h.b16 %v200
  %v1462 = vunpack.c.l.b16 %v201
  %v1463 = vunpack.c.h.b16 %v201
  %v1464 = vunpack.c.l.b16 %v202
  %v1465 = vunpack.c.h.b16 %v202
  %v1466 = vunpack.c.l.b16 %v203
  %v1467 = vunpack.c.h.b16 %v203
  %v1468 = vunpack.c.l.b16 %v204
  %v1469 = vunpack.c.h.b16 %v204
  %v1470 = vunpack.c.l.b16 %v205
  %v1471 = vunpack.c.h.b16 %v205
  %v1472 = vunpack.c.l.b16 %v206
  %v1473 = vunpack.c.h.b16 %v206
  %v1474 = vunpack.c.l.b16 %v207
  %v1475 = vunpack.c.h.b16 %v207
  %v1476 = vunpack.c.l.b16 %v208
  %v1477 = vunpack.c.h.b16 %v208
  %v1478 = vunpack.c.l.b16 %v209
  %v1479 = vunpack.c.h.b16 %v209
  %v1480 = vunpack.c.l.b16 %v210
  %v1481 = vunpack.c.h.b16 %v210
  %v1482 = vunpack.c.l.b16 %v211
  %v1483 = vunpack.c.h.b16 %v211
  %v1484 = vunpack.c.l.b16 %v212
  %v1485 = vunpack.c.h.b16 %v212
  %v1486 = vunpack.c.l.b16 %v213
  %v1487 = vunpack.c.h.b16 %v213
  %v1488 = vunpack.c.l.b16 %v214
  %v1489 = vunpack.c.h.b16 %v214
  %v1490 = vunpack.c.l.b16 %v215
  %v1491 = vunpack.c.h.b16 %v215
  %v1492 = vunpack.c.l.b16 %v216
  %v1493 = vunpack.c.h.b16 %v216
  %v1494 = vunpack.c.l.b16 %v217
  %v1495 = vunpack.c.h.b16 %v217
  %v1496 = vunpack.c.l.b16 %v218
  %v1497 = vunpack.c.h.b16 %v218
  %v1498 = vunpack.c.l.b16 %v219
  %v1499 = vunpack.c.h.b16 %v219
  %v1500 = vunpack.c.l.b16 %v220
  %v1501 = vunpack.c.h.b16 %v220
  %v1502 = vunpack.c.l.b16 %v221
  %v1503 = vunpack.c.h.b16 %v221
  %v1504 = vunpack.c.l.b16 %v222
  %v1505 = vunpack.c.h.b16 %v222
  %v1506 = vunpack.c.l.b16 %v223
  %v1507 = vunpack.c.h.b16 %v223
  %v1508 = vunpack.c.l.b16 %v224
  %v1509 = vunpack.c.h.b16 %v224
  %v1510 = vunpack.c.l.b16 %v225
  %v1511 = vunpack.c.h.b16 %v225
  %v1512 = vunpack.c.l.b16 %v226
  %v1513 = vunpack.c.h.b16 %v226
  %v1514 = vunpack.c.l.b16 %v227
  %v1515 = vunpack.c.h.b16 %v227
  %v1516 = vunpack.c.l.b16 %v228
  %v1517 = vunpack.c.h.b16 %v228
  %v1518 = vunpack.c.l.b16 %v229
  %v1519 = vunpack.c.h.b16 %v229
  %v1520 = vunpack.c.l.b16 %v230
  %v1521 = vunpack.c.h.b16 %v230
  %v1522 = vunpack.c.l.b16 %v231
  %v1523 = vunpack.c.h.b16 %v231
  %v1524 = vunpack.c.l.b16 %v232
  %v1525 = vunpack.c.h.b16 %v232
  %v1526 = vunpack.c.l.b16 %v233
  %v1527 = vunpack.c.h.b16 %v233
  %v1528 = vunpack.c.l.b16 %v234
  %v1529 = vunpack.c.h.b16 %v234
  %v1530 = vunpack.c.l.b16 %v235
  %v1531 = vunpack.c.h.b16 %v235
  %v1532 = vunpack.c.l.b16 %v236
  %v1533 = vunpack.c.h.b16 %v236
  %v1534 = vunpack.c.l.b16 %v237
  %v1535 = vunpack.c.h.b16 %v237
  %v1536 = vunpack.c.l.b16 %v238
  %v1537 = vunpack.c.h.b16 %v238
  %v1538 = vunpack.c.l.b16 %v239
  %v1539 = vunpack.c.h.b16 %v239
  %v1540 = vunpack.c.l.b16 %v240
  %v1541 = vunpack.c.h.b16 %v240
  %v1542 = vunpack.c.l.b16 %v241
  %v1543 = vunpack.c.h.b16 %v241
  %v1544 = vunpack.c.l.b16 %v242
  %v1545 = vunpack.c.h.b16 %v242
  %v1546 = vunpack.c.l.b16 %v243
  %v1547 = vunpack.c.h.b16 %v243
  %v1548 = vunpack.c.l.b16 %v244
  %v1549 = vunpack.c.h.b16 %v244
  %v1550 = vunpack.c.l.b16 %v245
  %v1551 = vunpack.c.h.b16 %v245
  %v1552 = vunpack.c.l.b16 %v246
  %v1553 = vunpack.c.h.b16 %v246
  %v1554 = vunpack.c.l.b16 %v247
  %v1555 = vunpack.c.h.b16 %v247
  %v1556 = vunpack.c.l.b16 %v248
  %v1557 = vunpack.c.h.b16 %v248
  %v1558 = vunpack.c.l.b16 %v249
  %v1559 = vunpack.c.h.b16 %v249
  %v1560 = vunpack.c.l.b16 %v250
  %v1561 = vunpack.c.h.b16 %v250
  %v1562 = vunpack.c.l.b16 %v251
  %v1563 = vunpack.c.h.b16 %v251
  %v1564 = vunpack.c.l.b16 %v252
  %v1565 = vunpack.c.h.b16 %v252
  %v1566 = vunpack.c.l.b16 %v253
  %v1567 = vunpack.c.h.b16 %v253
  %v1568 = vunpack.c.l.b16 %v254
  %v1569 = vunpack.c.h.b16 %v254
  %v1570 = vunpack.c.l.b16 %v255
  %v1571 = vunpack.c.h.b16 %v255
  %v1572 = vunpack.c.l.b16 %v256
  %v1573 = vunpack.c.h.b16 %v256
  %v1574 = vunpack.c.l.b16 %v257
  %v1575 = vunpack.c.h.b16 %v257
  %v1576 = vunpack.c.l.b16 %v258
  %v1577 = vunpack.c.h.b16 %v258
  %v1578 = vunpack.c.l.b16 %v259
  %v1579 = vunpack.c.h.b16 %v259
  %v1580 = vunpack.c.l.b16 %v260
  %v1581 = vunpack.c.h.b16 %v260
  %v1582 = vunpack.c.l.b16 %v261
  %v1583 = vunpack.c.h.b16 %v261
  %v1584 = vunpack.c.l.b16 %v262
  %v1585 = vunpack.c.h.b16 %v262
  %v1586 = vunpack.c.l.b16 %v263
  %v1587 = vunpack.c.h.b16 %v263
  %v1588 = vunpack.c.l.b16 %v264
  %v1589 = vunpack.c.h.b16 %v264
  %v1590 = vunpack.c.l.b16 %v265
  %v1591 = vunpack.c.h.b16 %v265
  %v1592 = vunpack.c.l.b16 %v266
  %v1593 = vunpack.c.h.b16 %v266
  %v1594 = vunpack.c.l.b16 %v267
  %v1595 = vunpack.c.h.b16 %v267
  %v1596 = vunpack.c.l.b16 %v268
  %v1597 = vunpack.c.h.b16 %v268
  %v1598 = vunpack.c.l.b16 %v269
  %v1599 = vunpack.c.h.b16 %v269
  %v1600 = vunpack.c.l.b16 %v270
  %v1601 = vunpack.c.h.b16 %v270
  %v1602 = vunpack.c.l.b16 %v271
  %v1603 = vunpack.c.h.b16 %v271
  %v1604 = vunpack.c.l.b16 %v272
  %v1605 = vunpack.c.h.b16 %v272
  %v1606 = vunpack.c.l.b16 %v273
  %v1607 = vunpack.c.h.b16 %v273
  %v1608 = vunpack.c.l.b16 %v274
  %v1609 = vunpack.c.h.b16 %v274
  %v1610 = vunpack.c.l.b16 %v275
  %v1611 = vunpack.c.h.b16 %v275
  %v1612 = vunpack.c.l.b16 %v276
  %v1613 = vunpack.c.h.b16 %v276
  %v1614 = vunpack.c.l.b16 %v277
  %v1615 = vunpack.c.h.b16 %v277
  %v1616 = vunpack.c.l.b16 %v278
  %v1617 = vunpack.c.h.b16 %v278
  %v1618 = vunpack.c.l.b16 %v279
  %v1619 = vunpack.c.h.b16 %v279
  %v1620 = vunpack.c.l.b16 %v280
  %v1621 = vunpack.c.h.b16 %v280
  %v1622 = vunpack.c.l.b16 %v281
  %v1623 = vunpack.c.h.b16 %v281
  %v1624 = vunpack.c.l.b16 %v282
  %v1625 = vunpack.c.h.b16 %v282
  %v1626 = vunpack.c.l.b16 %v283
  %v1627 = vunpack.c.h.b16 %v283
  %v1628 = vunpack.c.l.b16 %v284
  %v1629 = vunpack.c.h.b16 %v284
  %v1630 = vunpack.c.l.b16 %v285
  %v1631 = vunpack.c.h.b16 %v285
  %v1632 = vunpack.c.l.b16 %v286
  %v1633 = vunpack.c.h.b16 %v286
  %v1634 = vunpack.c.l.b16 %v287
  %v1635 = vunpack.c.h.b16 %v287
  %v1636 = vunpack.c.l.b16 %v288
  %v1637 = vunpack.c.h.b16 %v288
  %v1638 = vunpack.c.l.b16 %v289
  %v1639 = vunpack.c.h.b16 %v289
  %v1640 = vunpack.c.l.b16 %v290
  %v1641 = vunpack.c.h.b16 %v290
  %v1642 = vunpack.c.l.b16 %v291
  %v1643 = vunpack.c.h.b16 %v291
  %v1644 = vunpack.c.l.b16 %v292
  %v1645 = vunpack.c.h.b16 %v292
  %v1646 = vunpack.c.l.b16 %v293
  %v1647 = vunpack.c.h.b16 %v293
  %v1648 = vunpack.c.l.b16 %v294
  %v1649 = vunpack.c.h.b16 %v294
  %v1650 = vunpack.c.l.b16 %v295
  %v1651 = vunpack.c.h.b16 %v295
  %v1652 = vunpack.c.l.b16 %v296
  %v1653 = vunpack.c.h.b16 %v296
  %v1654 = vunpack.c.l.b16 %v297
  %v1655 = vunpack.c.h.b16 %v297
  %v1656 = vunpack.c.l.b16 %v298
  %v1657 = vunpack.c.h.b16 %v298
  %v1658 = vunpack.c.l.b16 %v299
  %v1659 = vunpack.c.h.b16 %v299
  %v1660 = vunpack.c.l.b16 %v300
  %v1661 = vunpack.c.h.b16 %v300
  %v1662 = vunpack.c.l.b16 %v301
  %v1663 = vunpack.c.h.b16 %v301
  %v1664 = vunpack.c.l.b16 %v302
  %v1665 = vunpack.c.h.b16 %v302
  %v1666 = vunpack.c.l.b16 %v303
  %v1667 = vunpack.c.h.b16 %v303
  %v1668 = vunpack.c.l.b16 %v304
  %v1669 = vunpack.c.h.b16 %v304
  %v1670 = vunpack.c.l.b16 %v305
  %v1671 = vunpack.c.h.b16 %v305
  %v1672 = vunpack.c.l.b16 %v306
  %v1673 = vunpack.c.h.b16 %v306
  %v1674 = vunpack.c.l.b16 %v307
  %v1675 = vunpack.c.h.b16 %v307
  %v1676 = vunpack.c.l.b16 %v308
  %v1677 = vunpack.c.h.b16 %v308
  %v1678 = vunpack.c.l.b16 %v309
  %v1679 = vunpack.c.h.b16 %v309
  %v1680 = vunpack.c.l.b16 %v310
  %v1681 = vunpack.c.h.b16 %v310
  %v1682 = vunpack.c.l.b16 %v311
  %v1683 = vunpack.c.h.b16 %v311
  %v1684 = vunpack.c.l.b16 %v312
  %v1685 = vunpack.c.h.b16 %v312
  %v1686 = vunpack.c.l.b16 %v313
  %v1687 = vunpack.c.h.b16 %v313
  %v1688 = vunpack.c.l.b16 %v314
  %v1689 = vunpack.c.h.b16 %v314
  %v1690 = vunpack.c.l.b16 %v315
  %v1691 = vunpack.c.h.b16 %v315
  %v1692 = vunpack.c.l.b16 %v316
  %v1693 = vunpack.c.h.b16 %v316
  %v1694 = vunpack.c.l.b16 %v317
  %v1695 = vunpack.c.h.b16 %v317
  %v1696 = vunpack.c.l.b16 %v318
  %v1697 = vunpack.c.h.b16 %v318
  %v1698 = vunpack.c.l.b16 %v319
  %v1699 = vunpack.c.h.b16 %v319
  %v1700 = vunpack.c.l.b16 %v320
  %v1701 = vunpack.c.h.b16 %v320
  %v1702 = vunpack.c.l.b16 %v321
  %v1703 = vunpack.c.h.b16 %v321
  %v1704 = vunpack.c.l.b16 %v322
  %v1705 = vunpack.c.h.b16 %v322
  %v1706 = vunpack.c.l.b16 %v323
  %v1707 = vunpack.c.h.b16 %v323
  %v1708 = vunpack.c.l.b16 %v324
  %v1709 = vunpack.c.h.b16 %v324
  %v1710 = vunpack.c.l.b16 %v325
  %v1711 = vunpack.c.h.b16 %v325
  %v1712 = vunpack.c.l.b16 %v326
  %v1713 = vunpack.c.h.b16 %v326
  %v1714 = vunpack.c.l.b16 %v327
  %v1715 = vunpack.c.h.b16 %v327
  %v1716 = vunpack.c.l.b16 %v328
  %v1717 = vunpack.c.h.b16 %v328
  %v1718 = vunpack.c.l.b16 %v329
  %v1719 = vunpack.c.h.b16 %v329
  %v1720 = vunpack.c.l.b16 %v330
  %v1721 = vunpack.c.h.b16 %v330
  %v1722 = vunpack.c.l.b16 %v331
  %v1723 = vunpack.c.h.b16 %v331
  %v1724 = vunpack.c.l.b16 %v332
  %v1725 = vunpack.c.h.b16 %v332
  %v1726 = vunpack.c.l.b16 %v333
  %v1727 = vunpack.c.h.b16 %v333
  %v1728 = vunpack.c.l.b16 %v334
  %v1729 = vunpack.c.h.b16 %v334
  %v1730 = vunpack.c.l.b16 %v335
  %v1731 = vunpack.c.h.b16 %v335
  %v1732 = vunpack.c.l.b16 %v336
  %v1733 = vunpack.c.h.b16 %v336
  %v1734 = vunpack.c.l.b16 %v337
  %v1735 = vunpack.c.h.b16 %v337
  %v1736 = vunpack.c.l.b16 %v338
  %v1737 = vunpack.c.h.b16 %v338
  %v1738 = vunpack.c.l.b16 %v339
  %v1739 = vunpack.c.h.b16 %v339
  %v1740 = vunpack.c.l.b16 %v340
  %v1741 = vunpack.c.h.b16 %v340
  %v1742 = vunpack.c.l.b16 %v341
  %v1743 = vunpack.c.h.b16 %v341
  %v1744 = vunpack.c.l.b16 %v342
  %v1745 = vunpack.c.h.b16 %v342
  %v1746 = vunpack.c.l.b16 %v343
  %v1747 = vunpack.c.h.b16 %v343
  %v1748 = vunpack.c.l.b16 %v344
  %v1749 = vunpack.c.h.b16 %v344
  %v1750 = vunpack.c.l.b16 %v345
  %v1751 = vunpack.c.h.b16 %v345
  %v1752 = vunpack.c.l.b16 %v346
  %v1753 = vunpack.c.h.b16 %v346
  %v1754 = vunpack.c.l.b16 %v347
  %v1755 = vunpack.c.h.b16 %v347
  %v1756 = vunpack.c.l.b16 %v348
  %v1757 = vunpack.c.h.b16 %v348
  %v1758 = vunpack.c.l.b16 %v349
  %v1759 = vunpack.c.h.b16 %v349
  %v1760 = vunpack.c.l.b16 %v350
  %v1761 = vunpack.c.h.b16 %v350
  %v1762 = vunpack.c.l.b16 %v351
  %v1763 = vunpack.c.h.b16 %v351
  %v1764 = vunpack.c.l.b16 %v352
  %v1765 = vunpack.c.h.b16 %v352
  %v1766 = vunpack.c.l.b16 %v353
  %v1767 = vunpack.c.h.b16 %v353
  %v1768 = vunpack.c.l.b16 %v354
  %v1769 = vunpack.c.h.b16 %v354
  %v1770 = vunpack.c.l.b16 %v355
  %v1771 = vunpack.c.h.b16 %v355
  %v1772 = vunpack.c.l.b16 %v356
  %v1773 = vunpack.c.h.b16 %v356
  %v1774 = vunpack.c.l.b16 %v357
  %v1775 = vunpack.c.h.b16 %v357
  %v1776 = vunpack.c.l.b16 %v358
  %v1777 = vunpack.c.h.b16 %v358
  %v1778 = vunpack.c.l.b16 %v359
  %v1779 = vunpack.c.h.b16 %v359
  %v1780 = vunpack.c.l.b16 %v360
  %v1781 = vunpack.c.h.b16 %v360
  %v1782 = vunpack.c.l.b16 %v361
  %v1783 = vunpack.c.h.b16 %v361
  %v1784 = vunpack.c.l.b16 %v362
  %v1785 = vunpack.c.h.b16 %v362
  %v1786 = vunpack.c.l.b16 %v363
  %v1787 = vunpack.c.h.b16 %v363
  %v1788 = vunpack.c.l.b16 %v364
  %v1789 = vunpack.c.h.b16 %v364
  %v1790 = vunpack.c.l.b16 %v365
  %v1791 = vunpack.c.h.b16 %v365
  %v1792 = vunpack.c.l.b16 %v366
  %v1793 = vunpack.c.h.b16 %v366
  %v1794 = vunpack.c.l.b16 %v367
  %v1795 = vunpack.c.h.b16 %v367
  %v1796 = vunpack.c.l.b16 %v368
  %v1797 = vunpack.c.h.b16 %v368
  %v1798 = vunpack.c.l.b16 %v369
  %v1799 = vunpack.c.h.b16 %v369
  %v1800 = vunpack.c.l.b16 %v370
  %v1801 = vunpack.c.h.b16 %v370
  %v1802 = vunpack.c.l.b16 %v371
  %v1803 = vunpack.c.h.b16 %v371
  %v1804 = vunpack.c.l.b16 %v372
  %v1805 = vunpack.c.h.b16 %v372
  %v1806 = vunpack.c.l.b16 %v373
  %v1807 = vunpack.c.h.b16 %v373
  %v1808 = vunpack.c.l.b16 %v374
  %v1809 = vunpack.c.h.b16 %v374
  %v1810 = vunpack.c.l.b16 %v375
  %v1811 = vunpack.c.h.b16 %v375
  %v1812 = vunpack.c.l.b16 %v376
  %v1813 = vunpack.c.h.b16 %v376
  %v1814 = vunpack.c.l.b16 %v377
  %v1815 = vunpack.c.h.b16 %v377
  %v1816 = vunpack.c.l.b16 %v378
  %v1817 = vunpack.c.h.b16 %v378
  %v1818 = vunpack.c.l.b16 %v379
  %v1819 = vunpack.c.h.b16 %v379
  %v1820 = vunpack.c.l.b16 %v380
  %v1821 = vunpack.c.h.b16 %v380
  %v1822 = vunpack.c.l.b16 %v381
  %v1823 = vunpack.c.h.b16 %v381
  %v1824 = vunpack.c.l.b16 %v382
  %v1825 = vunpack.c.h.b16 %v382
  %v1826 = vunpack.c.l.b16 %v383
  %v1827 = vunpack.c.h.b16 %v383
  %v1828 = vunpack.c.l.b16 %v384
  %v1829 = vunpack.c.h.b16 %v384
  %v1830 = vunpack.c.l.b16 %v385
  %v1831 = vunpack.c.h.b16 %v385
  %v1832 = vunpack.c.l.b16 %v386
  %v1833 = vunpack.c.h.b16 %v386
  %v1834 = vunpack.c.l.b16 %v387
  %v1835 = vunpack.c.h.b16 %v387
  %v1836 = vunpack.c.l.b16 %v388
  %v1837 = vunpack.c.h.b16 %v388
  %v1838 = vunpack.c.l.b16 %v389
  %v1839 = vunpack.c.h.b16 %v389
  %v1840 = vunpack.c.l.b16 %v390
  %v1841 = vunpack.c.h.b16 %v390
  %v1842 = vunpack.c.l.b16 %v391
  %v1843 = vunpack.c.h.b16 %v391
  %v1844 = vunpack.c.l.b16 %v392
  %v1845 = vunpack.c.h.b16 %v392
  %v1846 = vunpack.c.l.b16 %v393
  %v1847 = vunpack.c.h.b16 %v393
  %v1848 = vunpack.c.l.b16 %v394
  %v1849 = vunpack.c.h.b16 %v394
  %v1850 = vunpack.c.l.b16 %v395
  %v1851 = vunpack.c.h.b16 %v395
  %v1852 = vunpack.c.l.b16 %v396
  %v1853 = vunpack.c.h.b16 %v396
  %v1854 = vunpack.c.l.b16 %v397
  %v1855 = vunpack.c.h.b16 %v397
  %v1856 = vunpack.c.l.b16 %v398
  %v1857 = vunpack.c.h.b16 %v398
  %v1858 = vunpack.c.l.b16 %v399
  %v1859 = vunpack.c.h.b16 %v399
  %v1860 = vunpack.c.l.b16 %v400
  %v1861 = vunpack.c.h.b16 %v400
  %v1862 = vunpack.c.l.b16 %v401
  %v1863 = vunpack.c.h.b16 %v401
  %v1864 = vunpack.c.l.b16 %v402
  %v1865 = vunpack.c.h.b16 %v402
  %v1866 = vunpack.c.l.b16 %v403
  %v1867 = vunpack.c.h.b16 %v403
  %v1868 = vunpack.c.l.b16 %v404
  %v1869 = vunpack.c.h.b16 %v404
  %v1870 = vunpack.c.l.b16 %v405
  %v1871 = vunpack.c.h.b16 %v405
  %v1872 = vunpack.c.l.b16 %v406
  %v1873 = vunpack.c.h.b16 %v406
  %v1874 = vunpack.c.l.b16 %v407
  %v1875 = vunpack.c.h.b16 %v407
  %v1876 = vunpack.c.l.b16 %v408
  %v1877 = vunpack.c.h.b16 %v408
  %v1878 = vunpack.c.l.b16 %v409
  %v1879 = vunpack.c.h.b16 %v409
  %v1880 = vunpack.c.l.b16 %v410
  %v1881 = vunpack.c.h.b16 %v410
  %v1882 = vunpack.c.l.b16 %v411
  %v1883 = vunpack.c.h.b16 %v411
  %v1884 = vunpack.c.l.b16 %v412
  %v1885 = vunpack.c.h.b16 %v412
  %v1886 = vunpack.c.l.b16 %v413
  %v1887 = vunpack.c.h.b16 %v413
  %v1888 = vunpack.c.l.b16 %v414
  %v1889 = vunpack.c.h.b16 %v414
  %v1890 = vunpack.c.l.b16 %v415
  %v1891 = vunpack.c.h.b16 %v415
  %v1892 = vunpack.c.l.b16 %v416
  %v1893 = vunpack.c.h.b16 %v416
  %v1894 = vunpack.c.l.b16 %v417
  %v1895 = vunpack.c.h.b16 %v417
  %v1896 = vunpack.c.l.b16 %v418
  %v1897 = vunpack.c.h.b16 %v418
  %v1898 = vunpack.c.l.b16 %v419
  %v1899 = vunpack.c.h.b16 %v419
  %v1900 = vunpack.c.l.b16 %v420
  %v1901 = vunpack.c.h.b16 %v420
  %v1902 = vunpack.c.l.b16 %v421
  %v1903 = vunpack.c.h.b16 %v421
  %v1904 = vunpack.c.l.b16 %v422
  %v1905 = vunpack.c.h.b16 %v422
  %v1906 = vunpack.c.l.b16 %v423
  %v1907 = vunpack.c.h.b16 %v423
  %v1908 = vunpack.c.l.b16 %v424
  %v1909 = vunpack.c.h.b16 %v424
  %v1910 = vunpack.c.l.b16 %v425
  %v1911 = vunpack.c.h.b16 %v425
  %v1912 = vunpack.c.l.b16 %v426
  %v1913 = vunpack.c.h.b16 %v426
  %v1914 = vunpack.c.l.b16 %v427
  %v1915 = vunpack.c.h.b16 %v427
  %v1916 = vunpack.c.l.b16 %v428
  %v1917 = vunpack.c.h.b16 %v428
  %v1918 = vunpack.c.l.b16 %v429
  %v1919 = vunpack.c.h.b16 %v429
  %v1920 = vunpack.c.l.b16 %v430
  %v1921 = vunpack.c.h.b16 %v430
  %v1922 = vunpack.c.l.b16 %v431
  %v1923 = vunpack.c.h.b16 %v431
  %v1924 = vunpack.c.l.b16 %v432
  %v1925 = vunpack.c.h.b16 %v432
  %v1926 = vunpack.c.l.b16 %v433
  %v1927 = vunpack.c.h.b16 %v433
  %v1928 = vunpack.c.l.b16 %v434
  %v1929 = vunpack.c.h.b16 %v434
  %v1930 = vunpack.c.l.b16 %v435
  %v1931 = vunpack.c.h.b16 %v435
  %v1932 = vunpack.c.l.b16 %v436
  %v1933 = vunpack.c.h.b16 %v436
  %v1934 = vunpack.c.l.b16 %v437
  %v1935 = vunpack.c.h.b16 %v437
  %v1936 = vunpack.c.l.b16 %v438
  %v1937 = vunpack.c.h.b16 %v438
  %v1938 = vunpack.c.l.b16 %v439
  %v1939 = vunpack.c.h.b16 %v439
  %v1940 = vunpack.c.l.b16 %v440
  %v1941 = vunpack.c.h.b16 %v440
  %v1942 = vunpack.c.l.b16 %v441
  %v1943 = vunpack.c.h.b16 %v441
  %v1944 = vunpack.c.l.b16 %v442
  %v1945 = vunpack.c.h.b16 %v442
  %v1946 = vunpack.c.l.b16 %v443
  %v1947 = vunpack.c.h.b16 %v443
  %v1948 = vunpack.c.l.b16 %v444
  %v1949 = vunpack.c.h.b16 %v444
  %v1950 = vunpack.c.l.b16 %v445
  %v1951 = vunpack.c.h.b16 %v445
  %v1952 = vunpack.c.l.b16 %v446
  %v1953 = vunpack.c.h.b16 %v446
  %v1954 = vunpack.c.l.b16 %v447
  %v1955 = vunpack.c.h.b16 %v447
  %v1956 = vunpack.c.l.b16 %v448
  %v1957 = vunpack.c.h.b16 %v448
  %v1958 = vunpack.c.l.b16 %v449
  %v1959 = vunpack.c.h.b16 %v449
  %v1960 = vunpack.c.l.b16 %v450
  %v1961 = vunpack.c.h.b16 %v450
  %v1962 = vunpack.c.l.b16 %v451
  %v1963 = vunpack.c.h.b16 %v451
  %v1964 = vunpack.c.l.b16 %v452
  %v1965 = vunpack.c.h.b16 %v452
  %v1966 = vunpack.c.l.b16 %v453
  %v1967 = vunpack.c.h.b16 %v453
  %v1968 = vunpack.c.l.b16 %v454
  %v1969 = vunpack.c.h.b16 %v454
  %v1970 = vunpack.c.l.b16 %v455
  %v1971 = vunpack.c.h.b16 %v455
  %v1972 = vunpack.c.l.b16 %v456
  %v1973 = vunpack.c.h.b16 %v456
  %v1974 = vunpack.c.l.b16 %v457
  %v1975 = vunpack.c.h.b16 %v457
  %v1976 = vunpack.c.l.b16 %v458
  %v1977 = vunpack.c.h.b16 %v458
  %v1978 = vunpack.c.l.b16 %v459
  %v1979 = vunpack.c.h.b16 %v459
  %v1980 = vunpack.c.l.b16 %v460
  %v1981 = vunpack.c.h.b16 %v460
  %v1982 = vunpack.c.l.b16 %v461
  %v1983 = vunpack.c.h.b16 %v461
  %v1984 = vunpack.c.l.b16 %v462
  %v1985 = vunpack.c.h.b16 %v462
  %v1986 = vunpack.c.l.b16 %v463
  %v1987 = vunpack.c.h.b16 %v463
  %v1988 = vunpack.c.l.b16 %v464
  %v1989 = vunpack.c.h.b16 %v464
  %v1990 = vunpack.c.l.b16 %v465
  %v1991 = vunpack.c.h.b16 %v465
  %v1992 = vunpack.c.l.b16 %v466
  %v1993 = vunpack.c.h.b16 %v466
  %v1994 = vunpack.c.l.b16 %v467
  %v1995 = vunpack.c.h.b16 %v467
  %v1996 = vunpack.c.l.b16 %v468
  %v1997 = vunpack.c.h.b16 %v468
  %v1998 = vunpack.c.l.b16 %v469
  %v1999 = vunpack.c.h.b16 %v469
  %v2000 = vunpack.c.l.b16 %v470
  %v2001 = vunpack.c.h.b16 %v470
  %v2002 = vunpack.c.l.b16 %v471
  %v2003 = vunpack.c.h.b16 %v471
  %v2004 = vunpack.c.l.b16 %v472
  %v2005 = vunpack.c.h.b16 %v472
  %v2006 = vunpack.c.l.b16 %v473
  %v2007 = vunpack.c.h.b16 %v473
  %v2008 = vunpack.c.l.b16 %v474
  %v2009 = vunpack.c.h.b16 %v474
  %v2010 = vunpack.c.l.b16 %v475
  %v2011 = vunpack.c.h.b16 %v475
  %v2012 = vunpack.c.l.b16 %v476
  %v2013 = vunpack.c.h.b16 %v476
  %v2014 = vunpack.c.l.b16 %v477
  %v2015 = vunpack.c.h.b16 %v477
  %v2016 = vunpack.c.l.b16 %v478
  %v2017 = vunpack.c.h.b16 %v478
  %v2018 = vunpack.c.l.b16 %v479
  %v2019 = vunpack.c.h.b16 %v479
  %v2020 = vunpack.c.l.b16 %v480
  %v2021 = vunpack.c.h.b16 %v480
  %v2022 = vunpack.c.l.b16 %v481
  %v2023 = vunpack.c.h.b16 %v481
  %v2024 = vunpack.c.l.b16 %v482
  %v2025 = vunpack.c.h.b16 %v482
  %v2026 = vunpack.c.l.b16 %v483
  %v2027 = vunpack.c.h.b16 %v483
  %v2028 = vunpack.c.l.b16 %v484
  %v2029 = vunpack.c.h.b16 %v484
  %v2030 = vunpack.c.l.b16 %v485
  %v2031 = vunpack.c.h.b16 %v485
  %v2032 = vunpack.c.l.b16 %v486
  %v2033 = vunpack.c.h.b16 %v486
  %v2034 = vunpack.c.l.b16 %v487
  %v2035 = vunpack.c.h.b16 %v487
  %v2036 = vunpack.c.l.b16 %v488
  %v2037 = vunpack.c.h.b16 %v488
  %v2038 = vunpack.c.l.b16 %v489
  %v2039 = vunpack.c.h.b16 %v489
  %v2040 = vunpack.c.l.b16 %v490
  %v2041 = vunpack.c.h.b16 %v490
  %v2042 = vunpack.c.l.b16 %v491
  %v2043 = vunpack.c.h.b16 %v491
  %v2044 = vunpack.c.l.b16 %v492
  %v2045 = vunpack.c.h.b16 %v492
  %v2046 = vunpack.c.l.b16 %v493
  %v2047 = vunpack.c.h.b16 %v493
  %v2048 = vunpack.c.l.b16 %v494
  %v2049 = vunpack.c.h.b16 %v494
  %v2050 = vunpack.c.l.b16 %v495
  %v2051 = vunpack.c.h.b16 %v495
  %v2052 = vunpack.c.l.b16 %v496
  %v2053 = vunpack.c.h.b16 %v496
  %v2054 = vunpack.c.l.b16 %v497
  %v2055 = vunpack.c.h.b16 %v497
  %v2056 = vunpack.c.l.b16 %v498
  %v2057 = vunpack.c.h.b16 %v498
  %v2058 = vunpack.c.l.b16 %v499
  %v2059 = vunpack.c.h.b16 %v499
  %v2060 = vunpack.c.l.b16 %v500
  %v2061 = vunpack.c.h.b16 %v500
  %v2062 = vunpack.c.l.b16 %v501
  %v2063 = vunpack.c.h.b16 %v501
  %v2064 = vunpack.c.l.b16 %v502
  %v2065 = vunpack.c.h.b16 %v502
  %v2066 = vunpack.c.l.b16 %v503
  %v2067 = vunpack.c.h.b16 %v503
  %v2068 = vunpack.c.l.b16 %v504
  %v2069 = vunpack.c.h.b16 %v504
  %v2070 = vunpack.c.l.b16 %v505
  %v2071 = vunpack.c.h.b16 %v505
  %v2072 = vunpack.c.l.b16 %v506
  %v2073 = vunpack.c.h.b16 %v506
  %v2074 = vunpack.c.l.b16 %v507
  %v2075 = vunpack.c.h.b16 %v507
  %v2076 = vunpack.c.l.b16 %v508
  %v2077 = vunpack.c.h.b16 %v508
  %v2078 = vunpack.c.l.b16 %v509
  %v2079 = vunpack.c.h.b16 %v509
  %v2080 = vunpack.c.l.b16 %v510
  %v2081 = vunpack.c.h.b16 %v510
  %v2082 = vunpack.c.l.b16 %v511
  %v2083 = vunpack.c.h.b16 %v511
  %v2084 = vunpack.c.l.b16 %v512
  %v2085 = vunpack.c.h.b16 %v512
  %v2086 = vunpack.c.l.b16 %v513
  %v2087 = vunpack.c.h.b16 %v513
  %v2088 = vunpack.c.l.b16 %v514
  %v2089 = vunpack.c.h.b16 %v514
  %v2090 = vunpack.c.l.b16 %v515
  %v2091 = vunpack.c.h.b16 %v515
  %v2092 = vunpack.c.l.b16 %v516
  %v2093 = vunpack.c.h.b16 %v516
  %v2094 = vunpack.c.l.b16 %v517
  %v2095 = vunpack.c.h.b16 %v517
  %v2096 = vunpack.c.l.b16 %v518
  %v2097 = vunpack.c.h.b16 %v518
  %v2098 = vunpack.c.l.b16 %v519
  %v2099 = vunpack.c.h.b16 %v519
  %v2100 = vunpack.c.l.b16 %v520
  %v2101 = vunpack.c.h.b16 %v520
  %v2102 = vunpack.c.l.b16 %v521
  %v2103 = vunpack.c.h.b16 %v521
  %v2104 = vunpack.c.l.b16 %v522
  %v2105 = vunpack.c.h.b16 %v522
  %v2106 = vunpack.c.l.b16 %v523
  %v2107 = vunpack.c.h.b16 %v523
  %v2108 = vunpack.c.l.b16 %v524
  %v2109 = vunpack.c.h.b16 %v524
  %v2110 = vunpack.c.l.b16 %v525
  %v2111 = vunpack.c.h.b16 %v525
  %v2112 = vunpack.c.l.b16 %v526
  %v2113 = vunpack.c.h.b16 %v526
  %v2114 = vunpack.c.l.b16 %v527
  %v2115 = vunpack.c.h.b16 %v527
  %v2116 = vunpack.c.l.b16 %v528
  %v2117 = vunpack.c.h.b16 %v528
  %v2118 = vunpack.c.l.b16 %v529
  %v2119 = vunpack.c.h.b16 %v529
  %v2120 = vunpack.c.l.b16 %v530
  %v2121 = vunpack.c.h.b16 %v530
  %v2122 = vunpack.c.l.b16 %v531
  %v2123 = vunpack.c.h.b16 %v531
  %v2124 = vunpack.c.l.b16 %v532
  %v2125 = vunpack.c.h.b16 %v532
  %v2126 = vunpack.c.l.b16 %v533
  %v2127 = vunpack.c.h.b16 %v533
  %v2128 = vunpack.c.l.b16 %v534
  %v2129 = vunpack.c.h.b16 %v534
  %v2130 = vunpack.c.l.b16 %v535
  %v2131 = vunpack.c.h.b16 %v535
  %v2132 = vunpack.c.l.b16 %v536
  %v2133 = vunpack.c.h.b16 %v536
  %v2134 = vunpack.c.l.b16 %v537
  %v2135 = vunpack.c.h.b16 %v537
  %v2136 = vunpack.c.l.b16 %v538
  %v2137 = vunpack.c.h.b16 %v538
  %v2138 = vunpack.c.l.b16 %v539
  %v2139 = vunpack.c.h.b16 %v539
  %v2140 = vunpack.c.l.b16 %v540
  %v2141 = vunpack.c.h.b16 %v540
  %v2142 = vunpack.c.l.b16 %v541
  %v2143 = vunpack.c.h.b16 %v541
  %v2144 = vpack.c.b16 %v1124, %v1120
  %v2145 = vpack.c.b16 %v1125, %v1121
  %v2146 = vpack.c.b16 %v1126, %v1122
  %v2147 = vpack.c.b16 %v1127, %v1123
  %v2148 = vpack.c.b16 %v1132, %v1128
  %v2149 = vpack.c.b16 %v1133, %v1129
  %v2150 = vpack.c.b16 %v1134, %v1130
  %v2151 = vpack.c.b16 %v1135, %v1131
  %v2152 = vpack.c.b16 %v1140, %v1136
  %v2153 = vpack.c.b16 %v1141, %v1137
  %v2154 = vpack.c.b16 %v1142, %v1138
  %v2155 = vpack.c.b16 %v1143, %v1139
  %v2156 = vpack.c.b16 %v1148, %v1144
  %v2157 = vpack.c.b16 %v1149, %v1145
  %v2158 = vpack.c.b16 %v1150, %v1146
  %v2159 = vpack.c.b16 %v1151, %v1147
  %v2160 = vpack.c.b16 %v1156, %v1152
  %v2161 = vpack.c.b16 %v1157, %v1153
  %v2162 = vpack.c.b16 %v1158, %v1154
  %v2163 = vpack.c.b16 %v1159, %v1155
  %v2164 = vpack.c.b16 %v1164, %v1160
  %v2165 = vpack.c.b16 %v1165, %v1161
  %v2166 = vpack.c.b16 %v1166, %v1162
  %v2167 = vpack.c.b16 %v1167, %v1163
  %v2168 = vpack.c.b16 %v1172, %v1168
  %v2169 = vpack.c.b16 %v1173, %v1169
  %v2170 = vpack.c.b16 %v1174, %v1170
  %v2171 = vpack.c.b16 %v1175, %v1171
  %v2172 = vpack.c.b16 %v1180, %v1176
  %v2173 = vpack.c.b16 %v1181, %v1177
  %v2174 = vpack.c.b16 %v1182, %v1178
  %v2175 = vpack.c.b16 %v1183, %v1179
  %v2176 = vpack.c.b16 %v1188, %v1184
  %v2177 = vpack.c.b16 %v1189, %v1185
  %v2178 = vpack.c.b16 %v1190, %v1186
  %v2179 = vpack.c.b16 %v1191, %v1187
  %v2180 = vpack.c.b16 %v1196, %v1192
  %v2181 = vpack.c.b16 %v1197, %v1193
  %v2182 = vpack.c.b16 %v1198, %v1194
  %v2183 = vpack.c.b16 %v1199, %v1195
  %v2184 = vpack.c.b16 %v1204, %v1200
  %v2185 = vpack.c.b16 %v1205, %v1201
  %v2186 = vpack.c.b16 %v1206, %v1202
  %v2187 = vpack.c.b16 %v1207, %v1203
  %v2188 = vpack.c.b16 %v1212, %v1208
  %v2189 = vpack.c.b16 %v1213, %v1209
  %v2190 = vpack.c.b16 %v1214, %v1210
  %v2191 = vpack.c.b16 %v1215, %v1211
  %v2192 = vpack.c.b16 %v1220, %v1216
  %v2193 = vpack.c.b16 %v1221, %v1217
  %v2194 = vpack.c.b16 %v1222, %v1218
  %v2195 = vpack.c.b16 %v1223, %v1219
  %v2196 = vpack.c.b16 %v1228, %v1224
  %v2197 = vpack.c.b16 %v1229, %v1225
  %v2198 = vpack.c.b16 %v1230, %v1226
  %v2199 = vpack.c.b16 %v1231, %v1227
  %v2200 = vpack.c.b16 %v1236, %v1232
  %v2201 = vpack.c.b16 %v1237, %v1233
  %v2202 = vpack.c.b16 %v1238, %v1234
  %v2203 = vpack.c.b16 %v1239, %v1235
  %v2204 = vpack.c.b16 %v1244, %v1240
  %v2205 = vpack.c.b16 %v1245, %v1241
  %v2206 = vpack.c.b16 %v1246, %v1242
  %v2207 = vpack.c.b16 %v1247, %v1243
  %v2208 = vpack.c.b16 %v1252, %v1248
  %v2209 = vpack.c.b16 %v1253, %v1249
  %v2210 = vpack.c.b16 %v1254, %v1250
  %v2211 = vpack.c.b16 %v1255, %v1251
  %v2212 = vpack.c.b16 %v1260, %v1256
  %v2213 = vpack.c.b16 %v1261, %v1257
  %v2214 = vpack.c.b16 %v1262, %v1258
  %v2215 = vpack.c.b16 %v1263, %v1259
  %v2216 = vpack.c.b16 %v1268, %v1264
  %v2217 = vpack.c.b16 %v1269, %v1265
  %v2218 = vpack.c.b16 %v1270, %v1266
  %v2219 = vpack.c.b16 %v1271, %v1267
  %v2220 = vpack.c.b16 %v1276, %v1272
  %v2221 = vpack.c.b16 %v1277, %v1273
  %v2222 = vpack.c.b16 %v1278, %v1274
  %v2223 = vpack.c.b16 %v1279, %v1275
  %v2224 = vpack.c.b16 %v1284, %v1280
  %v2225 = vpack.c.b16 %v1285, %v1281
  %v2226 = vpack.c.b16 %v1286, %v1282
  %v2227 = vpack.c.b16 %v1287, %v1283
  %v2228 = vpack.c.b16 %v1292, %v1288
  %v2229 = vpack.c.b16 %v1293, %v1289
  %v2230 = vpack.c.b16 %v1294, %v1290
  %v2231 = vpack.c.b16 %v1295, %v1291
  %v2232 = vpack.c.b16 %v1300, %v1296
  %v2233 = vpack.c.b16 %v1301, %v1297
  %v2234 = vpack.c.b16 %v1302, %v1298
  %v2235 = vpack.c.b16 %v1303, %v1299
  %v2236 = vpack.c.b16 %v1308, %v1304
  %v2237 = vpack.c.b16 %v1309, %v1305
  %v2238 = vpack.c.b16 %v1310, %v1306
  %v2239 = vpack.c.b16 %v1311, %v1307
  %v2240 = vpack.c.b16 %v1316, %v1312
  %v2241 = vpack.c.b16 %v1317, %v1313
  %v2242 = vpack.c.b16 %v1318, %v1314
  %v2243 = vpack.c.b16 %v1319, %v1315
  %v2244 = vpack.c.b16 %v1324, %v1320
  %v2245 = vpack.c.b16 %v1325, %v1321
  %v2246 = vpack.c.b16 %v1326, %v1322
  %v2247 = vpack.c.b16 %v1327, %v1323
  %v2248 = vpack.c.b16 %v1332, %v1328
  %v2249 = vpack.c.b16 %v1333, %v1329
  %v2250 = vpack.c.b16 %v1334, %v1330
  %v2251 = vpack.c.b16 %v1335, %v1331
  %v2252 = vpack.c.b16 %v1340, %v1336
  %v2253 = vpack.c.b16 %v1341, %v1337
  %v2254 = vpack.c.b16 %v1342, %v1338
  %v2255 = vpack.c.b16 %v1343, %v1339
  %v2256 = vpack.c.b16 %v1348, %v1344
  %v2257 = vpack.c.b16 %v1349, %v1345
  %v2258 = vpack.c.b16 %v1350, %v1346
  %v2259 = vpack.c.b16 %v1351, %v1347
  %v2260 = vpack.c.b16 %v1356, %v1352
  %v2261 = vpack.c.b16 %v1357, %v1353
  %v2262 = vpack.c.b16 %v1358, %v1354
  %v2263 = vpack.c.b16 %v1359, %v1355
  %v2264 = vpack.c.b16 %v1364, %v1360
  %v2265 = vpack.c.b16 %v1365, %v1361
  %v2266 = vpack.c.b16 %v1366, %v1362
  %v2267 = vpack.c.b16 %v1367, %v1363
  %v2268 = vpack.c.b16 %v1372, %v1368
  %v2269 = vpack.c.b16 %v1373, %v1369
  %v2270 = vpack.c.b16 %v1374, %v1370
  %v2271 = vpack.c.b16 %v1375, %v1371
  %v2272 = vpack.c.b16 %v1380, %v1376
  %v2273 = vpack.c.b16 %v1381, %v1377
  %v2274 = vpack.c.b16 %v1382, %v1378
  %v2275 = vpack.c.b16 %v1383, %v1379
  %v2276 = vpack.c.b16 %v1388, %v1384
  %v2277 = vpack.c.b16 %v1389, %v1385
  %v2278 = vpack.c.b16 %v1390, %v1386
  %v2279 = vpack.c.b16 %v1391, %v1387
  %v2280 = vpack.c.b16 %v1396, %v1392
  %v2281 = vpack.c.b16 %v1397, %v1393
  %v2282 = vpack.c.b16 %v1398, %v1394
  %v2283 = vpack.c.b16 %v1399, %v1395
  %v2284 = vpack.c.b16 %v1404, %v1400
  %v2285 = vpack.c.b16 %v1405, %v1401
  %v2286 = vpack.c.b16 %v1406, %v1402
  %v2287 = vpack.c.b16 %v1407, %v1403
  %v2288 = vpack.c.b16 %v1412, %v1408
  %v2289 = vpack.c.b16 %v1413, %v1409
  %v2290 = vpack.c.b16 %v1414, %v1410
  %v2291 = vpack.c.b16 %v1415, %v1411
  %v2292 = vpack.c.b16 %v1420, %v1416
  %v2293 = vpack.c.b16 %v1421, %v1417
  %v2294 = vpack.c.b16 %v1422, %v1418
  %v2295 = vpack.c.b16 %v1423, %v1419
  %v2296 = vpack.c.b16 %v1428, %v1424
  %v2297 = vpack.c.b16 %v1429, %v1425
  %v2298 = vpack.c.b16 %v1430, %v1426
  %v2299 = vpack.c.b16 %v1431, %v1427
  %v2300 = vpack.c.b16 %v1436, %v1432
  %v2301 = vpack.c.b16 %v1437, %v1433
  %v2302 = vpack.c.b16 %v1438, %v1434
  %v2303 = vpack.c.b16 %v1439, %v1435
  %v2304 = vpack.c.b16 %v1444, %v1440
  %v2305 = vpack.c.b16 %v1445, %v1441
  %v2306 = vpack.c.b16 %v1446, %v1442
  %v2307 = vpack.c.b16 %v1447, %v1443
  %v2308 = vpack.c.b16 %v1452, %v1448
  %v2309 = vpack.c.b16 %v1453, %v1449
  %v2310 = vpack.c.b16 %v1454, %v1450
  %v2311 = vpack.c.b16 %v1455, %v1451
  %v2312 = vpack.c.b16 %v1460, %v1456
  %v2313 = vpack.c.b16 %v1461, %v1457
  %v2314 = vpack.c.b16 %v1462, %v1458
  %v2315 = vpack.c.b16 %v1463, %v1459
  %v2316 = vpack.c.b16 %v1468, %v1464
  %v2317 = vpack.c.b16 %v1469, %v1465
  %v2318 = vpack.c.b16 %v1470, %v1466
  %v2319 = vpack.c.b16 %v1471, %v1467
  %v2320 = vpack.c.b16 %v1476, %v1472
  %v2321 = vpack.c.b16 %v1477, %v1473
  %v2322 = vpack.c.b16 %v1478, %v1474
  %v2323 = vpack.c.b16 %v1479, %v1475
  %v2324 = vpack.c.b16 %v1484, %v1480
  %v2325 = vpack.c.b16 %v1485, %v1481
  %v2326 = vpack.c.b16 %v1486, %v1482
  %v2327 = vpack.c.b16 %v1487, %v1483
  %v2328 = vpack.c.b16 %v1492, %v1488
  %v2329 = vpack.c.b16 %v1493, %v1489
  %v2330 = vpack.c.b16 %v1494, %v1490
  %v2331 = vpack.c.b16 %v1495, %v1491
  %v2332 = vpack.c.b16 %v1500, %v1496
  %v2333 = vpack.c.b16 %v1501, %v1497
  %v2334 = vpack.c.b16 %v1502, %v1498
  %v2335 = vpack.c.b16 %v1503, %v1499
  %v2336 = vpack.c.b16 %v1508, %v1504
  %v2337 = vpack.c.b16 %v1509, %v1505
  %v2338 = vpack.c.b16 %v1510, %v1506
  %v2339 = vpack.c.b16 %v1511, %v1507
  %v2340 = vpack.c.b16 %v1516, %v1512
  %v2341 = vpack.c.b16 %v1517, %v1513
  %v2342 = vpack.c.b16 %v1518, %v1514
  %v2343 = vpack.c.b16 %v1519, %v1515
  %v2344 = vpack.c.b16 %v1524, %v1520
  %v2345 = vpack.c.b16 %v1525, %v1521
  %v2346 = vpack.c.b16 %v1526, %v1522
  %v2347 = vpack.c.b16 %v1527, %v1523
  %v2348 = vpack.c.b16 %v1532, %v1528
  %v2349 = vpack.c.b16 %v1533, %v1529
  %v2350 = vpack.c.b16 %v1534, %v1530
  %v2351 = vpack.c.b16 %v1535, %v1531
  %v2352 = vpack.c.b16 %v1540, %v1536
  %v2353 = vpack.c.b16 %v1541, %v1537
  %v2354 = vpack.c.b16 %v1542, %v1538
  %v2355 = vpack.c.b16 %v1543, %v1539
  %v2356 = vpack.c.b16 %v1548, %v1544
  %v2357 = vpack.c.b16 %v1549, %v1545
  %v2358 = vpack.c.b16 %v1550, %v1546
  %v2359 = vpack.c.b16 %v1551, %v1547
  %v2360 = vpack.c.b16 %v1556, %v1552
  %v2361 = vpack.c.b16 %v1557, %v1553
  %v2362 = vpack.c.b16 %v1558, %v1554
  %v2363 = vpack.c.b16 %v1559, %v1555
  %v2364 = vpack.c.b16 %v1564, %v1560
  %v2365 = vpack.c.b16 %v1565, %v1561
  %v2366 = vpack.c.b16 %v1566, %v1562
  %v2367 = vpack.c.b16 %v1567, %v1563
  %v2368 = vpack.c.b16 %v1572, %v1568
  %v2369 = vpack.c.b16 %v1573, %v1569
  %v2370 = vpack.c.b16 %v1574, %v1570
  %v2371 = vpack.c.b16 %v1575, %v1571
  %v2372 = vpack.c.b16 %v1580, %v1576
  %v2373 = vpack.c.b16 %v1581, %v1577
  %v2374 = vpack.c.b16 %v1582, %v1578
  %v2375 = vpack.c.b16 %v1583, %v1579
  %v2376 = vpack.c.b16 %v1588, %v1584
  %v2377 = vpack.c.b16 %v1589, %v1585
  %v2378 = vpack.c.b16 %v1590, %v1586
  %v2379 = vpack.c.b16 %v1591, %v1587
  %v2380 = vpack.c.b16 %v1596, %v1592
  %v2381 = vpack.c.b16 %v1597, %v1593
  %v2382 = vpack.c.b16 %v1598, %v1594
  %v2383 = vpack.c.b16 %v1599, %v1595
  %v2384 = vpack.c.b16 %v1604, %v1600
  %v2385 = vpack.c.b16 %v1605, %v1601
  %v2386 = vpack.c.b16 %v1606, %v1602
  %v2387 = vpack.c.b16 %v1607, %v1603
  %v2388 = vpack.c.b16 %v1612, %v1608
  %v2389 = vpack.c.b16 %v1613, %v1609
  %v2390 = vpack.c.b16 %v1614, %v1610
  %v2391 = vpack.c.b16 %v1615, %v1611
  %v2392 = vpack.c.b16 %v1620, %v1616
  %v2393 = vpack.c.b16 %v1621, %v1617
  %v2394 = vpack.c.b16 %v1622, %v1618
  %v2395 = vpack.c.b16 %v1623, %v1619
  %v2396 = vpack.c.b16 %v1628, %v1624
  %v2397 = vpack.c.b16 %v1629, %v1625
  %v2398 = vpack.c.b16 %v1630, %v1626
  %v2399 = vpack.c.b16 %v1631, %v1627
  %v2400 = vpack.c.b16 %v1636, %v1632
  %v2401 = vpack.c.b16 %v1637, %v1633
  %v2402 = vpack.c.b16 %v1638, %v1634
  %v2403 = vpack.c.b16 %v1639, %v1635
  %v2404 = vpack.c.b16 %v1644, %v1640
  %v2405 = vpack.c.b16 %v1645, %v1641
  %v2406 = vpack.c.b16 %v1646, %v1642
  %v2407 = vpack.c.b16 %v1647, %v1643
  %v2408 = vpack.c.b16 %v1652, %v1648
  %v2409 = vpack.c.b16 %v1653, %v1649
  %v2410 = vpack.c.b16 %v1654, %v1650
  %v2411 = vpack.c.b16 %v1655, %v1651
  %v2412 = vpack.c.b16 %v1660, %v1656
  %v2413 = vpack.c.b16 %v1661, %v1657
  %v2414 = vpack.c.b16 %v1662, %v1658
  %v2415 = vpack.c.b16 %v1663, %v1659
  %v2416 = vpack.c.b16 %v1668, %v1664
  %v2417 = vpack.c.b16 %v1669, %v1665
  %v2418 = vpack.c.b16 %v1670, %v1666
  %v2419 = vpack.c.b16 %v1671, %v1667
  %v2420 = vpack.c.b16 %v1676, %v1672
  %v2421 = vpack.c.b16 %v1677, %v1673
  %v2422 = vpack.c.b16 %v1678, %v1674
  %v2423 = vpack.c.b16 %v1679, %v1675
  %v2424 = vpack.c.b16 %v1684, %v1680
  %v2425 = vpack.c.b16 %v1685, %v1681
  %v2426 = vpack.c.b16 %v1686, %v1682
  %v2427 = vpack.c.b16 %v1687, %v1683
  %v2428 = vpack.c.b16 %v1692, %v1688
  %v2429 = vpack.c.b16 %v1693, %v1689
  %v2430 = vpack.c.b16 %v1694, %v1690
  %v2431 = vpack.c.b16 %v1695, %v1691
  %v2432 = vpack.c.b16 %v1700, %v1696
  %v2433 = vpack.c.b16 %v1701, %v1697
  %v2434 = vpack.c.b16 %v1702, %v1698
  %v2435 = vpack.c.b16 %v1703, %v1699
  %v2436 = vpack.c.b16 %v1708, %v1704
  %v2437 = vpack.c.b16 %v1709, %v1705
  %v2438 = vpack.c.b16 %v1710, %v1706
  %v2439 = vpack.c.b16 %v1711, %v1707
  %v2440 = vpack.c.b16 %v1716, %v1712
  %v2441 = vpack.c.b16 %v1717, %v1713
  %v2442 = vpack.c.b16 %v1718, %v1714
  %v2443 = vpack.c.b16 %v1719, %v1715
  %v2444 = vpack.c.b16 %v1724, %v1720
  %v2445 = vpack.c.b16 %v1725, %v1721
  %v2446 = vpack.c.b16 %v1726, %v1722
  %v2447 = vpack.c.b16 %v1727, %v1723
  %v2448 = vpack.c.b16 %v1732, %v1728
  %v2449 = vpack.c.b16 %v1733, %v1729
  %v2450 = vpack.c.b16 %v1734, %v1730
  %v2451 = vpack.c.b16 %v1735, %v1731
  %v2452 = vpack.c.b16 %v1740, %v1736
  %v2453 = vpack.c.b16 %v1741, %v1737
  %v2454 = vpack.c.b16 %v1742, %v1738
  %v2455 = vpack.c.b16 %v1743, %v1739
  %v2456 = vpack.c.b16 %v1748, %v1744
  %v2457 = vpack.c.b16 %v1749, %v1745
  %v2458 = vpack.c.b16 %v1750, %v1746
  %v2459 = vpack.c.b16 %v1751, %v1747
  %v2460 = vpack.c.b16 %v1756, %v1752
  %v2461 = vpack.c.b16 %v1757, %v1753
  %v2462 = vpack.c.b16 %v1758, %v1754
  %v2463 = vpack.c.b16 %v1759, %v1755
  %v2464 = vpack.c.b16 %v1764, %v1760
  %v2465 = vpack.c.b16 %v1765, %v1761
  %v2466 = vpack.c.b16 %v1766, %v1762
  %v2467 = vpack.c.b16 %v1767, %v1763
  %v2468 = vpack.c.b16 %v1772, %v1768
  %v2469 = vpack.c.b16 %v1773, %v1769
  %v2470 = vpack.c.b16 %v1774, %v1770
  %v2471 = vpack.c.b16 %v1775, %v1771
  %v2472 = vpack.c.b16 %v1780, %v1776
  %v2473 = vpack.c.b16 %v1781, %v1777
  %v2474 = vpack.c.b16 %v1782, %v1778
  %v2475 = vpack.c.b16 %v1783, %v1779
  %v2476 = vpack.c.b16 %v1788, %v1784
  %v2477 = vpack.c.b16 %v1789, %v1785
  %v2478 = vpack.c.b16 %v1790, %v1786
  %v2479 = vpack.c.b16 %v1791, %v1787
  %v2480 = vpack.c.b16 %v1796, %v1792
  %v2481 = vpack.c.b16 %v1797, %v1793
  %v2482 = vpack.c.b16 %v1798, %v1794
  %v2483 = vpack.c.b16 %v1799, %v1795
  %v2484 = vpack.c.b16 %v1804, %v1800
  %v2485 = vpack.c.b16 %v1805, %v1801
  %v2486 = vpack.c.b16 %v1806, %v1802
  %v2487 = vpack.c.b16 %v1807, %v1803
  %v2488 = vpack.c.b16 %v1812, %v1808
  %v2489 = vpack.c.b16 %v1813, %v1809
  %v2490 = vpack.c.b16 %v1814, %v1810
  %v2491 = vpack.c.b16 %v1815, %v1811
  %v2492 = vpack.c.b16 %v1820, %v1816
  %v2493 = vpack.c.b16 %v1821, %v1817
  %v2494 = vpack.c.b16 %v1822, %v1818
  %v2495 = vpack.c.b16 %v1823, %v1819
  %v2496 = vpack.c.b16 %v1828, %v1824
  %v2497 = vpack.c.b16 %v1829, %v1825
  %v2498 = vpack.c.b16 %v1830, %v1826
  %v2499 = vpack.c.b16 %v1831, %v1827
  %v2500 = vpack.c.b16 %v1836, %v1832
  %v2501 = vpack.c.b16 %v1837, %v1833
  %v2502 = vpack.c.b16 %v1838, %v1834
  %v2503 = vpack.c.b16 %v1839, %v1835
  %v2504 = vpack.c.b16 %v1844, %v1840
  %v2505 = vpack.c.b16 %v1845, %v1841
  %v2506 = vpack.c.b16 %v1846, %v1842
  %v2507 = vpack.c.b16 %v1847, %v1843
  %v2508 = vpack.c.b16 %v1852, %v1848
  %v2509 = vpack.c.b16 %v1853, %v1849
  %v2510 = vpack.c.b16 %v1854, %v1850
  %v2511 = vpack.c.b16 %v1855, %v1851
  %v2512 = vpack.c.b16 %v1860, %v1856
  %v2513 = vpack.c.b16 %v1861, %v1857
  %v2514 = vpack.c.b16 %v1862, %v1858
  %v2515 = vpack.c.b16 %v1863, %v1859
  %v2516 = vpack.c.b16 %v1868, %v1864
  %v2517 = vpack.c.b16 %v1869, %v1865
  %v2518 = vpack.c.b16 %v1870, %v1866
  %v2519 = vpack.c.b16 %v1871, %v1867
  %v2520 = vpack.c.b16 %v1876, %v1872
  %v2521 = vpack.c.b16 %v1877, %v1873
  %v2522 = vpack.c.b16 %v1878, %v1874
  %v2523 = vpack.c.b16 %v1879, %v1875
  %v2524 = vpack.c.b16 %v1884, %v1880
  %v2525 = vpack.c.b16 %v1885, %v1881
  %v2526 = vpack.c.b16 %v1886, %v1882
  %v2527 = vpack.c.b16 %v1887, %v1883
  %v2528 = vpack.c.b16 %v1892, %v1888
  %v2529 = vpack.c.b16 %v1893, %v1889
  %v2530 = vpack.c.b16 %v1894, %v1890
  %v2531 = vpack.c.b16 %v1895, %v1891
  %v2532 = vpack.c.b16 %v1900, %v1896
  %v2533 = vpack.c.b16 %v1901, %v1897
  %v2534 = vpack.c.b16 %v1902, %v1898
  %v2535 = vpack.c.b16 %v1903, %v1899
  %v2536 = vpack.c.b16 %v1908, %v1904
  %v2537 = vpack.c.b16 %v1909, %v1905
  %v2538 = vpack.c.b16 %v1910, %v1906
  %v2539 = vpack.c.b16 %v1911, %v1907
  %v2540 = vpack.c.b16 %v1916, %v1912
  %v2541 = vpack.c.b16 %v1917, %v1913
  %v2542 = vpack.c.b16 %v1918, %v1914
  %v2543 = vpack.c.b16 %v1919, %v1915
  %v2544 = vpack.c.b16 %v1924, %v1920
  %v2545 = vpack.c.b16 %v1925, %v1921
  %v2546 = vpack.c.b16 %v1926, %v1922
  %v2547 = vpack.c.b16 %v1927, %v1923
  %v2548 = vpack.c.b16 %v1932, %v1928
  %v2549 = vpack.c.b16 %v1933, %v1929
  %v2550 = vpack.c.b16 %v1934, %v1930
  %v2551 = vpack.c.b16 %v1935, %v1931
  %v2552 = vpack.c.b16 %v1940, %v1936
  %v2553 = vpack.c.b16 %v1941, %v1937
  %v2554 = vpack.c.b16 %v1942, %v1938
  %v2555 = vpack.c.b16 %v1943, %v1939
  %v2556 = vpack.c.b16 %v1948, %v1944
  %v2557 = vpack.c.b16 %v1949, %v1945
  %v2558 = vpack.c.b16 %v1950, %v1946
  %v2559 = vpack.c.b16 %v1951, %v1947
  %v2560 = vpack.c.b16 %v1956, %v1952
  %v2561 = vpack.c.b16 %v1957, %v1953
  %v2562 = vpack.c.b16 %v1958, %v1954
  %v2563 = vpack.c.b16 %v1959, %v1955
  %v2564 = vpack.c.b16 %v1964, %v1960
  %v2565 = vpack.c.b16 %v1965, %v1961
  %v2566 = vpack.c.b16 %v1966, %v1962
  %v2567 = vpack.c.b16 %v1967, %v1963
  %v2568 = vpack.c.b16 %v1972, %v1968
  %v2569 = vpack.c.b16 %v1973, %v1969
  %v2570 = vpack.c.b16 %v1974, %v1970
  %v2571 = vpack.c.b16 %v1975, %v1971
  %v2572 = vpack.c.b16 %v1980, %v1976
  %v2573 = vpack.c.b16 %v1981, %v1977
  %v2574 = vpack.c.b16 %v1982, %v1978
  %v2575 = vpack.c.b16 %v1983, %v1979
  %v2576 = vpack.c.b16 %v1988, %v1984
  %v2577 = vpack.c.b16 %v1989, %v1985
  %v2578 = vpack.c.b16 %v1990, %v1986
  %v2579 = vpack.c.b16 %v1991, %v1987
  %v2580 = vpack.c.b16 %v1996, %v1992
  %v2581 = vpack.c.b16 %v1997, %v1993
  %v2582 = vpack.c.b16 %v1998, %v1994
  %v2583 = vpack.c.b16 %v1999, %v1995
  %v2584 = vpack.c.b16 %v2004, %v2000
  %v2585 = vpack.c.b16 %v2005, %v2001
  %v2586 = vpack.c.b16 %v2006, %v2002
  %v2587 = vpack.c.b16 %v2007, %v2003
  %v2588 = vpack.c.b16 %v2012, %v2008
  %v2589 = vpack.c.b16 %v2013, %v2009
  %v2590 = vpack.c.b16 %v2014, %v2010
  %v2591 = vpack.c.b16 %v2015, %v2011
  %v2592 = vpack.c.b16 %v2020, %v2016
  %v2593 = vpack.c.b16 %v2021, %v2017
  %v2594 = vpack.c.b16 %v2022, %v2018
  %v2595 = vpack.c.b16 %v2023, %v2019
  %v2596 = vpack.c.b16 %v2028, %v2024
  %v2597 = vpack.c.b16 %v2029, %v2025
  %v2598 = vpack.c.b16 %v2030, %v2026
  %v2599 = vpack.c.b16 %v2031, %v2027
  %v2600 = vpack.c.b16 %v2036, %v2032
  %v2601 = vpack.c.b16 %v2037, %v2033
  %v2602 = vpack.c.b16 %v2038, %v2034
  %v2603 = vpack.c.b16 %v2039, %v2035
  %v2604 = vpack.c.b16 %v2044, %v2040
  %v2605 = vpack.c.b16 %v2045, %v2041
  %v2606 = vpack.c.b16 %v2046, %v2042
  %v2607 = vpack.c.b16 %v2047, %v2043
  %v2608 = vpack.c.b16 %v2052, %v2048
  %v2609 = vpack.c.b16 %v2053, %v2049
  %v2610 = vpack.c.b16 %v2054, %v2050
  %v2611 = vpack.c.b16 %v2055, %v2051
  %v2612 = vpack.c.b16 %v2060, %v2056
  %v2613 = vpack.c.b16 %v2061, %v2057
  %v2614 = vpack.c.b16 %v2062, %v2058
  %v2615 = vpack.c.b16 %v2063, %v2059
  %v2616 = vpack.c.b16 %v2068, %v2064
  %v2617 = vpack.c.b16 %v2069, %v2065
  %v2618 = vpack.c.b16 %v2070, %v2066
  %v2619 = vpack.c.b16 %v2071, %v2067
  %v2620 = vpack.c.b16 %v2076, %v2072
  %v2621 = vpack.c.b16 %v2077, %v2073
  %v2622 = vpack.c.b16 %v2078, %v2074
  %v2623 = vpack.c.b16 %v2079, %v2075
  %v2624 = vpack.c.b16 %v2084, %v2080
  %v2625 = vpack.c.b16 %v2085, %v2081
  %v2626 = vpack.c.b16 %v2086, %v2082
  %v2627 = vpack.c.b16 %v2087, %v2083
  %v2628 = vpack.c.b16 %v2092, %v2088
  %v2629 = vpack.c.b16 %v2093, %v2089
  %v2630 = vpack.c.b16 %v2094, %v2090
  %v2631 = vpack.c.b16 %v2095, %v2091
  %v2632 = vpack.c.b16 %v2100, %v2096
  %v2633 = vpack.c.b16 %v2101, %v2097
  %v2634 = vpack.c.b16 %v2102, %v2098
  %v2635 = vpack.c.b16 %v2103, %v2099
  %v2636 = vpack.c.b16 %v2108, %v2104
  %v2637 = vpack.c.b16 %v2109, %v2105
  %v2638 = vpack.c.b16 %v2110, %v2106
  %v2639 = vpack.c.b16 %v2111, %v2107
  %v2640 = vpack.c.b16 %v2116, %v2112
  %v2641 = vpack.c.b16 %v2117, %v2113
  %v2642 = vpack.c.b16 %v2118, %v2114
  %v2643 = vpack.c.b16 %v2119, %v2115
  %v2644 = vpack.c.b16 %v2124, %v2120
  %v2645 = vpack.c.b16 %v2125, %v2121
  %v2646 = vpack.c.b16 %v2126, %v2122
  %v2647 = vpack.c.b16 %v2127, %v2123
  %v2648 = vpack.c.b16 %v2132, %v2128
  %v2649 = vpack.c.b16 %v2133, %v2129
  %v2650 = vpack.c.b16 %v2134, %v2130
  %v2651 = vpack.c.b16 %v2135, %v2131
  %v2652 = vpack.c.b16 %v2140, %v2136
  %v2653 = vpack.c.b16 %v2141, %v2137
  %v2654 = vpack.c.b16 %v2142, %v2138
  %v2655 = vpack.c.b16 %v2143, %v2139
  %3168 = vmatpush.bf16.msra.mxu0 %v2172
  %3169 = vmatpush.bf16.msra.mxu0 %v2168
  %3170 = vmatpush.bf16.msra.mxu0 %v2164
  %3171 = vmatpush.bf16.msra.mxu0 %v2160
  %3172 = vmatpush.bf16.msra.mxu0 %v2156
  %3173 = vmatpush.bf16.msra.mxu0 %v2152
  %3174 = vmatpush.bf16.msra.mxu0 %v2148
  %3175 = vmatpush.bf16.msra.mxu0 %v2144
  %3176 = vmatmul.bf16.gmra.mxu0 %v576
  %v3177 = vpop.f32.mrf.mxu0
  %v3178 = vadd.f32 %v544, %v3177
  %v3179 = vpop.f32.mrf.mxu0
  %3180 = vdwg.mxu0
  %3181 = vmatpush.bf16.msra.mxu0 %v2204
  %3182 = vmatpush.bf16.msra.mxu0 %v2200
  %3183 = vmatpush.bf16.msra.mxu0 %v2196
  %3184 = vmatpush.bf16.msra.mxu0 %v2192
  %3185 = vmatpush.bf16.msra.mxu0 %v2188
  %3186 = vmatpush.bf16.msra.mxu0 %v2184
  %3187 = vmatpush.bf16.msra.mxu0 %v2180
  %3188 = vmatpush.bf16.msra.mxu0 %v2176
  %3189 = vmatmul.bf16.gmra.mxu0 %v577
  %v3190 = vpop.f32.mrf.mxu0
  %v3191 = vadd.f32 %v3178, %v3190
  %v3192 = vpop.f32.mrf.mxu0
  %3193 = vdwg.mxu0
  %3194 = vmatpush.bf16.msra.mxu0 %v2236
  %3195 = vmatpush.bf16.msra.mxu0 %v2232
  %3196 = vmatpush.bf16.msra.mxu0 %v2228
  %3197 = vmatpush.bf16.msra.mxu0 %v2224
  %3198 = vmatpush.bf16.msra.mxu0 %v2220
  %3199 = vmatpush.bf16.msra.mxu0 %v2216
  %3200 = vmatpush.bf16.msra.mxu0 %v2212
  %3201 = vmatpush.bf16.msra.mxu0 %v2208
  %3202 = vmatmul.bf16.gmra.mxu0 %v578
  %v3203 = vpop.f32.mrf.mxu0
  %v3204 = vadd.f32 %v3191, %v3203
  %v3205 = vpop.f32.mrf.mxu0
  %3206 = vdwg.mxu0
  %3207 = vmatpush.bf16.msra.mxu0 %v2268
  %3208 = vmatpush.bf16.msra.mxu0 %v2264
  %3209 = vmatpush.bf16.msra.mxu0 %v2260
  %3210 = vmatpush.bf16.msra.mxu0 %v2256
  %3211 = vmatpush.bf16.msra.mxu0 %v2252
  %3212 = vmatpush.bf16.msra.mxu0 %v2248
  %3213 = vmatpush.bf16.msra.mxu0 %v2244
  %3214 = vmatpush.bf16.msra.mxu0 %v2240
  %3215 = vmatmul.bf16.gmra.mxu0 %v579
  %v3216 = vpop.f32.mrf.mxu0
  %v3217 = vadd.f32 %v3204, %v3216
  %v3218 = vpop.f32.mrf.mxu0
  %3219 = vdwg.mxu0
  %3220 = vmatpush.bf16.msra.mxu0 %v2300
  %3221 = vmatpush.bf16.msra.mxu0 %v2296
  %3222 = vmatpush.bf16.msra.mxu0 %v2292
  %3223 = vmatpush.bf16.msra.mxu0 %v2288
  %3224 = vmatpush.bf16.msra.mxu0 %v2284
  %3225 = vmatpush.bf16.msra.mxu0 %v2280
  %3226 = vmatpush.bf16.msra.mxu0 %v2276
  %3227 = vmatpush.bf16.msra.mxu0 %v2272
  %3228 = vmatmul.bf16.gmra.mxu0 %v580
  %v3229 = vpop.f32.mrf.mxu0
  %v3230 = vadd.f32 %v3217, %v3229
  %v3231 = vpop.f32.mrf.mxu0
  %3232 = vdwg.mxu0
  %3233 = vmatpush.bf16.msra.mxu0 %v2332
  %3234 = vmatpush.bf16.msra.mxu0 %v2328
  %3235 = vmatpush.bf16.msra.mxu0 %v2324
  %3236 = vmatpush.bf16.msra.mxu0 %v2320
  %3237 = vmatpush.bf16.msra.mxu0 %v2316
  %3238 = vmatpush.bf16.msra.mxu0 %v2312
  %3239 = vmatpush.bf16.msra.mxu0 %v2308
  %3240 = vmatpush.bf16.msra.mxu0 %v2304
  %3241 = vmatmul.bf16.gmra.mxu0 %v581
  %v3242 = vpop.f32.mrf.mxu0
  %v3243 = vadd.f32 %v3230, %v3242
  %v3244 = vpop.f32.mrf.mxu0
  %3245 = vdwg.mxu0
  %3246 = vmatpush.bf16.msra.mxu0 %v2364
  %3247 = vmatpush.bf16.msra.mxu0 %v2360
  %3248 = vmatpush.bf16.msra.mxu0 %v2356
  %3249 = vmatpush.bf16.msra.mxu0 %v2352
  %3250 = vmatpush.bf16.msra.mxu0 %v2348
  %3251 = vmatpush.bf16.msra.mxu0 %v2344
  %3252 = vmatpush.bf16.msra.mxu0 %v2340
  %3253 = vmatpush.bf16.msra.mxu0 %v2336
  %3254 = vmatmul.bf16.gmra.mxu0 %v582
  %v3255 = vpop.f32.mrf.mxu0
  %v3256 = vadd.f32 %v3243, %v3255
  %v3257 = vpop.f32.mrf.mxu0
  %3258 = vdwg.mxu0
  %3259 = vmatpush.bf16.msra.mxu0 %v2396
  %3260 = vmatpush.bf16.msra.mxu0 %v2392
  %3261 = vmatpush.bf16.msra.mxu0 %v2388
  %3262 = vmatpush.bf16.msra.mxu0 %v2384
  %3263 = vmatpush.bf16.msra.mxu0 %v2380
  %3264 = vmatpush.bf16.msra.mxu0 %v2376
  %3265 = vmatpush.bf16.msra.mxu0 %v2372
  %3266 = vmatpush.bf16.msra.mxu0 %v2368
  %3267 = vmatmul.bf16.gmra.mxu0 %v583
  %v3268 = vpop.f32.mrf.mxu0
  %v3269 = vadd.f32 %v3256, %v3268
  %v3270 = vpop.f32.mrf.mxu0
  %3271 = vdwg.mxu0
  %3272 = vmatpush.bf16.msra.mxu0 %v2428
  %3273 = vmatpush.bf16.msra.mxu0 %v2424
  %3274 = vmatpush.bf16.msra.mxu0 %v2420
  %3275 = vmatpush.bf16.msra.mxu0 %v2416
  %3276 = vmatpush.bf16.msra.mxu0 %v2412
  %3277 = vmatpush.bf16.msra.mxu0 %v2408
  %3278 = vmatpush.bf16.msra.mxu0 %v2404
  %3279 = vmatpush.bf16.msra.mxu0 %v2400
  %3280 = vmatmul.bf16.gmra.mxu0 %v584
  %v3281 = vpop.f32.mrf.mxu0
  %v3282 = vadd.f32 %v3269, %v3281
  %v3283 = vpop.f32.mrf.mxu0
  %3284 = vdwg.mxu0
  %3285 = vmatpush.bf16.msra.mxu0 %v2460
  %3286 = vmatpush.bf16.msra.mxu0 %v2456
  %3287 = vmatpush.bf16.msra.mxu0 %v2452
  %3288 = vmatpush.bf16.msra.mxu0 %v2448
  %3289 = vmatpush.bf16.msra.mxu0 %v2444
  %3290 = vmatpush.bf16.msra.mxu0 %v2440
  %3291 = vmatpush.bf16.msra.mxu0 %v2436
  %3292 = vmatpush.bf16.msra.mxu0 %v2432
  %3293 = vmatmul.bf16.gmra.mxu0 %v585
  %v3294 = vpop.f32.mrf.mxu0
  %v3295 = vadd.f32 %v3282, %v3294
  %v3296 = vpop.f32.mrf.mxu0
  %3297 = vdwg.mxu0
  %3298 = vmatpush.bf16.msra.mxu0 %v2492
  %3299 = vmatpush.bf16.msra.mxu0 %v2488
  %3300 = vmatpush.bf16.msra.mxu0 %v2484
  %3301 = vmatpush.bf16.msra.mxu0 %v2480
  %3302 = vmatpush.bf16.msra.mxu0 %v2476
  %3303 = vmatpush.bf16.msra.mxu0 %v2472
  %3304 = vmatpush.bf16.msra.mxu0 %v2468
  %3305 = vmatpush.bf16.msra.mxu0 %v2464
  %3306 = vmatmul.bf16.gmra.mxu0 %v586
  %v3307 = vpop.f32.mrf.mxu0
  %v3308 = vadd.f32 %v3295, %v3307
  %v3309 = vpop.f32.mrf.mxu0
  %3310 = vdwg.mxu0
  %3311 = vmatpush.bf16.msra.mxu0 %v2524
  %3312 = vmatpush.bf16.msra.mxu0 %v2520
  %3313 = vmatpush.bf16.msra.mxu0 %v2516
  %3314 = vmatpush.bf16.msra.mxu0 %v2512
  %3315 = vmatpush.bf16.msra.mxu0 %v2508
  %3316 = vmatpush.bf16.msra.mxu0 %v2504
  %3317 = vmatpush.bf16.msra.mxu0 %v2500
  %3318 = vmatpush.bf16.msra.mxu0 %v2496
  %3319 = vmatmul.bf16.gmra.mxu0 %v587
  %v3320 = vpop.f32.mrf.mxu0
  %v3321 = vadd.f32 %v3308, %v3320
  %v3322 = vpop.f32.mrf.mxu0
  %3323 = vdwg.mxu0
  %3324 = vmatpush.bf16.msra.mxu0 %v2556
  %3325 = vmatpush.bf16.msra.mxu0 %v2552
  %3326 = vmatpush.bf16.msra.mxu0 %v2548
  %3327 = vmatpush.bf16.msra.mxu0 %v2544
  %3328 = vmatpush.bf16.msra.mxu0 %v2540
  %3329 = vmatpush.bf16.msra.mxu0 %v2536
  %3330 = vmatpush.bf16.msra.mxu0 %v2532
  %3331 = vmatpush.bf16.msra.mxu0 %v2528
  %3332 = vmatmul.bf16.gmra.mxu0 %v588
  %v3333 = vpop.f32.mrf.mxu0
  %v3334 = vadd.f32 %v3321, %v3333
  %v3335 = vpop.f32.mrf.mxu0
  %3336 = vdwg.mxu0
  %3337 = vmatpush.bf16.msra.mxu0 %v2588
  %3338 = vmatpush.bf16.msra.mxu0 %v2584
  %3339 = vmatpush.bf16.msra.mxu0 %v2580
  %3340 = vmatpush.bf16.msra.mxu0 %v2576
  %3341 = vmatpush.bf16.msra.mxu0 %v2572
  %3342 = vmatpush.bf16.msra.mxu0 %v2568
  %3343 = vmatpush.bf16.msra.mxu0 %v2564
  %3344 = vmatpush.bf16.msra.mxu0 %v2560
  %3345 = vmatmul.bf16.gmra.mxu0 %v589
  %v3346 = vpop.f32.mrf.mxu0
  %v3347 = vadd.f32 %v3334, %v3346
  %v3348 = vpop.f32.mrf.mxu0
  %3349 = vdwg.mxu0
  %3350 = vmatpush.bf16.msra.mxu0 %v2620
  %3351 = vmatpush.bf16.msra.mxu0 %v2616
  %3352 = vmatpush.bf16.msra.mxu0 %v2612
  %3353 = vmatpush.bf16.msra.mxu0 %v2608
  %3354 = vmatpush.bf16.msra.mxu0 %v2604
  %3355 = vmatpush.bf16.msra.mxu0 %v2600
  %3356 = vmatpush.bf16.msra.mxu0 %v2596
  %3357 = vmatpush.bf16.msra.mxu0 %v2592
  %3358 = vmatmul.bf16.gmra.mxu0 %v590
  %v3359 = vpop.f32.mrf.mxu0
  %v3360 = vadd.f32 %v3347, %v3359
  %v3361 = vpop.f32.mrf.mxu0
  %3362 = vdwg.mxu0
  %3363 = vmatpush.bf16.msra.mxu0 %v2652
  %3364 = vmatpush.bf16.msra.mxu0 %v2648
  %3365 = vmatpush.bf16.msra.mxu0 %v2644
  %3366 = vmatpush.bf16.msra.mxu0 %v2640
  %3367 = vmatpush.bf16.msra.mxu0 %v2636
  %3368 = vmatpush.bf16.msra.mxu0 %v2632
  %3369 = vmatpush.bf16.msra.mxu0 %v2628
  %3370 = vmatpush.bf16.msra.mxu0 %v2624
  %3371 = vmatmul.bf16.gmra.mxu0 %v591
  %v3372 = vpop.f32.mrf.mxu0
  %v3373 = vadd.f32 %v3360, %v3372
  %v3374 = vpop.f32.mrf.mxu0
  %3375 = vdwg.mxu0
  %3376 = vmatpush.bf16.msra.mxu0 %v2173
  %3377 = vmatpush.bf16.msra.mxu0 %v2169
  %3378 = vmatpush.bf16.msra.mxu0 %v2165
  %3379 = vmatpush.bf16.msra.mxu0 %v2161
  %3380 = vmatpush.bf16.msra.mxu0 %v2157
  %3381 = vmatpush.bf16.msra.mxu0 %v2153
  %3382 = vmatpush.bf16.msra.mxu0 %v2149
  %3383 = vmatpush.bf16.msra.mxu0 %v2145
  %3384 = vmatmul.bf16.gmra.mxu0 %v576
  %v3385 = vpop.f32.mrf.mxu0
  %v3386 = vadd.f32 %v545, %v3385
  %v3387 = vpop.f32.mrf.mxu0
  %3388 = vdwg.mxu0
  %3389 = vmatpush.bf16.msra.mxu0 %v2205
  %3390 = vmatpush.bf16.msra.mxu0 %v2201
  %3391 = vmatpush.bf16.msra.mxu0 %v2197
  %3392 = vmatpush.bf16.msra.mxu0 %v2193
  %3393 = vmatpush.bf16.msra.mxu0 %v2189
  %3394 = vmatpush.bf16.msra.mxu0 %v2185
  %3395 = vmatpush.bf16.msra.mxu0 %v2181
  %3396 = vmatpush.bf16.msra.mxu0 %v2177
  %3397 = vmatmul.bf16.gmra.mxu0 %v577
  %v3398 = vpop.f32.mrf.mxu0
  %v3399 = vadd.f32 %v3386, %v3398
  %v3400 = vpop.f32.mrf.mxu0
  %3401 = vdwg.mxu0
  %3402 = vmatpush.bf16.msra.mxu0 %v2237
  %3403 = vmatpush.bf16.msra.mxu0 %v2233
  %3404 = vmatpush.bf16.msra.mxu0 %v2229
  %3405 = vmatpush.bf16.msra.mxu0 %v2225
  %3406 = vmatpush.bf16.msra.mxu0 %v2221
  %3407 = vmatpush.bf16.msra.mxu0 %v2217
  %3408 = vmatpush.bf16.msra.mxu0 %v2213
  %3409 = vmatpush.bf16.msra.mxu0 %v2209
  %3410 = vmatmul.bf16.gmra.mxu0 %v578
  %v3411 = vpop.f32.mrf.mxu0
  %v3412 = vadd.f32 %v3399, %v3411
  %v3413 = vpop.f32.mrf.mxu0
  %3414 = vdwg.mxu0
  %3415 = vmatpush.bf16.msra.mxu0 %v2269
  %3416 = vmatpush.bf16.msra.mxu0 %v2265
  %3417 = vmatpush.bf16.msra.mxu0 %v2261
  %3418 = vmatpush.bf16.msra.mxu0 %v2257
  %3419 = vmatpush.bf16.msra.mxu0 %v2253
  %3420 = vmatpush.bf16.msra.mxu0 %v2249
  %3421 = vmatpush.bf16.msra.mxu0 %v2245
  %3422 = vmatpush.bf16.msra.mxu0 %v2241
  %3423 = vmatmul.bf16.gmra.mxu0 %v579
  %v3424 = vpop.f32.mrf.mxu0
  %v3425 = vadd.f32 %v3412, %v3424
  %v3426 = vpop.f32.mrf.mxu0
  %3427 = vdwg.mxu0
  %3428 = vmatpush.bf16.msra.mxu0 %v2301
  %3429 = vmatpush.bf16.msra.mxu0 %v2297
  %3430 = vmatpush.bf16.msra.mxu0 %v2293
  %3431 = vmatpush.bf16.msra.mxu0 %v2289
  %3432 = vmatpush.bf16.msra.mxu0 %v2285
  %3433 = vmatpush.bf16.msra.mxu0 %v2281
  %3434 = vmatpush.bf16.msra.mxu0 %v2277
  %3435 = vmatpush.bf16.msra.mxu0 %v2273
  %3436 = vmatmul.bf16.gmra.mxu0 %v580
  %v3437 = vpop.f32.mrf.mxu0
  %v3438 = vadd.f32 %v3425, %v3437
  %v3439 = vpop.f32.mrf.mxu0
  %3440 = vdwg.mxu0
  %3441 = vmatpush.bf16.msra.mxu0 %v2333
  %3442 = vmatpush.bf16.msra.mxu0 %v2329
  %3443 = vmatpush.bf16.msra.mxu0 %v2325
  %3444 = vmatpush.bf16.msra.mxu0 %v2321
  %3445 = vmatpush.bf16.msra.mxu0 %v2317
  %3446 = vmatpush.bf16.msra.mxu0 %v2313
  %3447 = vmatpush.bf16.msra.mxu0 %v2309
  %3448 = vmatpush.bf16.msra.mxu0 %v2305
  %3449 = vmatmul.bf16.gmra.mxu0 %v581
  %v3450 = vpop.f32.mrf.mxu0
  %v3451 = vadd.f32 %v3438, %v3450
  %v3452 = vpop.f32.mrf.mxu0
  %3453 = vdwg.mxu0
  %3454 = vmatpush.bf16.msra.mxu0 %v2365
  %3455 = vmatpush.bf16.msra.mxu0 %v2361
  %3456 = vmatpush.bf16.msra.mxu0 %v2357
  %3457 = vmatpush.bf16.msra.mxu0 %v2353
  %3458 = vmatpush.bf16.msra.mxu0 %v2349
  %3459 = vmatpush.bf16.msra.mxu0 %v2345
  %3460 = vmatpush.bf16.msra.mxu0 %v2341
  %3461 = vmatpush.bf16.msra.mxu0 %v2337
  %3462 = vmatmul.bf16.gmra.mxu0 %v582
  %v3463 = vpop.f32.mrf.mxu0
  %v3464 = vadd.f32 %v3451, %v3463
  %v3465 = vpop.f32.mrf.mxu0
  %3466 = vdwg.mxu0
  %3467 = vmatpush.bf16.msra.mxu0 %v2397
  %3468 = vmatpush.bf16.msra.mxu0 %v2393
  %3469 = vmatpush.bf16.msra.mxu0 %v2389
  %3470 = vmatpush.bf16.msra.mxu0 %v2385
  %3471 = vmatpush.bf16.msra.mxu0 %v2381
  %3472 = vmatpush.bf16.msra.mxu0 %v2377
  %3473 = vmatpush.bf16.msra.mxu0 %v2373
  %3474 = vmatpush.bf16.msra.mxu0 %v2369
  %3475 = vmatmul.bf16.gmra.mxu0 %v583
  %v3476 = vpop.f32.mrf.mxu0
  %v3477 = vadd.f32 %v3464, %v3476
  %v3478 = vpop.f32.mrf.mxu0
  %3479 = vdwg.mxu0
  %3480 = vmatpush.bf16.msra.mxu0 %v2429
  %3481 = vmatpush.bf16.msra.mxu0 %v2425
  %3482 = vmatpush.bf16.msra.mxu0 %v2421
  %3483 = vmatpush.bf16.msra.mxu0 %v2417
  %3484 = vmatpush.bf16.msra.mxu0 %v2413
  %3485 = vmatpush.bf16.msra.mxu0 %v2409
  %3486 = vmatpush.bf16.msra.mxu0 %v2405
  %3487 = vmatpush.bf16.msra.mxu0 %v2401
  %3488 = vmatmul.bf16.gmra.mxu0 %v584
  %v3489 = vpop.f32.mrf.mxu0
  %v3490 = vadd.f32 %v3477, %v3489
  %v3491 = vpop.f32.mrf.mxu0
  %3492 = vdwg.mxu0
  %3493 = vmatpush.bf16.msra.mxu0 %v2461
  %3494 = vmatpush.bf16.msra.mxu0 %v2457
  %3495 = vmatpush.bf16.msra.mxu0 %v2453
  %3496 = vmatpush.bf16.msra.mxu0 %v2449
  %3497 = vmatpush.bf16.msra.mxu0 %v2445
  %3498 = vmatpush.bf16.msra.mxu0 %v2441
  %3499 = vmatpush.bf16.msra.mxu0 %v2437
  %3500 = vmatpush.bf16.msra.mxu0 %v2433
  %3501 = vmatmul.bf16.gmra.mxu0 %v585
  %v3502 = vpop.f32.mrf.mxu0
  %v3503 = vadd.f32 %v3490, %v3502
  %v3504 = vpop.f32.mrf.mxu0
  %3505 = vdwg.mxu0
  %3506 = vmatpush.bf16.msra.mxu0 %v2493
  %3507 = vmatpush.bf16.msra.mxu0 %v2489
  %3508 = vmatpush.bf16.msra.mxu0 %v2485
  %3509 = vmatpush.bf16.msra.mxu0 %v2481
  %3510 = vmatpush.bf16.msra.mxu0 %v2477
  %3511 = vmatpush.bf16.msra.mxu0 %v2473
  %3512 = vmatpush.bf16.msra.mxu0 %v2469
  %3513 = vmatpush.bf16.msra.mxu0 %v2465
  %3514 = vmatmul.bf16.gmra.mxu0 %v586
  %v3515 = vpop.f32.mrf.mxu0
  %v3516 = vadd.f32 %v3503, %v3515
  %v3517 = vpop.f32.mrf.mxu0
  %3518 = vdwg.mxu0
  %3519 = vmatpush.bf16.msra.mxu0 %v2525
  %3520 = vmatpush.bf16.msra.mxu0 %v2521
  %3521 = vmatpush.bf16.msra.mxu0 %v2517
  %3522 = vmatpush.bf16.msra.mxu0 %v2513
  %3523 = vmatpush.bf16.msra.mxu0 %v2509
  %3524 = vmatpush.bf16.msra.mxu0 %v2505
  %3525 = vmatpush.bf16.msra.mxu0 %v2501
  %3526 = vmatpush.bf16.msra.mxu0 %v2497
  %3527 = vmatmul.bf16.gmra.mxu0 %v587
  %v3528 = vpop.f32.mrf.mxu0
  %v3529 = vadd.f32 %v3516, %v3528
  %v3530 = vpop.f32.mrf.mxu0
  %3531 = vdwg.mxu0
  %3532 = vmatpush.bf16.msra.mxu0 %v2557
  %3533 = vmatpush.bf16.msra.mxu0 %v2553
  %3534 = vmatpush.bf16.msra.mxu0 %v2549
  %3535 = vmatpush.bf16.msra.mxu0 %v2545
  %3536 = vmatpush.bf16.msra.mxu0 %v2541
  %3537 = vmatpush.bf16.msra.mxu0 %v2537
  %3538 = vmatpush.bf16.msra.mxu0 %v2533
  %3539 = vmatpush.bf16.msra.mxu0 %v2529
  %3540 = vmatmul.bf16.gmra.mxu0 %v588
  %v3541 = vpop.f32.mrf.mxu0
  %v3542 = vadd.f32 %v3529, %v3541
  %v3543 = vpop.f32.mrf.mxu0
  %3544 = vdwg.mxu0
  %3545 = vmatpush.bf16.msra.mxu0 %v2589
  %3546 = vmatpush.bf16.msra.mxu0 %v2585
  %3547 = vmatpush.bf16.msra.mxu0 %v2581
  %3548 = vmatpush.bf16.msra.mxu0 %v2577
  %3549 = vmatpush.bf16.msra.mxu0 %v2573
  %3550 = vmatpush.bf16.msra.mxu0 %v2569
  %3551 = vmatpush.bf16.msra.mxu0 %v2565
  %3552 = vmatpush.bf16.msra.mxu0 %v2561
  %3553 = vmatmul.bf16.gmra.mxu0 %v589
  %v3554 = vpop.f32.mrf.mxu0
  %v3555 = vadd.f32 %v3542, %v3554
  %v3556 = vpop.f32.mrf.mxu0
  %3557 = vdwg.mxu0
  %3558 = vmatpush.bf16.msra.mxu0 %v2621
  %3559 = vmatpush.bf16.msra.mxu0 %v2617
  %3560 = vmatpush.bf16.msra.mxu0 %v2613
  %3561 = vmatpush.bf16.msra.mxu0 %v2609
  %3562 = vmatpush.bf16.msra.mxu0 %v2605
  %3563 = vmatpush.bf16.msra.mxu0 %v2601
  %3564 = vmatpush.bf16.msra.mxu0 %v2597
  %3565 = vmatpush.bf16.msra.mxu0 %v2593
  %3566 = vmatmul.bf16.gmra.mxu0 %v590
  %v3567 = vpop.f32.mrf.mxu0
  %v3568 = vadd.f32 %v3555, %v3567
  %v3569 = vpop.f32.mrf.mxu0
  %3570 = vdwg.mxu0
  %3571 = vmatpush.bf16.msra.mxu0 %v2653
  %3572 = vmatpush.bf16.msra.mxu0 %v2649
  %3573 = vmatpush.bf16.msra.mxu0 %v2645
  %3574 = vmatpush.bf16.msra.mxu0 %v2641
  %3575 = vmatpush.bf16.msra.mxu0 %v2637
  %3576 = vmatpush.bf16.msra.mxu0 %v2633
  %3577 = vmatpush.bf16.msra.mxu0 %v2629
  %3578 = vmatpush.bf16.msra.mxu0 %v2625
  %3579 = vmatmul.bf16.gmra.mxu0 %v591
  %v3580 = vpop.f32.mrf.mxu0
  %v3581 = vadd.f32 %v3568, %v3580
  %v3582 = vpop.f32.mrf.mxu0
  %3583 = vdwg.mxu0
  %3584 = vmatpush.bf16.msra.mxu0 %v2174
  %3585 = vmatpush.bf16.msra.mxu0 %v2170
  %3586 = vmatpush.bf16.msra.mxu0 %v2166
  %3587 = vmatpush.bf16.msra.mxu0 %v2162
  %3588 = vmatpush.bf16.msra.mxu0 %v2158
  %3589 = vmatpush.bf16.msra.mxu0 %v2154
  %3590 = vmatpush.bf16.msra.mxu0 %v2150
  %3591 = vmatpush.bf16.msra.mxu0 %v2146
  %3592 = vmatmul.bf16.gmra.mxu0 %v576
  %v3593 = vpop.f32.mrf.mxu0
  %v3594 = vadd.f32 %v546, %v3593
  %v3595 = vpop.f32.mrf.mxu0
  %3596 = vdwg.mxu0
  %3597 = vmatpush.bf16.msra.mxu0 %v2206
  %3598 = vmatpush.bf16.msra.mxu0 %v2202
  %3599 = vmatpush.bf16.msra.mxu0 %v2198
  %3600 = vmatpush.bf16.msra.mxu0 %v2194
  %3601 = vmatpush.bf16.msra.mxu0 %v2190
  %3602 = vmatpush.bf16.msra.mxu0 %v2186
  %3603 = vmatpush.bf16.msra.mxu0 %v2182
  %3604 = vmatpush.bf16.msra.mxu0 %v2178
  %3605 = vmatmul.bf16.gmra.mxu0 %v577
  %v3606 = vpop.f32.mrf.mxu0
  %v3607 = vadd.f32 %v3594, %v3606
  %v3608 = vpop.f32.mrf.mxu0
  %3609 = vdwg.mxu0
  %3610 = vmatpush.bf16.msra.mxu0 %v2238
  %3611 = vmatpush.bf16.msra.mxu0 %v2234
  %3612 = vmatpush.bf16.msra.mxu0 %v2230
  %3613 = vmatpush.bf16.msra.mxu0 %v2226
  %3614 = vmatpush.bf16.msra.mxu0 %v2222
  %3615 = vmatpush.bf16.msra.mxu0 %v2218
  %3616 = vmatpush.bf16.msra.mxu0 %v2214
  %3617 = vmatpush.bf16.msra.mxu0 %v2210
  %3618 = vmatmul.bf16.gmra.mxu0 %v578
  %v3619 = vpop.f32.mrf.mxu0
  %v3620 = vadd.f32 %v3607, %v3619
  %v3621 = vpop.f32.mrf.mxu0
  %3622 = vdwg.mxu0
  %3623 = vmatpush.bf16.msra.mxu0 %v2270
  %3624 = vmatpush.bf16.msra.mxu0 %v2266
  %3625 = vmatpush.bf16.msra.mxu0 %v2262
  %3626 = vmatpush.bf16.msra.mxu0 %v2258
  %3627 = vmatpush.bf16.msra.mxu0 %v2254
  %3628 = vmatpush.bf16.msra.mxu0 %v2250
  %3629 = vmatpush.bf16.msra.mxu0 %v2246
  %3630 = vmatpush.bf16.msra.mxu0 %v2242
  %3631 = vmatmul.bf16.gmra.mxu0 %v579
  %v3632 = vpop.f32.mrf.mxu0
  %v3633 = vadd.f32 %v3620, %v3632
  %v3634 = vpop.f32.mrf.mxu0
  %3635 = vdwg.mxu0
  %3636 = vmatpush.bf16.msra.mxu0 %v2302
  %3637 = vmatpush.bf16.msra.mxu0 %v2298
  %3638 = vmatpush.bf16.msra.mxu0 %v2294
  %3639 = vmatpush.bf16.msra.mxu0 %v2290
  %3640 = vmatpush.bf16.msra.mxu0 %v2286
  %3641 = vmatpush.bf16.msra.mxu0 %v2282
  %3642 = vmatpush.bf16.msra.mxu0 %v2278
  %3643 = vmatpush.bf16.msra.mxu0 %v2274
  %3644 = vmatmul.bf16.gmra.mxu0 %v580
  %v3645 = vpop.f32.mrf.mxu0
  %v3646 = vadd.f32 %v3633, %v3645
  %v3647 = vpop.f32.mrf.mxu0
  %3648 = vdwg.mxu0
  %3649 = vmatpush.bf16.msra.mxu0 %v2334
  %3650 = vmatpush.bf16.msra.mxu0 %v2330
  %3651 = vmatpush.bf16.msra.mxu0 %v2326
  %3652 = vmatpush.bf16.msra.mxu0 %v2322
  %3653 = vmatpush.bf16.msra.mxu0 %v2318
  %3654 = vmatpush.bf16.msra.mxu0 %v2314
  %3655 = vmatpush.bf16.msra.mxu0 %v2310
  %3656 = vmatpush.bf16.msra.mxu0 %v2306
  %3657 = vmatmul.bf16.gmra.mxu0 %v581
  %v3658 = vpop.f32.mrf.mxu0
  %v3659 = vadd.f32 %v3646, %v3658
  %v3660 = vpop.f32.mrf.mxu0
  %3661 = vdwg.mxu0
  %3662 = vmatpush.bf16.msra.mxu0 %v2366
  %3663 = vmatpush.bf16.msra.mxu0 %v2362
  %3664 = vmatpush.bf16.msra.mxu0 %v2358
  %3665 = vmatpush.bf16.msra.mxu0 %v2354
  %3666 = vmatpush.bf16.msra.mxu0 %v2350
  %3667 = vmatpush.bf16.msra.mxu0 %v2346
  %3668 = vmatpush.bf16.msra.mxu0 %v2342
  %3669 = vmatpush.bf16.msra.mxu0 %v2338
  %3670 = vmatmul.bf16.gmra.mxu0 %v582
  %v3671 = vpop.f32.mrf.mxu0
  %v3672 = vadd.f32 %v3659, %v3671
  %v3673 = vpop.f32.mrf.mxu0
  %3674 = vdwg.mxu0
  %3675 = vmatpush.bf16.msra.mxu0 %v2398
  %3676 = vmatpush.bf16.msra.mxu0 %v2394
  %3677 = vmatpush.bf16.msra.mxu0 %v2390
  %3678 = vmatpush.bf16.msra.mxu0 %v2386
  %3679 = vmatpush.bf16.msra.mxu0 %v2382
  %3680 = vmatpush.bf16.msra.mxu0 %v2378
  %3681 = vmatpush.bf16.msra.mxu0 %v2374
  %3682 = vmatpush.bf16.msra.mxu0 %v2370
  %3683 = vmatmul.bf16.gmra.mxu0 %v583
  %v3684 = vpop.f32.mrf.mxu0
  %v3685 = vadd.f32 %v3672, %v3684
  %v3686 = vpop.f32.mrf.mxu0
  %3687 = vdwg.mxu0
  %3688 = vmatpush.bf16.msra.mxu0 %v2430
  %3689 = vmatpush.bf16.msra.mxu0 %v2426
  %3690 = vmatpush.bf16.msra.mxu0 %v2422
  %3691 = vmatpush.bf16.msra.mxu0 %v2418
  %3692 = vmatpush.bf16.msra.mxu0 %v2414
  %3693 = vmatpush.bf16.msra.mxu0 %v2410
  %3694 = vmatpush.bf16.msra.mxu0 %v2406
  %3695 = vmatpush.bf16.msra.mxu0 %v2402
  %3696 = vmatmul.bf16.gmra.mxu0 %v584
  %v3697 = vpop.f32.mrf.mxu0
  %v3698 = vadd.f32 %v3685, %v3697
  %v3699 = vpop.f32.mrf.mxu0
  %3700 = vdwg.mxu0
  %3701 = vmatpush.bf16.msra.mxu0 %v2462
  %3702 = vmatpush.bf16.msra.mxu0 %v2458
  %3703 = vmatpush.bf16.msra.mxu0 %v2454
  %3704 = vmatpush.bf16.msra.mxu0 %v2450
  %3705 = vmatpush.bf16.msra.mxu0 %v2446
  %3706 = vmatpush.bf16.msra.mxu0 %v2442
  %3707 = vmatpush.bf16.msra.mxu0 %v2438
  %3708 = vmatpush.bf16.msra.mxu0 %v2434
  %3709 = vmatmul.bf16.gmra.mxu0 %v585
  %v3710 = vpop.f32.mrf.mxu0
  %v3711 = vadd.f32 %v3698, %v3710
  %v3712 = vpop.f32.mrf.mxu0
  %3713 = vdwg.mxu0
  %3714 = vmatpush.bf16.msra.mxu0 %v2494
  %3715 = vmatpush.bf16.msra.mxu0 %v2490
  %3716 = vmatpush.bf16.msra.mxu0 %v2486
  %3717 = vmatpush.bf16.msra.mxu0 %v2482
  %3718 = vmatpush.bf16.msra.mxu0 %v2478
  %3719 = vmatpush.bf16.msra.mxu0 %v2474
  %3720 = vmatpush.bf16.msra.mxu0 %v2470
  %3721 = vmatpush.bf16.msra.mxu0 %v2466
  %3722 = vmatmul.bf16.gmra.mxu0 %v586
  %v3723 = vpop.f32.mrf.mxu0
  %v3724 = vadd.f32 %v3711, %v3723
  %v3725 = vpop.f32.mrf.mxu0
  %3726 = vdwg.mxu0
  %3727 = vmatpush.bf16.msra.mxu0 %v2526
  %3728 = vmatpush.bf16.msra.mxu0 %v2522
  %3729 = vmatpush.bf16.msra.mxu0 %v2518
  %3730 = vmatpush.bf16.msra.mxu0 %v2514
  %3731 = vmatpush.bf16.msra.mxu0 %v2510
  %3732 = vmatpush.bf16.msra.mxu0 %v2506
  %3733 = vmatpush.bf16.msra.mxu0 %v2502
  %3734 = vmatpush.bf16.msra.mxu0 %v2498
  %3735 = vmatmul.bf16.gmra.mxu0 %v587
  %v3736 = vpop.f32.mrf.mxu0
  %v3737 = vadd.f32 %v3724, %v3736
  %v3738 = vpop.f32.mrf.mxu0
  %3739 = vdwg.mxu0
  %3740 = vmatpush.bf16.msra.mxu0 %v2558
  %3741 = vmatpush.bf16.msra.mxu0 %v2554
  %3742 = vmatpush.bf16.msra.mxu0 %v2550
  %3743 = vmatpush.bf16.msra.mxu0 %v2546
  %3744 = vmatpush.bf16.msra.mxu0 %v2542
  %3745 = vmatpush.bf16.msra.mxu0 %v2538
  %3746 = vmatpush.bf16.msra.mxu0 %v2534
  %3747 = vmatpush.bf16.msra.mxu0 %v2530
  %3748 = vmatmul.bf16.gmra.mxu0 %v588
  %v3749 = vpop.f32.mrf.mxu0
  %v3750 = vadd.f32 %v3737, %v3749
  %v3751 = vpop.f32.mrf.mxu0
  %3752 = vdwg.mxu0
  %3753 = vmatpush.bf16.msra.mxu0 %v2590
  %3754 = vmatpush.bf16.msra.mxu0 %v2586
  %3755 = vmatpush.bf16.msra.mxu0 %v2582
  %3756 = vmatpush.bf16.msra.mxu0 %v2578
  %3757 = vmatpush.bf16.msra.mxu0 %v2574
  %3758 = vmatpush.bf16.msra.mxu0 %v2570
  %3759 = vmatpush.bf16.msra.mxu0 %v2566
  %3760 = vmatpush.bf16.msra.mxu0 %v2562
  %3761 = vmatmul.bf16.gmra.mxu0 %v589
  %v3762 = vpop.f32.mrf.mxu0
  %v3763 = vadd.f32 %v3750, %v3762
  %v3764 = vpop.f32.mrf.mxu0
  %3765 = vdwg.mxu0
  %3766 = vmatpush.bf16.msra.mxu0 %v2622
  %3767 = vmatpush.bf16.msra.mxu0 %v2618
  %3768 = vmatpush.bf16.msra.mxu0 %v2614
  %3769 = vmatpush.bf16.msra.mxu0 %v2610
  %3770 = vmatpush.bf16.msra.mxu0 %v2606
  %3771 = vmatpush.bf16.msra.mxu0 %v2602
  %3772 = vmatpush.bf16.msra.mxu0 %v2598
  %3773 = vmatpush.bf16.msra.mxu0 %v2594
  %3774 = vmatmul.bf16.gmra.mxu0 %v590
  %v3775 = vpop.f32.mrf.mxu0
  %v3776 = vadd.f32 %v3763, %v3775
  %v3777 = vpop.f32.mrf.mxu0
  %3778 = vdwg.mxu0
  %3779 = vmatpush.bf16.msra.mxu0 %v2654
  %3780 = vmatpush.bf16.msra.mxu0 %v2650
  %3781 = vmatpush.bf16.msra.mxu0 %v2646
  %3782 = vmatpush.bf16.msra.mxu0 %v2642
  %3783 = vmatpush.bf16.msra.mxu0 %v2638
  %3784 = vmatpush.bf16.msra.mxu0 %v2634
  %3785 = vmatpush.bf16.msra.mxu0 %v2630
  %3786 = vmatpush.bf16.msra.mxu0 %v2626
  %3787 = vmatmul.bf16.gmra.mxu0 %v591
  %v3788 = vpop.f32.mrf.mxu0
  %v3789 = vadd.f32 %v3776, %v3788
  %v3790 = vpop.f32.mrf.mxu0
  %3791 = vdwg.mxu0
  %3792 = vmatpush.bf16.msra.mxu0 %v2175
  %3793 = vmatpush.bf16.msra.mxu0 %v2171
  %3794 = vmatpush.bf16.msra.mxu0 %v2167
  %3795 = vmatpush.bf16.msra.mxu0 %v2163
  %3796 = vmatpush.bf16.msra.mxu0 %v2159
  %3797 = vmatpush.bf16.msra.mxu0 %v2155
  %3798 = vmatpush.bf16.msra.mxu0 %v2151
  %3799 = vmatpush.bf16.msra.mxu0 %v2147
  %3800 = vmatmul.bf16.gmra.mxu0 %v576
  %v3801 = vpop.f32.mrf.mxu0
  %v3802 = vadd.f32 %v547, %v3801
  %v3803 = vpop.f32.mrf.mxu0
  %3804 = vdwg.mxu0
  %3805 = vmatpush.bf16.msra.mxu0 %v2207
  %3806 = vmatpush.bf16.msra.mxu0 %v2203
  %3807 = vmatpush.bf16.msra.mxu0 %v2199
  %3808 = vmatpush.bf16.msra.mxu0 %v2195
  %3809 = vmatpush.bf16.msra.mxu0 %v2191
  %3810 = vmatpush.bf16.msra.mxu0 %v2187
  %3811 = vmatpush.bf16.msra.mxu0 %v2183
  %3812 = vmatpush.bf16.msra.mxu0 %v2179
  %3813 = vmatmul.bf16.gmra.mxu0 %v577
  %v3814 = vpop.f32.mrf.mxu0
  %v3815 = vadd.f32 %v3802, %v3814
  %v3816 = vpop.f32.mrf.mxu0
  %3817 = vdwg.mxu0
  %3818 = vmatpush.bf16.msra.mxu0 %v2239
  %3819 = vmatpush.bf16.msra.mxu0 %v2235
  %3820 = vmatpush.bf16.msra.mxu0 %v2231
  %3821 = vmatpush.bf16.msra.mxu0 %v2227
  %3822 = vmatpush.bf16.msra.mxu0 %v2223
  %3823 = vmatpush.bf16.msra.mxu0 %v2219
  %3824 = vmatpush.bf16.msra.mxu0 %v2215
  %3825 = vmatpush.bf16.msra.mxu0 %v2211
  %3826 = vmatmul.bf16.gmra.mxu0 %v578
  %v3827 = vpop.f32.mrf.mxu0
  %v3828 = vadd.f32 %v3815, %v3827
  %v3829 = vpop.f32.mrf.mxu0
  %3830 = vdwg.mxu0
  %3831 = vmatpush.bf16.msra.mxu0 %v2271
  %3832 = vmatpush.bf16.msra.mxu0 %v2267
  %3833 = vmatpush.bf16.msra.mxu0 %v2263
  %3834 = vmatpush.bf16.msra.mxu0 %v2259
  %3835 = vmatpush.bf16.msra.mxu0 %v2255
  %3836 = vmatpush.bf16.msra.mxu0 %v2251
  %3837 = vmatpush.bf16.msra.mxu0 %v2247
  %3838 = vmatpush.bf16.msra.mxu0 %v2243
  %3839 = vmatmul.bf16.gmra.mxu0 %v579
  %v3840 = vpop.f32.mrf.mxu0
  %v3841 = vadd.f32 %v3828, %v3840
  %v3842 = vpop.f32.mrf.mxu0
  %3843 = vdwg.mxu0
  %3844 = vmatpush.bf16.msra.mxu0 %v2303
  %3845 = vmatpush.bf16.msra.mxu0 %v2299
  %3846 = vmatpush.bf16.msra.mxu0 %v2295
  %3847 = vmatpush.bf16.msra.mxu0 %v2291
  %3848 = vmatpush.bf16.msra.mxu0 %v2287
  %3849 = vmatpush.bf16.msra.mxu0 %v2283
  %3850 = vmatpush.bf16.msra.mxu0 %v2279
  %3851 = vmatpush.bf16.msra.mxu0 %v2275
  %3852 = vmatmul.bf16.gmra.mxu0 %v580
  %v3853 = vpop.f32.mrf.mxu0
  %v3854 = vadd.f32 %v3841, %v3853
  %v3855 = vpop.f32.mrf.mxu0
  %3856 = vdwg.mxu0
  %3857 = vmatpush.bf16.msra.mxu0 %v2335
  %3858 = vmatpush.bf16.msra.mxu0 %v2331
  %3859 = vmatpush.bf16.msra.mxu0 %v2327
  %3860 = vmatpush.bf16.msra.mxu0 %v2323
  %3861 = vmatpush.bf16.msra.mxu0 %v2319
  %3862 = vmatpush.bf16.msra.mxu0 %v2315
  %3863 = vmatpush.bf16.msra.mxu0 %v2311
  %3864 = vmatpush.bf16.msra.mxu0 %v2307
  %3865 = vmatmul.bf16.gmra.mxu0 %v581
  %v3866 = vpop.f32.mrf.mxu0
  %v3867 = vadd.f32 %v3854, %v3866
  %v3868 = vpop.f32.mrf.mxu0
  %3869 = vdwg.mxu0
  %3870 = vmatpush.bf16.msra.mxu0 %v2367
  %3871 = vmatpush.bf16.msra.mxu0 %v2363
  %3872 = vmatpush.bf16.msra.mxu0 %v2359
  %3873 = vmatpush.bf16.msra.mxu0 %v2355
  %3874 = vmatpush.bf16.msra.mxu0 %v2351
  %3875 = vmatpush.bf16.msra.mxu0 %v2347
  %3876 = vmatpush.bf16.msra.mxu0 %v2343
  %3877 = vmatpush.bf16.msra.mxu0 %v2339
  %3878 = vmatmul.bf16.gmra.mxu0 %v582
  %v3879 = vpop.f32.mrf.mxu0
  %v3880 = vadd.f32 %v3867, %v3879
  %v3881 = vpop.f32.mrf.mxu0
  %3882 = vdwg.mxu0
  %3883 = vmatpush.bf16.msra.mxu0 %v2399
  %3884 = vmatpush.bf16.msra.mxu0 %v2395
  %3885 = vmatpush.bf16.msra.mxu0 %v2391
  %3886 = vmatpush.bf16.msra.mxu0 %v2387
  %3887 = vmatpush.bf16.msra.mxu0 %v2383
  %3888 = vmatpush.bf16.msra.mxu0 %v2379
  %3889 = vmatpush.bf16.msra.mxu0 %v2375
  %3890 = vmatpush.bf16.msra.mxu0 %v2371
  %3891 = vmatmul.bf16.gmra.mxu0 %v583
  %v3892 = vpop.f32.mrf.mxu0
  %v3893 = vadd.f32 %v3880, %v3892
  %v3894 = vpop.f32.mrf.mxu0
  %3895 = vdwg.mxu0
  %3896 = vmatpush.bf16.msra.mxu0 %v2431
  %3897 = vmatpush.bf16.msra.mxu0 %v2427
  %3898 = vmatpush.bf16.msra.mxu0 %v2423
  %3899 = vmatpush.bf16.msra.mxu0 %v2419
  %3900 = vmatpush.bf16.msra.mxu0 %v2415
  %3901 = vmatpush.bf16.msra.mxu0 %v2411
  %3902 = vmatpush.bf16.msra.mxu0 %v2407
  %3903 = vmatpush.bf16.msra.mxu0 %v2403
  %3904 = vmatmul.bf16.gmra.mxu0 %v584
  %v3905 = vpop.f32.mrf.mxu0
  %v3906 = vadd.f32 %v3893, %v3905
  %v3907 = vpop.f32.mrf.mxu0
  %3908 = vdwg.mxu0
  %3909 = vmatpush.bf16.msra.mxu0 %v2463
  %3910 = vmatpush.bf16.msra.mxu0 %v2459
  %3911 = vmatpush.bf16.msra.mxu0 %v2455
  %3912 = vmatpush.bf16.msra.mxu0 %v2451
  %3913 = vmatpush.bf16.msra.mxu0 %v2447
  %3914 = vmatpush.bf16.msra.mxu0 %v2443
  %3915 = vmatpush.bf16.msra.mxu0 %v2439
  %3916 = vmatpush.bf16.msra.mxu0 %v2435
  %3917 = vmatmul.bf16.gmra.mxu0 %v585
  %v3918 = vpop.f32.mrf.mxu0
  %v3919 = vadd.f32 %v3906, %v3918
  %v3920 = vpop.f32.mrf.mxu0
  %3921 = vdwg.mxu0
  %3922 = vmatpush.bf16.msra.mxu0 %v2495
  %3923 = vmatpush.bf16.msra.mxu0 %v2491
  %3924 = vmatpush.bf16.msra.mxu0 %v2487
  %3925 = vmatpush.bf16.msra.mxu0 %v2483
  %3926 = vmatpush.bf16.msra.mxu0 %v2479
  %3927 = vmatpush.bf16.msra.mxu0 %v2475
  %3928 = vmatpush.bf16.msra.mxu0 %v2471
  %3929 = vmatpush.bf16.msra.mxu0 %v2467
  %3930 = vmatmul.bf16.gmra.mxu0 %v586
  %v3931 = vpop.f32.mrf.mxu0
  %v3932 = vadd.f32 %v3919, %v3931
  %v3933 = vpop.f32.mrf.mxu0
  %3934 = vdwg.mxu0
  %3935 = vmatpush.bf16.msra.mxu0 %v2527
  %3936 = vmatpush.bf16.msra.mxu0 %v2523
  %3937 = vmatpush.bf16.msra.mxu0 %v2519
  %3938 = vmatpush.bf16.msra.mxu0 %v2515
  %3939 = vmatpush.bf16.msra.mxu0 %v2511
  %3940 = vmatpush.bf16.msra.mxu0 %v2507
  %3941 = vmatpush.bf16.msra.mxu0 %v2503
  %3942 = vmatpush.bf16.msra.mxu0 %v2499
  %3943 = vmatmul.bf16.gmra.mxu0 %v587
  %v3944 = vpop.f32.mrf.mxu0
  %v3945 = vadd.f32 %v3932, %v3944
  %v3946 = vpop.f32.mrf.mxu0
  %3947 = vdwg.mxu0
  %3948 = vmatpush.bf16.msra.mxu0 %v2559
  %3949 = vmatpush.bf16.msra.mxu0 %v2555
  %3950 = vmatpush.bf16.msra.mxu0 %v2551
  %3951 = vmatpush.bf16.msra.mxu0 %v2547
  %3952 = vmatpush.bf16.msra.mxu0 %v2543
  %3953 = vmatpush.bf16.msra.mxu0 %v2539
  %3954 = vmatpush.bf16.msra.mxu0 %v2535
  %3955 = vmatpush.bf16.msra.mxu0 %v2531
  %3956 = vmatmul.bf16.gmra.mxu0 %v588
  %v3957 = vpop.f32.mrf.mxu0
  %v3958 = vadd.f32 %v3945, %v3957
  %v3959 = vpop.f32.mrf.mxu0
  %3960 = vdwg.mxu0
  %3961 = vmatpush.bf16.msra.mxu0 %v2591
  %3962 = vmatpush.bf16.msra.mxu0 %v2587
  %3963 = vmatpush.bf16.msra.mxu0 %v2583
  %3964 = vmatpush.bf16.msra.mxu0 %v2579
  %3965 = vmatpush.bf16.msra.mxu0 %v2575
  %3966 = vmatpush.bf16.msra.mxu0 %v2571
  %3967 = vmatpush.bf16.msra.mxu0 %v2567
  %3968 = vmatpush.bf16.msra.mxu0 %v2563
  %3969 = vmatmul.bf16.gmra.mxu0 %v589
  %v3970 = vpop.f32.mrf.mxu0
  %v3971 = vadd.f32 %v3958, %v3970
  %v3972 = vpop.f32.mrf.mxu0
  %3973 = vdwg.mxu0
  %3974 = vmatpush.bf16.msra.mxu0 %v2623
  %3975 = vmatpush.bf16.msra.mxu0 %v2619
  %3976 = vmatpush.bf16.msra.mxu0 %v2615
  %3977 = vmatpush.bf16.msra.mxu0 %v2611
  %3978 = vmatpush.bf16.msra.mxu0 %v2607
  %3979 = vmatpush.bf16.msra.mxu0 %v2603
  %3980 = vmatpush.bf16.msra.mxu0 %v2599
  %3981 = vmatpush.bf16.msra.mxu0 %v2595
  %3982 = vmatmul.bf16.gmra.mxu0 %v590
  %v3983 = vpop.f32.mrf.mxu0
  %v3984 = vadd.f32 %v3971, %v3983
  %v3985 = vpop.f32.mrf.mxu0
  %3986 = vdwg.mxu0
  %3987 = vmatpush.bf16.msra.mxu0 %v2655
  %3988 = vmatpush.bf16.msra.mxu0 %v2651
  %3989 = vmatpush.bf16.msra.mxu0 %v2647
  %3990 = vmatpush.bf16.msra.mxu0 %v2643
  %3991 = vmatpush.bf16.msra.mxu0 %v2639
  %3992 = vmatpush.bf16.msra.mxu0 %v2635
  %3993 = vmatpush.bf16.msra.mxu0 %v2631
  %3994 = vmatpush.bf16.msra.mxu0 %v2627
  %3995 = vmatmul.bf16.gmra.mxu0 %v591
  %v3996 = vpop.f32.mrf.mxu0
  %v3997 = vadd.f32 %v3984, %v3996
  %v3998 = vpop.f32.mrf.mxu0
  %3999 = vdwg.mxu0
  %v4000 = vmax.f32 %v3373, 0.0
  %v4001 = vmax.f32 %v3581, 0.0
  %v4002 = vmax.f32 %v3789, 0.0
  %v4003 = vmax.f32 %v3997, 0.0
  %4004 = vst [vmem:[%s5] sm:$0xff] %v4000
  %4005 = vst [vmem:[%s5 + $0x8] sm:$0xff] %v4001
  %4006 = vst [vmem:[%s5 + $0x10] sm:$0xff] %v4002
  %4007 = vst [vmem:[%s5 + $0x18] sm:$0xff] %v4003
  %v4008 = vld [vmem:[%s3] sm:$0xf]
  %v4009 = vld [vmem:[%s3 + $0x4] sm:$0xf]
  %v4010 = vld [vmem:[%s3 + $0x8] sm:$0xf]
  %v4011 = vld [vmem:[%s3 + $0xc] sm:$0xf]
  %v4012 = vld [vmem:[%s3 + $0x10] sm:$0xf]
  %v4013 = vld [vmem:[%s3 + $0x14] sm:$0xf]
  %v4014 = vld [vmem:[%s3 + $0x18] sm:$0xf]
  %v4015 = vld [vmem:[%s3 + $0x1c] sm:$0xf]
  %v4016 = vld [vmem:[%s3 + $0x20] sm:$0xf]
  %v4017 = vld [vmem:[%s3 + $0x24] sm:$0xf]
  %v4018 = vld [vmem:[%s3 + $0x28] sm:$0xf]
  %v4019 = vld [vmem:[%s3 + $0x2c] sm:$0xf]
  %v4020 = vld [vmem:[%s3 + $0x30] sm:$0xf]
  %v4021 = vld [vmem:[%s3 + $0x34] sm:$0xf]
  %v4022 = vld [vmem:[%s3 + $0x38] sm:$0xf]
  %v4023 = vld [vmem:[%s3 + $0x3c] sm:$0xf]
  %v4024 = vld [vmem:[%s3 + $0x40] sm:$0xf]
  %v4025 = vld [vmem:[%s3 + $0x44] sm:$0xf]
  %v4026 = vld [vmem:[%s3 + $0x48] sm:$0xf]
  %v4027 = vld [vmem:[%s3 + $0x4c] sm:$0xf]
  %v4028 = vld [vmem:[%s3 + $0x50] sm:$0xf]
  %v4029 = vld [vmem:[%s3 + $0x54] sm:$0xf]
  %v4030 = vld [vmem:[%s3 + $0x58] sm:$0xf]
  %v4031 = vld [vmem:[%s3 + $0x5c] sm:$0xf]
  %v4032 = vld [vmem:[%s3 + $0x60] sm:$0xf]
  %v4033 = vld [vmem:[%s3 + $0x64] sm:$0xf]
  %v4034 = vld [vmem:[%s3 + $0x68] sm:$0xf]
  %v4035 = vld [vmem:[%s3 + $0x6c] sm:$0xf]
  %v4036 = vld [vmem:[%s3 + $0x70] sm:$0xf]
  %v4037 = vld [vmem:[%s3 + $0x74] sm:$0xf]
  %v4038 = vld [vmem:[%s3 + $0x78] sm:$0xf]
  %v4039 = vld [vmem:[%s3 + $0x7c] sm:$0xf]
  %v4040 = vld [vmem:[%s3 + $0x80] sm:$0xf]
  %v4041 = vld [vmem:[%s3 + $0x84] sm:$0xf]
  %v4042 = vld [vmem:[%s3 + $0x88] sm:$0xf]
  %v4043 = vld [vmem:[%s3 + $0x8c] sm:$0xf]
  %v4044 = vld [vmem:[%s3 + $0x90] sm:$0xf]
  %v4045 = vld [vmem:[%s3 + $0x94] sm:$0xf]
  %v4046 = vld [vmem:[%s3 + $0x98] sm:$0xf]
  %v4047 = vld [vmem:[%s3 + $0x9c] sm:$0xf]
  %v4048 = vld [vmem:[%s3 + $0xa0] sm:$0xf]
  %v4049 = vld [vmem:[%s3 + $0xa4] sm:$0xf]
  %v4050 = vld [vmem:[%s3 + $0xa8] sm:$0xf]
  %v4051 = vld [vmem:[%s3 + $0xac] sm:$0xf]
  %v4052 = vld [vmem:[%s3 + $0xb0] sm:$0xf]
  %v4053 = vld [vmem:[%s3 + $0xb4] sm:$0xf]
  %v4054 = vld [vmem:[%s3 + $0xb8] sm:$0xf]
  %v4055 = vld [vmem:[%s3 + $0xbc] sm:$0xf]
  %v4056 = vld [vmem:[%s3 + $0xc0] sm:$0xf]
  %v4057 = vld [vmem:[%s3 + $0xc4] sm:$0xf]
  %v4058 = vld [vmem:[%s3 + $0xc8] sm:$0xf]
  %v4059 = vld [vmem:[%s3 + $0xcc] sm:$0xf]
  %v4060 = vld [vmem:[%s3 + $0xd0] sm:$0xf]
  %v4061 = vld [vmem:[%s3 + $0xd4] sm:$0xf]
  %v4062 = vld [vmem:[%s3 + $0xd8] sm:$0xf]
  %v4063 = vld [vmem:[%s3 + $0xdc] sm:$0xf]
  %v4064 = vld [vmem:[%s3 + $0xe0] sm:$0xf]
  %v4065 = vld [vmem:[%s3 + $0xe4] sm:$0xf]
  %v4066 = vld [vmem:[%s3 + $0xe8] sm:$0xf]
  %v4067 = vld [vmem:[%s3 + $0xec] sm:$0xf]
  %v4068 = vld [vmem:[%s3 + $0xf0] sm:$0xf]
  %v4069 = vld [vmem:[%s3 + $0xf4] sm:$0xf]
  %v4070 = vld [vmem:[%s3 + $0xf8] sm:$0xf]
  %v4071 = vld [vmem:[%s3 + $0xfc] sm:$0xf]
  %v4072 = vpack.c.bf16 %v4000, %v4000
  %v4073 = vpack.c.bf16 %v4001, %v4001
  %v4074 = vpack.c.bf16 %v4002, %v4002
  %v4075 = vpack.c.bf16 %v4003, %v4003
  %v4076 = vld [vmem:[%s4] sm:$0x1]
  %v4078 = vperm.slane %v4076, 0
  %v4144 = vunpack.c.l.b16 %v4008
  %v4145 = vunpack.c.l.b16 %v4009
  %v4146 = vunpack.c.l.b16 %v4010
  %v4147 = vunpack.c.l.b16 %v4011
  %v4148 = vunpack.c.l.b16 %v4012
  %v4149 = vunpack.c.l.b16 %v4013
  %v4150 = vunpack.c.l.b16 %v4014
  %v4151 = vunpack.c.l.b16 %v4015
  %v4152 = vunpack.c.l.b16 %v4016
  %v4153 = vunpack.c.l.b16 %v4017
  %v4154 = vunpack.c.l.b16 %v4018
  %v4155 = vunpack.c.l.b16 %v4019
  %v4156 = vunpack.c.l.b16 %v4020
  %v4157 = vunpack.c.l.b16 %v4021
  %v4158 = vunpack.c.l.b16 %v4022
  %v4159 = vunpack.c.l.b16 %v4023
  %v4160 = vunpack.c.l.b16 %v4024
  %v4161 = vunpack.c.l.b16 %v4025
  %v4162 = vunpack.c.l.b16 %v4026
  %v4163 = vunpack.c.l.b16 %v4027
  %v4164 = vunpack.c.l.b16 %v4028
  %v4165 = vunpack.c.l.b16 %v4029
  %v4166 = vunpack.c.l.b16 %v4030
  %v4167 = vunpack.c.l.b16 %v4031
  %v4168 = vunpack.c.l.b16 %v4032
  %v4169 = vunpack.c.l.b16 %v4033
  %v4170 = vunpack.c.l.b16 %v4034
  %v4171 = vunpack.c.l.b16 %v4035
  %v4172 = vunpack.c.l.b16 %v4036
  %v4173 = vunpack.c.l.b16 %v4037
  %v4174 = vunpack.c.l.b16 %v4038
  %v4175 = vunpack.c.l.b16 %v4039
  %v4176 = vunpack.c.l.b16 %v4040
  %v4177 = vunpack.c.l.b16 %v4041
  %v4178 = vunpack.c.l.b16 %v4042
  %v4179 = vunpack.c.l.b16 %v4043
  %v4180 = vunpack.c.l.b16 %v4044
  %v4181 = vunpack.c.l.b16 %v4045
  %v4182 = vunpack.c.l.b16 %v4046
  %v4183 = vunpack.c.l.b16 %v4047
  %v4184 = vunpack.c.l.b16 %v4048
  %v4185 = vunpack.c.l.b16 %v4049
  %v4186 = vunpack.c.l.b16 %v4050
  %v4187 = vunpack.c.l.b16 %v4051
  %v4188 = vunpack.c.l.b16 %v4052
  %v4189 = vunpack.c.l.b16 %v4053
  %v4190 = vunpack.c.l.b16 %v4054
  %v4191 = vunpack.c.l.b16 %v4055
  %v4192 = vunpack.c.l.b16 %v4056
  %v4193 = vunpack.c.l.b16 %v4057
  %v4194 = vunpack.c.l.b16 %v4058
  %v4195 = vunpack.c.l.b16 %v4059
  %v4196 = vunpack.c.l.b16 %v4060
  %v4197 = vunpack.c.l.b16 %v4061
  %v4198 = vunpack.c.l.b16 %v4062
  %v4199 = vunpack.c.l.b16 %v4063
  %v4200 = vunpack.c.l.b16 %v4064
  %v4201 = vunpack.c.l.b16 %v4065
  %v4202 = vunpack.c.l.b16 %v4066
  %v4203 = vunpack.c.l.b16 %v4067
  %v4204 = vunpack.c.l.b16 %v4068
  %v4205 = vunpack.c.l.b16 %v4069
  %v4206 = vunpack.c.l.b16 %v4070
  %v4207 = vunpack.c.l.b16 %v4071
  %v4208 = vpack.c.b16 %v4145, %v4144
  %v4209 = vpack.c.b16 %v4147, %v4146
  %v4210 = vpack.c.b16 %v4149, %v4148
  %v4211 = vpack.c.b16 %v4151, %v4150
  %v4212 = vpack.c.b16 %v4153, %v4152
  %v4213 = vpack.c.b16 %v4155, %v4154
  %v4214 = vpack.c.b16 %v4157, %v4156
  %v4215 = vpack.c.b16 %v4159, %v4158
  %v4216 = vpack.c.b16 %v4161, %v4160
  %v4217 = vpack.c.b16 %v4163, %v4162
  %v4218 = vpack.c.b16 %v4165, %v4164
  %v4219 = vpack.c.b16 %v4167, %v4166
  %v4220 = vpack.c.b16 %v4169, %v4168
  %v4221 = vpack.c.b16 %v4171, %v4170
  %v4222 = vpack.c.b16 %v4173, %v4172
  %v4223 = vpack.c.b16 %v4175, %v4174
  %v4224 = vpack.c.b16 %v4177, %v4176
  %v4225 = vpack.c.b16 %v4179, %v4178
  %v4226 = vpack.c.b16 %v4181, %v4180
  %v4227 = vpack.c.b16 %v4183, %v4182
  %v4228 = vpack.c.b16 %v4185, %v4184
  %v4229 = vpack.c.b16 %v4187, %v4186
  %v4230 = vpack.c.b16 %v4189, %v4188
  %v4231 = vpack.c.b16 %v4191, %v4190
  %v4232 = vpack.c.b16 %v4193, %v4192
  %v4233 = vpack.c.b16 %v4195, %v4194
  %v4234 = vpack.c.b16 %v4197, %v4196
  %v4235 = vpack.c.b16 %v4199, %v4198
  %v4236 = vpack.c.b16 %v4201, %v4200
  %v4237 = vpack.c.b16 %v4203, %v4202
  %v4238 = vpack.c.b16 %v4205, %v4204
  %v4239 = vpack.c.b16 %v4207, %v4206
  %4272 = vmatpush.bf16.msra.mxu0 %v4215
  %4273 = vmatpush.bf16.msra.mxu0 %v4214
  %4274 = vmatpush.bf16.msra.mxu0 %v4213
  %4275 = vmatpush.bf16.msra.mxu0 %v4212
  %4276 = vmatpush.bf16.msra.mxu0 %v4211
  %4277 = vmatpush.bf16.msra.mxu0 %v4210
  %4278 = vmatpush.bf16.msra.mxu0 %v4209
  %4279 = vmatpush.bf16.msra.mxu0 %v4208
  %4280 = vmatmul.bf16.gmra.mxu0 %v4072
  %v4281 = vpop.f32.mrf.mxu0
  %v4282 = vadd.f32 %v4078, %v4281
  %v4283 = vpop.f32.mrf.mxu0
  %4284 = vdwg.mxu0
  %4285 = vmatpush.bf16.msra.mxu0 %v4223
  %4286 = vmatpush.bf16.msra.mxu0 %v4222
  %4287 = vmatpush.bf16.msra.mxu0 %v4221
  %4288 = vmatpush.bf16.msra.mxu0 %v4220
  %4289 = vmatpush.bf16.msra.mxu0 %v4219
  %4290 = vmatpush.bf16.msra.mxu0 %v4218
  %4291 = vmatpush.bf16.msra.mxu0 %v4217
  %4292 = vmatpush.bf16.msra.mxu0 %v4216
  %4293 = vmatmul.bf16.gmra.mxu0 %v4073
  %v4294 = vpop.f32.mrf.mxu0
  %v4295 = vadd.f32 %v4282, %v4294
  %v4296 = vpop.f32.mrf.mxu0
  %4297 = vdwg.mxu0
  %4298 = vmatpush.bf16.msra.mxu0 %v4231
  %4299 = vmatpush.bf16.msra.mxu0 %v4230
  %4300 = vmatpush.bf16.msra.mxu0 %v4229
  %4301 = vmatpush.bf16.msra.mxu0 %v4228
  %4302 = vmatpush.bf16.msra.mxu0 %v4227
  %4303 = vmatpush.bf16.msra.mxu0 %v4226
  %4304 = vmatpush.bf16.msra.mxu0 %v4225
  %4305 = vmatpush.bf16.msra.mxu0 %v4224
  %4306 = vmatmul.bf16.gmra.mxu0 %v4074
  %v4307 = vpop.f32.mrf.mxu0
  %v4308 = vadd.f32 %v4295, %v4307
  %v4309 = vpop.f32.mrf.mxu0
  %4310 = vdwg.mxu0
  %4311 = vmatpush.bf16.msra.mxu0 %v4239
  %4312 = vmatpush.bf16.msra.mxu0 %v4238
  %4313 = vmatpush.bf16.msra.mxu0 %v4237
  %4314 = vmatpush.bf16.msra.mxu0 %v4236
  %4315 = vmatpush.bf16.msra.mxu0 %v4235
  %4316 = vmatpush.bf16.msra.mxu0 %v4234
  %4317 = vmatpush.bf16.msra.mxu0 %v4233
  %4318 = vmatpush.bf16.msra.mxu0 %v4232
  %4319 = vmatmul.bf16.gmra.mxu0 %v4075
  %v4320 = vpop.f32.mrf.mxu0
  %v4321 = vadd.f32 %v4308, %v4320
  %v4322 = vpop.f32.mrf.mxu0
  %4323 = vdwg.mxu0
  %4324 = vmax.xlane.f32.xlu0 %v4321
  %v4325 = vpop.xlane.xlu0 %4324
  %v4326 = vsub.f32 %v4321, %v4325
  %v4327 = vmul.f32 %v4326, 1.442695
  %v4328 = vpow.pop %v4327
  %4329 = vadd.xlane.f32.xlu0 %v4328
  %v4330 = vpop.xlane.xlu0 %4329
  %v4331 = vlog2.pop %v4330
  %v4332 = vmul.f32 %v4331, 0.6931472
  %v4333 = vsub.f32 %v4326, %v4332
  %4334 = vst [vmem:[%s6] sm:$0xff] %v4333
  // Predicated region
  $region22: #{net_forward.5} parent=0 // pred_check
    _
  $region23: #{net_forward.5} parent=0 // pred_check_branch
    %4336 = sbr.rel (0) target = $region25
  $region24: #{net_forward.5} parent=0 // pred_region
    _
  $region25: #{net_forward.5} parent=0 // pred_fallthru
    _
  // Predicated region
  $region26: #{net_forward.5} parent=0 // pred_check
    _
  $region27: #{net_forward.5} parent=0 // pred_check_branch
    %4338 = sbr.rel (0) target = $region29
  $region28: #{net_forward.5} parent=0 // pred_region
    _
  $region29: #{net_forward.5} parent=0 // pred_fallthru
    _
  // Predicated region
  $region30: #{net_forward.5} parent=0 // pred_check
    _
  $region31: #{net_forward.5} parent=0 // pred_check_branch
    %4340 = sbr.rel (0) target = $region33
  $region32: #{net_forward.5} parent=0 // pred_region
    _
  $region33: #{net_forward.5} parent=0 // pred_fallthru
    _
  // Predicated region
  $region34: #{net_forward.5} parent=0 // pred_check
    _
  $region35: #{net_forward.5} parent=0 // pred_check_branch
    %4342 = sbr.rel (0) target = $region37
  $region36: #{net_forward.5} parent=0 // pred_region
    _
  $region37: #{net_forward.5} parent=0 // pred_fallthru
    _

</llo_original>
